<compile_context>
chip_gen: v5e
topology: v5e:2x2
jax: 0.10.0
libtpu: 0.0.40
codegen_flags: <defaults>
</compile_context>

<pallas_src>
import functools

import jax
import jax.numpy as jnp
from jax.experimental import pallas as pl
from jax.experimental.pallas import tpu as pltpu

# ----------------------------- tiny BERT config -----------------------------
VOCAB = 100
VOCAB_PAD = 128             # word table padded to 128 rows for the one-hot MXU lookup
MAX_POS = 16
TYPE_VOCAB = 2
HIDDEN = 32
NUM_LAYERS = 2
NUM_HEADS = 4
HEAD_DIM = HIDDEN // NUM_HEADS
INTERMEDIATE = 64
NUM_TAGS = 9
NUM_TAGS_PAD = 128          # lane-dense classifier width; real tags are [:NUM_TAGS]
LN_EPS = 1e-12
NEG_BIG = -1e30             # "minus infinity" bias for padded classifier columns


# --------------------------- fused forward kernel ----------------------------
def _bert_ner_kernel(tok_ref, mask_ref, wemb_ref, pt_ref, eg_ref, eb_ref,
                     wq_ref, wk_ref, wv_ref, bq_ref, bk_ref, bv_ref,
                     wo_ref, bo_ref, ln1g_ref, ln1b_ref,
                     wi_ref, bi_ref, wf_ref, bf_ref, ln2g_ref, ln2b_ref,
                     fcw_ref, fcb_ref, out_ref, buf_ref, *, batch, seq):
    f32 = jnp.float32
    bs = batch * seq

    def layernorm(x, g, b):
        mean = jnp.mean(x, axis=-1, keepdims=True)
        var = jnp.mean((x - mean) ** 2, axis=-1, keepdims=True)
        return (x - mean) * jax.lax.rsqrt(var + LN_EPS) * g + b

    def gelu(y):
        # TODO(synk): tanh-approx GELU (BERT uses the exact erf formulation).
        c = f32(0.7978845608028654)  # sqrt(2/pi)
        return 0.5 * y * (1.0 + jnp.tanh(c * (y + 0.044715 * y * y * y)))

    # ---------------- in-kernel embedding lookup (no wrapper-side gather) ---------
    # word embedding via a one-hot (bs, 128) @ (128, HIDDEN) MXU matmul.
    tok = tok_ref[...]                                              # (bs, 1) int32
    col = jax.lax.broadcasted_iota(jnp.int32, (bs, VOCAB_PAD), 1)
    onehot = (col == tok).astype(f32)                               # (bs, VOCAB_PAD)
    word = jnp.dot(onehot, wemb_ref[...], preferred_element_type=f32)   # (bs, HIDDEN)

    # position (+token-type-0) addend: per-batch 8-aligned sublane stores into the
    # VMEM scratch instead of any tile/concatenate.
    pta = pt_ref[0:seq, :]                                          # (seq, HIDDEN)
    for b in range(batch):
        r0 = b * seq
        buf_ref[r0:r0 + seq, :] = word[r0:r0 + seq, :] + pta
    x = layernorm(buf_ref[...], eg_ref[...], eb_ref[...])           # (bs, HIDDEN)

    # ---------------- in-kernel attention-mask bias (mask == -1 treated as 1) -----
    mask = mask_ref[...]                                            # (batch, seq) int32
    eff = jnp.where(mask == -1, 1, mask).astype(f32)
    bias = (1.0 - eff) * f32(-10000.0)                              # (batch, seq)

    for l in range(NUM_LAYERS):                                     # static unroll
        # ---- multi-head self-attention: per-head weights (no lane-axis slices),
        #      head merge folded into per-head output projections, results written
        #      to the VMEM scratch with aligned sublane stores (no concatenate) ----
        for b in range(batch):
            r0 = b * seq
            xb = x[r0:r0 + seq, :]                                  # 8-aligned sublane slice
            bias_b = jnp.broadcast_to(bias[b:b + 1, :], (seq, seq))  # hoisted out of head loop
            acc = jnp.zeros((seq, HIDDEN), f32)
            for h in range(NUM_HEADS):
                w = l * NUM_HEADS + h
                # scale 1/sqrt(HEAD_DIM) already folded into wq/bq at init time
                qh = jnp.dot(xb, wq_ref[w], preferred_element_type=f32) + bq_ref[w]
                kh = jnp.dot(xb, wk_ref[w], preferred_element_type=f32) + bk_ref[w]
                vh = jnp.dot(xb, wv_ref[w], preferred_element_type=f32) + bv_ref[w]
                s = jax.lax.dot_general(qh, kh, (((1,), (1,)), ((), ())),
                                        preferred_element_type=f32) + bias_b
                s = s - jnp.max(s, axis=-1, keepdims=True)
                p = jnp.exp(s)
                p = p * pl.reciprocal(jnp.sum(p, axis=-1, keepdims=True), approx=True)
                ctx = jnp.dot(p, vh, preferred_element_type=f32)    # (seq, HEAD_DIM)
                acc = acc + jnp.dot(ctx, wo_ref[w], preferred_element_type=f32)
            buf_ref[r0:r0 + seq, :] = acc                           # 8-aligned store
        x = layernorm(x + buf_ref[...] + bo_ref[l], ln1g_ref[l], ln1b_ref[l])

        # ---- feed-forward ----
        inter = gelu(jnp.dot(x, wi_ref[l], preferred_element_type=f32) + bi_ref[l])
        ffn = jnp.dot(inter, wf_ref[l], preferred_element_type=f32) + bf_ref[l]
        x = layernorm(x + ffn, ln2g_ref[l], ln2b_ref[l])

    # ---- classifier + log_softmax over a lane-dense, padded 128-wide axis ----
    # padded columns carry bias NEG_BIG so they contribute ~0 to the softmax sum.
    logits = jnp.dot(x, fcw_ref[...], preferred_element_type=f32) + fcb_ref[...]
    m = jnp.max(logits, axis=-1, keepdims=True)
    z = logits - m
    lse = jnp.log(jnp.sum(jnp.exp(z), axis=-1, keepdims=True))
    out_ref[...] = (z - lse).astype(out_ref.dtype)


def _full_spec(shape):
    nd = len(shape)
    return pl.BlockSpec(shape, lambda *_: (0,) * nd)


# ------------------------------ parameter init ------------------------------
def init_params(seed=0):
    key = jax.random.PRNGKey(seed)

    def nrm(k, shape):
        return (0.02 * jax.random.normal(k, shape)).astype(jnp.float32)

    keys = iter(jax.random.split(key, 64))

    word = nrm(next(keys), (VOCAB, HIDDEN))
    pos = nrm(next(keys), (MAX_POS, HIDDEN))
    typ = nrm(next(keys), (TYPE_VOCAB, HIDDEN))

    p = {
        # word table zero-padded to 128 rows for the in-kernel one-hot MXU lookup
        "word_emb_pad": jnp.zeros((VOCAB_PAD, HIDDEN), jnp.float32).at[:VOCAB].set(word),
        # token_type_ids are all zero in this model -> fold type_emb[0] into the
        # position table once at init time (no per-call work).
        "pos_type": pos + typ[0:1, :],
        "emb_ln_g": jnp.ones((1, HIDDEN), jnp.float32),
        "emb_ln_b": jnp.zeros((1, HIDDEN), jnp.float32),
    }

    # classifier: pre-transposed (in, out), zero-padded to 128 output lanes; padded
    # bias columns get NEG_BIG so they vanish inside the fused log_softmax.
    fc_w = nrm(next(keys), (HIDDEN, NUM_TAGS))
    p["fc_w_pad"] = jnp.zeros((HIDDEN, NUM_TAGS_PAD), jnp.float32).at[:, :NUM_TAGS].set(fc_w)
    p["fc_b_pad"] = jnp.full((1, NUM_TAGS_PAD), NEG_BIG, jnp.float32).at[0, :NUM_TAGS].set(0.0)

    scale = 1.0 / (HEAD_DIM ** 0.5)

    def split_in_heads(w):      # (HIDDEN, HIDDEN) -> (NUM_HEADS, HIDDEN, HEAD_DIM)
        return jnp.transpose(w.reshape(HIDDEN, NUM_HEADS, HEAD_DIM), (1, 0, 2))

    wq, wk, wv, wo = [], [], [], []
    bo, ln1g, ln1b, wi, bi, wf, bf, ln2g, ln2b = ([] for _ in range(9))
    for _ in range(NUM_LAYERS):
        wq.append(split_in_heads(nrm(next(keys), (HIDDEN, HIDDEN))) * scale)  # scale folded in
        wk.append(split_in_heads(nrm(next(keys), (HIDDEN, HIDDEN))))
        wv.append(split_in_heads(nrm(next(keys), (HIDDEN, HIDDEN))))
        # output projection split per head: rows h*HEAD_DIM:(h+1)*HEAD_DIM of W_o
        wo.append(nrm(next(keys), (HIDDEN, HIDDEN)).reshape(NUM_HEADS, HEAD_DIM, HIDDEN))
        bo.append(jnp.zeros((1, HIDDEN), jnp.float32))
        ln1g.append(jnp.ones((1, HIDDEN), jnp.float32))
        ln1b.append(jnp.zeros((1, HIDDEN), jnp.float32))
        wi.append(nrm(next(keys), (HIDDEN, INTERMEDIATE)))
        bi.append(jnp.zeros((1, INTERMEDIATE), jnp.float32))
        wf.append(nrm(next(keys), (INTERMEDIATE, HIDDEN)))
        bf.append(jnp.zeros((1, HIDDEN), jnp.float32))
        ln2g.append(jnp.ones((1, HIDDEN), jnp.float32))
        ln2b.append(jnp.zeros((1, HIDDEN), jnp.float32))

    LH = NUM_LAYERS * NUM_HEADS
    p.update({
        "wq": jnp.stack(wq).reshape(LH, HIDDEN, HEAD_DIM),
        "wk": jnp.stack(wk).reshape(LH, HIDDEN, HEAD_DIM),
        "wv": jnp.stack(wv).reshape(LH, HIDDEN, HEAD_DIM),
        # BERT q/k/v biases (zero-init here); q bias is stored pre-scaled like W_q
        "bq": jnp.zeros((LH, 1, HEAD_DIM), jnp.float32),
        "bk": jnp.zeros((LH, 1, HEAD_DIM), jnp.float32),
        "bv": jnp.zeros((LH, 1, HEAD_DIM), jnp.float32),
        "wo": jnp.stack(wo).reshape(LH, HEAD_DIM, HIDDEN),
        "bo": jnp.stack(bo),
        "ln1_g": jnp.stack(ln1g), "ln1_b": jnp.stack(ln1b),
        "wi": jnp.stack(wi), "bi": jnp.stack(bi),
        "wf": jnp.stack(wf), "bf": jnp.stack(bf),
        "ln2_g": jnp.stack(ln2g), "ln2_b": jnp.stack(ln2b),
    })
    return p


# --------------------------------- forward ----------------------------------
def bert_ner_forward(params, token_ids, attention_mask):
    B, S = token_ids.shape
    assert S <= MAX_POS

    # (B,S) -> (B*S,1) is layout-preserving for row-major int32 (bitcast-like, no copy).
    tok = token_ids.astype(jnp.int32).reshape(B * S, 1)
    mask = attention_mask.astype(jnp.int32)               # raw {-1,0,1} mask; fixed in-kernel

    inputs = (
        tok, mask,
        params["word_emb_pad"], params["pos_type"],
        params["emb_ln_g"], params["emb_ln_b"],
        params["wq"], params["wk"], params["wv"],
        params["bq"], params["bk"], params["bv"],
        params["wo"], params["bo"], params["ln1_g"], params["ln1_b"],
        params["wi"], params["bi"], params["wf"], params["bf"],
        params["ln2_g"], params["ln2_b"],
        params["fc_w_pad"], params["fc_b_pad"],
    )

    kern = functools.partial(_bert_ner_kernel, batch=B, seq=S)
    out_pad = pl.pallas_call(
        kern,
        out_shape=jax.ShapeDtypeStruct((B * S, NUM_TAGS_PAD), jnp.float32),
        grid=(1,),
        in_specs=[_full_spec(a.shape) for a in inputs],
        out_specs=_full_spec((B * S, NUM_TAGS_PAD)),
        scratch_shapes=[pltpu.VMEM((B * S, HIDDEN), jnp.float32)],
    )(*inputs)

    # dropout == identity in eval mode.
    # TODO(synk): consumers that accept the padded (B*S, 128) log-probs can skip this slice.
    return out_pad[:, :NUM_TAGS]                           # (B*S, NUM_TAGS)


# ----------------------------------- main ------------------------------------
if __name__ == "__main__":
    B, S = 2, 8
    key = jax.random.PRNGKey(0)
    k_tok, _ = jax.random.split(key)
    token_ids = jax.random.randint(k_tok, (B, S), 0, VOCAB, dtype=jnp.int32)
    # bert_mask with the module's {-1, 0, 1} convention
    bert_mask = jnp.array(
        [[1, 1, 1, 1, -1, -1, 1, 1],
         [1, 1, 1, 1, 1, 0, 0, 0]], dtype=jnp.int32)

    params = init_params(seed=0)
    fwd = jax.jit(bert_ner_forward)
    out = fwd(params, token_ids, bert_mask)
    out = jax.block_until_ready(out)

    assert out.shape == (B * S, NUM_TAGS)
    assert bool(jnp.all(jnp.isfinite(out)))
    # rows of log_softmax must sum to ~1 in prob space
    assert bool(jnp.allclose(jnp.sum(jnp.exp(out), axis=1), 1.0, atol=1e-4))
    print("KERNEL_OK")
</pallas_src>

<mosaic_0001>
module attributes {stable_mosaic.version = 11 : i64} {
  func.func @_bert_ner_kernel(%arg0: i32, %arg1: memref<16x1xi32, #tpu.memory_space<vmem>>, %arg2: memref<2x8xi32, #tpu.memory_space<vmem>>, %arg3: memref<128x32xf32, #tpu.memory_space<vmem>>, %arg4: memref<16x32xf32, #tpu.memory_space<vmem>>, %arg5: memref<1x32xf32, #tpu.memory_space<vmem>>, %arg6: memref<1x32xf32, #tpu.memory_space<vmem>>, %arg7: memref<8x32x8xf32, #tpu.memory_space<vmem>>, %arg8: memref<8x32x8xf32, #tpu.memory_space<vmem>>, %arg9: memref<8x32x8xf32, #tpu.memory_space<vmem>>, %arg10: memref<8x1x8xf32, #tpu.memory_space<vmem>>, %arg11: memref<8x1x8xf32, #tpu.memory_space<vmem>>, %arg12: memref<8x1x8xf32, #tpu.memory_space<vmem>>, %arg13: memref<8x8x32xf32, #tpu.memory_space<vmem>>, %arg14: memref<2x1x32xf32, #tpu.memory_space<vmem>>, %arg15: memref<2x1x32xf32, #tpu.memory_space<vmem>>, %arg16: memref<2x1x32xf32, #tpu.memory_space<vmem>>, %arg17: memref<2x32x64xf32, #tpu.memory_space<vmem>>, %arg18: memref<2x1x64xf32, #tpu.memory_space<vmem>>, %arg19: memref<2x64x32xf32, #tpu.memory_space<vmem>>, %arg20: memref<2x1x32xf32, #tpu.memory_space<vmem>>, %arg21: memref<2x1x32xf32, #tpu.memory_space<vmem>>, %arg22: memref<2x1x32xf32, #tpu.memory_space<vmem>>, %arg23: memref<32x128xf32, #tpu.memory_space<vmem>>, %arg24: memref<1x128xf32, #tpu.memory_space<vmem>>, %arg25: memref<16x128xf32, #tpu.memory_space<vmem>>, %arg26: memref<16x32xf32, #tpu.memory_space<vmem>>) attributes {dimension_semantics = [#tpu.dimension_semantics<arbitrary>], iteration_bounds = array<i64: 1>, scalar_prefetch = 0 : i64, scratch_operands = 1 : i64, tpu.core_type = #tpu.core_type<tc>, window_params = [{pipeline_mode = #tpu.pipeline_mode<synchronous>, transform_indices = @transform_0, window_bounds = array<i64: 16, 1>}, {pipeline_mode = #tpu.pipeline_mode<synchronous>, transform_indices = @transform_1, window_bounds = array<i64: 2, 8>}, {pipeline_mode = #tpu.pipeline_mode<synchronous>, transform_indices = @transform_2, window_bounds = array<i64: 128, 32>}, {pipeline_mode = #tpu.pipeline_mode<synchronous>, transform_indices = @transform_3, window_bounds = array<i64: 16, 32>}, {pipeline_mode = #tpu.pipeline_mode<synchronous>, transform_indices = @transform_4, window_bounds = array<i64: 1, 32>}, {pipeline_mode = #tpu.pipeline_mode<synchronous>, transform_indices = @transform_5, window_bounds = array<i64: 1, 32>}, {pipeline_mode = #tpu.pipeline_mode<synchronous>, transform_indices = @transform_6, window_bounds = array<i64: 8, 32, 8>}, {pipeline_mode = #tpu.pipeline_mode<synchronous>, transform_indices = @transform_7, window_bounds = array<i64: 8, 32, 8>}, {pipeline_mode = #tpu.pipeline_mode<synchronous>, transform_indices = @transform_8, window_bounds = array<i64: 8, 32, 8>}, {pipeline_mode = #tpu.pipeline_mode<synchronous>, transform_indices = @transform_9, window_bounds = array<i64: 8, 1, 8>}, {pipeline_mode = #tpu.pipeline_mode<synchronous>, transform_indices = @transform_10, window_bounds = array<i64: 8, 1, 8>}, {pipeline_mode = #tpu.pipeline_mode<synchronous>, transform_indices = @transform_11, window_bounds = array<i64: 8, 1, 8>}, {pipeline_mode = #tpu.pipeline_mode<synchronous>, transform_indices = @transform_12, window_bounds = array<i64: 8, 8, 32>}, {pipeline_mode = #tpu.pipeline_mode<synchronous>, transform_indices = @transform_13, window_bounds = array<i64: 2, 1, 32>}, {pipeline_mode = #tpu.pipeline_mode<synchronous>, transform_indices = @transform_14, window_bounds = array<i64: 2, 1, 32>}, {pipeline_mode = #tpu.pipeline_mode<synchronous>, transform_indices = @transform_15, window_bounds = array<i64: 2, 1, 32>}, {pipeline_mode = #tpu.pipeline_mode<synchronous>, transform_indices = @transform_16, window_bounds = array<i64: 2, 32, 64>}, {pipeline_mode = #tpu.pipeline_mode<synchronous>, transform_indices = @transform_17, window_bounds = array<i64: 2, 1, 64>}, {pipeline_mode = #tpu.pipeline_mode<synchronous>, transform_indices = @transform_18, window_bounds = array<i64: 2, 64, 32>}, {pipeline_mode = #tpu.pipeline_mode<synchronous>, transform_indices = @transform_19, window_bounds = array<i64: 2, 1, 32>}, {pipeline_mode = #tpu.pipeline_mode<synchronous>, transform_indices = @transform_20, window_bounds = array<i64: 2, 1, 32>}, {pipeline_mode = #tpu.pipeline_mode<synchronous>, transform_indices = @transform_21, window_bounds = array<i64: 2, 1, 32>}, {pipeline_mode = #tpu.pipeline_mode<synchronous>, transform_indices = @transform_22, window_bounds = array<i64: 32, 128>}, {pipeline_mode = #tpu.pipeline_mode<synchronous>, transform_indices = @transform_23, window_bounds = array<i64: 1, 128>}, {pipeline_mode = #tpu.pipeline_mode<synchronous>, transform_indices = @transform_24, window_bounds = array<i64: 16, 128>}]} {
    %c0 = arith.constant 0 : index
    %c0_0 = arith.constant 0 : index
    %0 = vector.load %arg1[%c0, %c0_0] : memref<16x1xi32, #tpu.memory_space<vmem>>, vector<16x1xi32>
    %1 = tpu.iota {dimensions = array<i32: 1>} : vector<16x128xi32>
    %2 = vector.broadcast %0 : vector<16x1xi32> to vector<16x128xi32>
    %3 = arith.cmpi eq, %1, %2 : vector<16x128xi32>
    %4 = arith.extui %3 : vector<16x128xi1> to vector<16x128xi32>
    %5 = arith.sitofp %4 : vector<16x128xi32> to vector<16x128xf32>
    %c0_1 = arith.constant 0 : index
    %c0_2 = arith.constant 0 : index
    %6 = vector.load %arg3[%c0_1, %c0_2] : memref<128x32xf32, #tpu.memory_space<vmem>>, vector<128x32xf32>
    %cst = arith.constant dense<0.000000e+00> : vector<16x32xf32>
    %7 = tpu.matmul %5, %6, %cst {dimension_numbers = #tpu.dot_dimension_numbers<[1], [0], [0], [1], [0, 0, 1, 1], [], []>} : vector<16x128xf32>, vector<128x32xf32>, vector<16x32xf32> -> vector<16x32xf32>
    %c0_3 = arith.constant 0 : index
    %c0_4 = arith.constant 0 : index
    %8 = vector.load %arg4[%c0_3, %c0_4] : memref<16x32xf32, #tpu.memory_space<vmem>>, vector<8x32xf32>
    %9 = vector.extract_strided_slice %7 {offsets = [0, 0], sizes = [8, 32], strides = [1, 1]} : vector<16x32xf32> to vector<8x32xf32>
    %10 = arith.addf %9, %8 : vector<8x32xf32>
    %c0_5 = arith.constant 0 : index
    %c0_6 = arith.constant 0 : index
    %11 = vector.load %arg26[%c0_5, %c0_6] : memref<16x32xf32, #tpu.memory_space<vmem>>, vector<8x32xf32>
    tpu.vector_store %arg26[%c0_5, %c0_6], %10 {strides = array<i32>} : memref<16x32xf32, #tpu.memory_space<vmem>>, vector<8x32xf32>,
    %12 = vector.extract_strided_slice %7 {offsets = [8, 0], sizes = [8, 32], strides = [1, 1]} : vector<16x32xf32> to vector<8x32xf32>
    %13 = arith.addf %12, %8 : vector<8x32xf32>
    %c8 = arith.constant 8 : index
    %c0_7 = arith.constant 0 : index
    %14 = vector.load %arg26[%c8, %c0_7] : memref<16x32xf32, #tpu.memory_space<vmem>>, vector<8x32xf32>
    tpu.vector_store %arg26[%c8, %c0_7], %13 {strides = array<i32>} : memref<16x32xf32, #tpu.memory_space<vmem>>, vector<8x32xf32>,
    %c0_8 = arith.constant 0 : index
    %c0_9 = arith.constant 0 : index
    %15 = vector.load %arg26[%c0_8, %c0_9] : memref<16x32xf32, #tpu.memory_space<vmem>>, vector<16x32xf32>
    %c0_10 = arith.constant 0 : index
    %c0_11 = arith.constant 0 : index
    %16 = vector.load %arg5[%c0_10, %c0_11] : memref<1x32xf32, #tpu.memory_space<vmem>>, vector<1x32xf32>
    %c0_12 = arith.constant 0 : index
    %c0_13 = arith.constant 0 : index
    %17 = vector.load %arg6[%c0_12, %c0_13] : memref<1x32xf32, #tpu.memory_space<vmem>>, vector<1x32xf32>
    %cst_14 = arith.constant dense<0.000000e+00> : vector<16xf32>
    %18 = vector.multi_reduction <add>, %15, %cst_14 [1] : vector<16x32xf32> to vector<16xf32>
    %19 = vector.shape_cast %18 : vector<16xf32> to vector<16x1xf32>
    %cst_15 = arith.constant 3.200000e+01 : f32
    %20 = vector.broadcast %cst_15 : f32 to vector<16x1xf32>
    %21 = arith.divf %19, %20 : vector<16x1xf32>
    %22 = vector.broadcast %21 : vector<16x1xf32> to vector<16x32xf32>
    %23 = arith.subf %15, %22 : vector<16x32xf32>
    %24 = arith.mulf %23, %23 : vector<16x32xf32>
    %cst_16 = arith.constant dense<0.000000e+00> : vector<16xf32>
    %25 = vector.multi_reduction <add>, %24, %cst_16 [1] : vector<16x32xf32> to vector<16xf32>
    %26 = vector.shape_cast %25 : vector<16xf32> to vector<16x1xf32>
    %cst_17 = arith.constant 3.200000e+01 : f32
    %27 = vector.broadcast %cst_17 : f32 to vector<16x1xf32>
    %28 = arith.divf %26, %27 : vector<16x1xf32>
    %29 = vector.broadcast %21 : vector<16x1xf32> to vector<16x32xf32>
    %30 = arith.subf %15, %29 : vector<16x32xf32>
    %cst_18 = arith.constant 9.99999996E-13 : f32
    %31 = vector.broadcast %cst_18 : f32 to vector<16x1xf32>
    %32 = arith.addf %28, %31 : vector<16x1xf32>
    %33 = math.rsqrt %32 : vector<16x1xf32>
    %34 = vector.broadcast %33 : vector<16x1xf32> to vector<16x32xf32>
    %35 = arith.mulf %30, %34 : vector<16x32xf32>
    %36 = vector.broadcast %16 : vector<1x32xf32> to vector<16x32xf32>
    %37 = arith.mulf %35, %36 : vector<16x32xf32>
    %38 = vector.broadcast %17 : vector<1x32xf32> to vector<16x32xf32>
    %39 = arith.addf %37, %38 : vector<16x32xf32>
    %c0_19 = arith.constant 0 : index
    %c0_20 = arith.constant 0 : index
    %40 = vector.load %arg2[%c0_19, %c0_20] : memref<2x8xi32, #tpu.memory_space<vmem>>, vector<2x8xi32>
    %c-1_i32 = arith.constant -1 : i32
    %41 = vector.broadcast %c-1_i32 : i32 to vector<2x8xi32>
    %42 = arith.cmpi eq, %40, %41 : vector<2x8xi32>
    %c1_i32 = arith.constant 1 : i32
    %43 = vector.broadcast %c1_i32 : i32 to vector<2x8xi32>
    %44 = arith.select %42, %43, %40 : vector<2x8xi1>, vector<2x8xi32>
    %45 = arith.sitofp %44 : vector<2x8xi32> to vector<2x8xf32>
    %cst_21 = arith.constant 1.000000e+00 : f32
    %46 = vector.broadcast %cst_21 : f32 to vector<2x8xf32>
    %47 = arith.subf %46, %45 : vector<2x8xf32>
    %cst_22 = arith.constant -1.000000e+04 : f32
    %48 = vector.broadcast %cst_22 : f32 to vector<2x8xf32>
    %49 = arith.mulf %47, %48 : vector<2x8xf32>
    %50 = vector.extract_strided_slice %39 {offsets = [0, 0], sizes = [8, 32], strides = [1, 1]} : vector<16x32xf32> to vector<8x32xf32>
    %51 = vector.extract_strided_slice %49 {offsets = [0, 0], sizes = [1, 8], strides = [1, 1]} : vector<2x8xf32> to vector<1x8xf32>
    %52 = vector.shape_cast %51 : vector<1x8xf32> to vector<1x8xf32>
    %53 = vector.broadcast %52 : vector<1x8xf32> to vector<8x8xf32>
    %cst_23 = arith.constant 0.000000e+00 : f32
    %54 = vector.broadcast %cst_23 : f32 to vector<8x32xf32>
    %c0_24 = arith.constant 0 : index
    %c0_25 = arith.constant 0 : index
    %c0_26 = arith.constant 0 : index
    %55 = vector.load %arg7[%c0_24, %c0_25, %c0_26] : memref<8x32x8xf32, #tpu.memory_space<vmem>>, vector<1x32x8xf32>
    %56 = vector.shape_cast %55 : vector<1x32x8xf32> to vector<32x8xf32>
    %cst_27 = arith.constant dense<0.000000e+00> : vector<8x8xf32>
    %57 = tpu.matmul %50, %56, %cst_27 {dimension_numbers = #tpu.dot_dimension_numbers<[1], [0], [0], [1], [0, 0, 1, 1], [], []>} : vector<8x32xf32>, vector<32x8xf32>, vector<8x8xf32> -> vector<8x8xf32>
    %c0_28 = arith.constant 0 : index
    %c0_29 = arith.constant 0 : index
    %c0_30 = arith.constant 0 : index
    %58 = vector.load %arg10[%c0_28, %c0_29, %c0_30] : memref<8x1x8xf32, #tpu.memory_space<vmem>>, vector<1x1x8xf32>
    %59 = vector.shape_cast %58 : vector<1x1x8xf32> to vector<1x8xf32>
    %60 = vector.broadcast %59 : vector<1x8xf32> to vector<8x8xf32>
    %61 = arith.addf %57, %60 : vector<8x8xf32>
    %c0_31 = arith.constant 0 : index
    %c0_32 = arith.constant 0 : index
    %c0_33 = arith.constant 0 : index
    %62 = vector.load %arg8[%c0_31, %c0_32, %c0_33] : memref<8x32x8xf32, #tpu.memory_space<vmem>>, vector<1x32x8xf32>
    %63 = vector.shape_cast %62 : vector<1x32x8xf32> to vector<32x8xf32>
    %cst_34 = arith.constant dense<0.000000e+00> : vector<8x8xf32>
    %64 = tpu.matmul %50, %63, %cst_34 {dimension_numbers = #tpu.dot_dimension_numbers<[1], [0], [0], [1], [0, 0, 1, 1], [], []>} : vector<8x32xf32>, vector<32x8xf32>, vector<8x8xf32> -> vector<8x8xf32>
    %c0_35 = arith.constant 0 : index
    %c0_36 = arith.constant 0 : index
    %c0_37 = arith.constant 0 : index
    %65 = vector.load %arg11[%c0_35, %c0_36, %c0_37] : memref<8x1x8xf32, #tpu.memory_space<vmem>>, vector<1x1x8xf32>
    %66 = vector.shape_cast %65 : vector<1x1x8xf32> to vector<1x8xf32>
    %67 = vector.broadcast %66 : vector<1x8xf32> to vector<8x8xf32>
    %68 = arith.addf %64, %67 : vector<8x8xf32>
    %c0_38 = arith.constant 0 : index
    %c0_39 = arith.constant 0 : index
    %c0_40 = arith.constant 0 : index
    %69 = vector.load %arg9[%c0_38, %c0_39, %c0_40] : memref<8x32x8xf32, #tpu.memory_space<vmem>>, vector<1x32x8xf32>
    %70 = vector.shape_cast %69 : vector<1x32x8xf32> to vector<32x8xf32>
    %cst_41 = arith.constant dense<0.000000e+00> : vector<8x8xf32>
    %71 = tpu.matmul %50, %70, %cst_41 {dimension_numbers = #tpu.dot_dimension_numbers<[1], [0], [0], [1], [0, 0, 1, 1], [], []>} : vector<8x32xf32>, vector<32x8xf32>, vector<8x8xf32> -> vector<8x8xf32>
    %c0_42 = arith.constant 0 : index
    %c0_43 = arith.constant 0 : index
    %c0_44 = arith.constant 0 : index
    %72 = vector.load %arg12[%c0_42, %c0_43, %c0_44] : memref<8x1x8xf32, #tpu.memory_space<vmem>>, vector<1x1x8xf32>
    %73 = vector.shape_cast %72 : vector<1x1x8xf32> to vector<1x8xf32>
    %74 = vector.broadcast %73 : vector<1x8xf32> to vector<8x8xf32>
    %75 = arith.addf %71, %74 : vector<8x8xf32>
    %cst_45 = arith.constant dense<0.000000e+00> : vector<8x8xf32>
    %76 = tpu.matmul %61, %68, %cst_45 {dimension_numbers = #tpu.dot_dimension_numbers<[1], [1], [0], [0], [0, 0, 1, 0], [], []>} : vector<8x8xf32>, vector<8x8xf32>, vector<8x8xf32> -> vector<8x8xf32>
    %77 = arith.addf %76, %53 : vector<8x8xf32>
    %cst_46 = arith.constant dense<0xFF800000> : vector<8xf32>
    %78 = vector.multi_reduction <maximumf>, %77, %cst_46 [1] : vector<8x8xf32> to vector<8xf32>
    %79 = vector.shape_cast %78 : vector<8xf32> to vector<8x1xf32>
    %80 = vector.broadcast %79 : vector<8x1xf32> to vector<8x8xf32>
    %81 = arith.subf %77, %80 : vector<8x8xf32>
    %82 = math.exp %81 : vector<8x8xf32>
    %cst_47 = arith.constant dense<0.000000e+00> : vector<8xf32>
    %83 = vector.multi_reduction <add>, %82, %cst_47 [1] : vector<8x8xf32> to vector<8xf32>
    %84 = vector.shape_cast %83 : vector<8xf32> to vector<8x1xf32>
    %85 = tpu.reciprocal %84 {approx = true} : vector<8x1xf32> -> vector<8x1xf32>
    %86 = vector.broadcast %85 : vector<8x1xf32> to vector<8x8xf32>
    %87 = arith.mulf %82, %86 : vector<8x8xf32>
    %cst_48 = arith.constant dense<0.000000e+00> : vector<8x8xf32>
    %88 = tpu.matmul %87, %75, %cst_48 {dimension_numbers = #tpu.dot_dimension_numbers<[1], [0], [0], [1], [0, 0, 1, 1], [], []>} : vector<8x8xf32>, vector<8x8xf32>, vector<8x8xf32> -> vector<8x8xf32>
    %c0_49 = arith.constant 0 : index
    %c0_50 = arith.constant 0 : index
    %c0_51 = arith.constant 0 : index
    %89 = vector.load %arg13[%c0_49, %c0_50, %c0_51] : memref<8x8x32xf32, #tpu.memory_space<vmem>>, vector<1x8x32xf32>
    %90 = vector.shape_cast %89 : vector<1x8x32xf32> to vector<8x32xf32>
    %cst_52 = arith.constant dense<0.000000e+00> : vector<8x32xf32>
    %91 = tpu.matmul %88, %90, %cst_52 {dimension_numbers = #tpu.dot_dimension_numbers<[1], [0], [0], [1], [0, 0, 1, 1], [], []>} : vector<8x8xf32>, vector<8x32xf32>, vector<8x32xf32> -> vector<8x32xf32>
    %92 = arith.addf %54, %91 : vector<8x32xf32>
    %c1 = arith.constant 1 : index
    %c0_53 = arith.constant 0 : index
    %c0_54 = arith.constant 0 : index
    %93 = vector.load %arg7[%c1, %c0_53, %c0_54] : memref<8x32x8xf32, #tpu.memory_space<vmem>>, vector<1x32x8xf32>
    %94 = vector.shape_cast %93 : vector<1x32x8xf32> to vector<32x8xf32>
    %cst_55 = arith.constant dense<0.000000e+00> : vector<8x8xf32>
    %95 = tpu.matmul %50, %94, %cst_55 {dimension_numbers = #tpu.dot_dimension_numbers<[1], [0], [0], [1], [0, 0, 1, 1], [], []>} : vector<8x32xf32>, vector<32x8xf32>, vector<8x8xf32> -> vector<8x8xf32>
    %c1_56 = arith.constant 1 : index
    %c0_57 = arith.constant 0 : index
    %c0_58 = arith.constant 0 : index
    %96 = vector.load %arg10[%c1_56, %c0_57, %c0_58] : memref<8x1x8xf32, #tpu.memory_space<vmem>>, vector<1x1x8xf32>
    %97 = vector.shape_cast %96 : vector<1x1x8xf32> to vector<1x8xf32>
    %98 = vector.broadcast %97 : vector<1x8xf32> to vector<8x8xf32>
    %99 = arith.addf %95, %98 : vector<8x8xf32>
    %c1_59 = arith.constant 1 : index
    %c0_60 = arith.constant 0 : index
    %c0_61 = arith.constant 0 : index
    %100 = vector.load %arg8[%c1_59, %c0_60, %c0_61] : memref<8x32x8xf32, #tpu.memory_space<vmem>>, vector<1x32x8xf32>
    %101 = vector.shape_cast %100 : vector<1x32x8xf32> to vector<32x8xf32>
    %cst_62 = arith.constant dense<0.000000e+00> : vector<8x8xf32>
    %102 = tpu.matmul %50, %101, %cst_62 {dimension_numbers = #tpu.dot_dimension_numbers<[1], [0], [0], [1], [0, 0, 1, 1], [], []>} : vector<8x32xf32>, vector<32x8xf32>, vector<8x8xf32> -> vector<8x8xf32>
    %c1_63 = arith.constant 1 : index
    %c0_64 = arith.constant 0 : index
    %c0_65 = arith.constant 0 : index
    %103 = vector.load %arg11[%c1_63, %c0_64, %c0_65] : memref<8x1x8xf32, #tpu.memory_space<vmem>>, vector<1x1x8xf32>
    %104 = vector.shape_cast %103 : vector<1x1x8xf32> to vector<1x8xf32>
    %105 = vector.broadcast %104 : vector<1x8xf32> to vector<8x8xf32>
    %106 = arith.addf %102, %105 : vector<8x8xf32>
    %c1_66 = arith.constant 1 : index
    %c0_67 = arith.constant 0 : index
    %c0_68 = arith.constant 0 : index
    %107 = vector.load %arg9[%c1_66, %c0_67, %c0_68] : memref<8x32x8xf32, #tpu.memory_space<vmem>>, vector<1x32x8xf32>
    %108 = vector.shape_cast %107 : vector<1x32x8xf32> to vector<32x8xf32>
    %cst_69 = arith.constant dense<0.000000e+00> : vector<8x8xf32>
    %109 = tpu.matmul %50, %108, %cst_69 {dimension_numbers = #tpu.dot_dimension_numbers<[1], [0], [0], [1], [0, 0, 1, 1], [], []>} : vector<8x32xf32>, vector<32x8xf32>, vector<8x8xf32> -> vector<8x8xf32>
    %c1_70 = arith.constant 1 : index
    %c0_71 = arith.constant 0 : index
    %c0_72 = arith.constant 0 : index
    %110 = vector.load %arg12[%c1_70, %c0_71, %c0_72] : memref<8x1x8xf32, #tpu.memory_space<vmem>>, vector<1x1x8xf32>
    %111 = vector.shape_cast %110 : vector<1x1x8xf32> to vector<1x8xf32>
    %112 = vector.broadcast %111 : vector<1x8xf32> to vector<8x8xf32>
    %113 = arith.addf %109, %112 : vector<8x8xf32>
    %cst_73 = arith.constant dense<0.000000e+00> : vector<8x8xf32>
    %114 = tpu.matmul %99, %106, %cst_73 {dimension_numbers = #tpu.dot_dimension_numbers<[1], [1], [0], [0], [0, 0, 1, 0], [], []>} : vector<8x8xf32>, vector<8x8xf32>, vector<8x8xf32> -> vector<8x8xf32>
    %115 = arith.addf %114, %53 : vector<8x8xf32>
    %cst_74 = arith.constant dense<0xFF800000> : vector<8xf32>
    %116 = vector.multi_reduction <maximumf>, %115, %cst_74 [1] : vector<8x8xf32> to vector<8xf32>
    %117 = vector.shape_cast %116 : vector<8xf32> to vector<8x1xf32>
    %118 = vector.broadcast %117 : vector<8x1xf32> to vector<8x8xf32>
    %119 = arith.subf %115, %118 : vector<8x8xf32>
    %120 = math.exp %119 : vector<8x8xf32>
    %cst_75 = arith.constant dense<0.000000e+00> : vector<8xf32>
    %121 = vector.multi_reduction <add>, %120, %cst_75 [1] : vector<8x8xf32> to vector<8xf32>
    %122 = vector.shape_cast %121 : vector<8xf32> to vector<8x1xf32>
    %123 = tpu.reciprocal %122 {approx = true} : vector<8x1xf32> -> vector<8x1xf32>
    %124 = vector.broadcast %123 : vector<8x1xf32> to vector<8x8xf32>
    %125 = arith.mulf %120, %124 : vector<8x8xf32>
    %cst_76 = arith.constant dense<0.000000e+00> : vector<8x8xf32>
    %126 = tpu.matmul %125, %113, %cst_76 {dimension_numbers = #tpu.dot_dimension_numbers<[1], [0], [0], [1], [0, 0, 1, 1], [], []>} : vector<8x8xf32>, vector<8x8xf32>, vector<8x8xf32> -> vector<8x8xf32>
    %c1_77 = arith.constant 1 : index
    %c0_78 = arith.constant 0 : index
    %c0_79 = arith.constant 0 : index
    %127 = vector.load %arg13[%c1_77, %c0_78, %c0_79] : memref<8x8x32xf32, #tpu.memory_space<vmem>>, vector<1x8x32xf32>
    %128 = vector.shape_cast %127 : vector<1x8x32xf32> to vector<8x32xf32>
    %cst_80 = arith.constant dense<0.000000e+00> : vector<8x32xf32>
    %129 = tpu.matmul %126, %128, %cst_80 {dimension_numbers = #tpu.dot_dimension_numbers<[1], [0], [0], [1], [0, 0, 1, 1], [], []>} : vector<8x8xf32>, vector<8x32xf32>, vector<8x32xf32> -> vector<8x32xf32>
    %130 = arith.addf %92, %129 : vector<8x32xf32>
    %c2 = arith.constant 2 : index
    %c0_81 = arith.constant 0 : index
    %c0_82 = arith.constant 0 : index
    %131 = vector.load %arg7[%c2, %c0_81, %c0_82] : memref<8x32x8xf32, #tpu.memory_space<vmem>>, vector<1x32x8xf32>
    %132 = vector.shape_cast %131 : vector<1x32x8xf32> to vector<32x8xf32>
    %cst_83 = arith.constant dense<0.000000e+00> : vector<8x8xf32>
    %133 = tpu.matmul %50, %132, %cst_83 {dimension_numbers = #tpu.dot_dimension_numbers<[1], [0], [0], [1], [0, 0, 1, 1], [], []>} : vector<8x32xf32>, vector<32x8xf32>, vector<8x8xf32> -> vector<8x8xf32>
    %c2_84 = arith.constant 2 : index
    %c0_85 = arith.constant 0 : index
    %c0_86 = arith.constant 0 : index
    %134 = vector.load %arg10[%c2_84, %c0_85, %c0_86] : memref<8x1x8xf32, #tpu.memory_space<vmem>>, vector<1x1x8xf32>
    %135 = vector.shape_cast %134 : vector<1x1x8xf32> to vector<1x8xf32>
    %136 = vector.broadcast %135 : vector<1x8xf32> to vector<8x8xf32>
    %137 = arith.addf %133, %136 : vector<8x8xf32>
    %c2_87 = arith.constant 2 : index
    %c0_88 = arith.constant 0 : index
    %c0_89 = arith.constant 0 : index
    %138 = vector.load %arg8[%c2_87, %c0_88, %c0_89] : memref<8x32x8xf32, #tpu.memory_space<vmem>>, vector<1x32x8xf32>
    %139 = vector.shape_cast %138 : vector<1x32x8xf32> to vector<32x8xf32>
    %cst_90 = arith.constant dense<0.000000e+00> : vector<8x8xf32>
    %140 = tpu.matmul %50, %139, %cst_90 {dimension_numbers = #tpu.dot_dimension_numbers<[1], [0], [0], [1], [0, 0, 1, 1], [], []>} : vector<8x32xf32>, vector<32x8xf32>, vector<8x8xf32> -> vector<8x8xf32>
    %c2_91 = arith.constant 2 : index
    %c0_92 = arith.constant 0 : index
    %c0_93 = arith.constant 0 : index
    %141 = vector.load %arg11[%c2_91, %c0_92, %c0_93] : memref<8x1x8xf32, #tpu.memory_space<vmem>>, vector<1x1x8xf32>
    %142 = vector.shape_cast %141 : vector<1x1x8xf32> to vector<1x8xf32>
    %143 = vector.broadcast %142 : vector<1x8xf32> to vector<8x8xf32>
    %144 = arith.addf %140, %143 : vector<8x8xf32>
    %c2_94 = arith.constant 2 : index
    %c0_95 = arith.constant 0 : index
    %c0_96 = arith.constant 0 : index
    %145 = vector.load %arg9[%c2_94, %c0_95, %c0_96] : memref<8x32x8xf32, #tpu.memory_space<vmem>>, vector<1x32x8xf32>
    %146 = vector.shape_cast %145 : vector<1x32x8xf32> to vector<32x8xf32>
    %cst_97 = arith.constant dense<0.000000e+00> : vector<8x8xf32>
    %147 = tpu.matmul %50, %146, %cst_97 {dimension_numbers = #tpu.dot_dimension_numbers<[1], [0], [0], [1], [0, 0, 1, 1], [], []>} : vector<8x32xf32>, vector<32x8xf32>, vector<8x8xf32> -> vector<8x8xf32>
    %c2_98 = arith.constant 2 : index
    %c0_99 = arith.constant 0 : index
    %c0_100 = arith.constant 0 : index
    %148 = vector.load %arg12[%c2_98, %c0_99, %c0_100] : memref<8x1x8xf32, #tpu.memory_space<vmem>>, vector<1x1x8xf32>
    %149 = vector.shape_cast %148 : vector<1x1x8xf32> to vector<1x8xf32>
    %150 = vector.broadcast %149 : vector<1x8xf32> to vector<8x8xf32>
    %151 = arith.addf %147, %150 : vector<8x8xf32>
    %cst_101 = arith.constant dense<0.000000e+00> : vector<8x8xf32>
    %152 = tpu.matmul %137, %144, %cst_101 {dimension_numbers = #tpu.dot_dimension_numbers<[1], [1], [0], [0], [0, 0, 1, 0], [], []>} : vector<8x8xf32>, vector<8x8xf32>, vector<8x8xf32> -> vector<8x8xf32>
    %153 = arith.addf %152, %53 : vector<8x8xf32>
    %cst_102 = arith.constant dense<0xFF800000> : vector<8xf32>
    %154 = vector.multi_reduction <maximumf>, %153, %cst_102 [1] : vector<8x8xf32> to vector<8xf32>
    %155 = vector.shape_cast %154 : vector<8xf32> to vector<8x1xf32>
    %156 = vector.broadcast %155 : vector<8x1xf32> to vector<8x8xf32>
    %157 = arith.subf %153, %156 : vector<8x8xf32>
    %158 = math.exp %157 : vector<8x8xf32>
    %cst_103 = arith.constant dense<0.000000e+00> : vector<8xf32>
    %159 = vector.multi_reduction <add>, %158, %cst_103 [1] : vector<8x8xf32> to vector<8xf32>
    %160 = vector.shape_cast %159 : vector<8xf32> to vector<8x1xf32>
    %161 = tpu.reciprocal %160 {approx = true} : vector<8x1xf32> -> vector<8x1xf32>
    %162 = vector.broadcast %161 : vector<8x1xf32> to vector<8x8xf32>
    %163 = arith.mulf %158, %162 : vector<8x8xf32>
    %cst_104 = arith.constant dense<0.000000e+00> : vector<8x8xf32>
    %164 = tpu.matmul %163, %151, %cst_104 {dimension_numbers = #tpu.dot_dimension_numbers<[1], [0], [0], [1], [0, 0, 1, 1], [], []>} : vector<8x8xf32>, vector<8x8xf32>, vector<8x8xf32> -> vector<8x8xf32>
    %c2_105 = arith.constant 2 : index
    %c0_106 = arith.constant 0 : index
    %c0_107 = arith.constant 0 : index
    %165 = vector.load %arg13[%c2_105, %c0_106, %c0_107] : memref<8x8x32xf32, #tpu.memory_space<vmem>>, vector<1x8x32xf32>
    %166 = vector.shape_cast %165 : vector<1x8x32xf32> to vector<8x32xf32>
    %cst_108 = arith.constant dense<0.000000e+00> : vector<8x32xf32>
    %167 = tpu.matmul %164, %166, %cst_108 {dimension_numbers = #tpu.dot_dimension_numbers<[1], [0], [0], [1], [0, 0, 1, 1], [], []>} : vector<8x8xf32>, vector<8x32xf32>, vector<8x32xf32> -> vector<8x32xf32>
    %168 = arith.addf %130, %167 : vector<8x32xf32>
    %c3 = arith.constant 3 : index
    %c0_109 = arith.constant 0 : index
    %c0_110 = arith.constant 0 : index
    %169 = vector.load %arg7[%c3, %c0_109, %c0_110] : memref<8x32x8xf32, #tpu.memory_space<vmem>>, vector<1x32x8xf32>
    %170 = vector.shape_cast %169 : vector<1x32x8xf32> to vector<32x8xf32>
    %cst_111 = arith.constant dense<0.000000e+00> : vector<8x8xf32>
    %171 = tpu.matmul %50, %170, %cst_111 {dimension_numbers = #tpu.dot_dimension_numbers<[1], [0], [0], [1], [0, 0, 1, 1], [], []>} : vector<8x32xf32>, vector<32x8xf32>, vector<8x8xf32> -> vector<8x8xf32>
    %c3_112 = arith.constant 3 : index
    %c0_113 = arith.constant 0 : index
    %c0_114 = arith.constant 0 : index
    %172 = vector.load %arg10[%c3_112, %c0_113, %c0_114] : memref<8x1x8xf32, #tpu.memory_space<vmem>>, vector<1x1x8xf32>
    %173 = vector.shape_cast %172 : vector<1x1x8xf32> to vector<1x8xf32>
    %174 = vector.broadcast %173 : vector<1x8xf32> to vector<8x8xf32>
    %175 = arith.addf %171, %174 : vector<8x8xf32>
    %c3_115 = arith.constant 3 : index
    %c0_116 = arith.constant 0 : index
    %c0_117 = arith.constant 0 : index
    %176 = vector.load %arg8[%c3_115, %c0_116, %c0_117] : memref<8x32x8xf32, #tpu.memory_space<vmem>>, vector<1x32x8xf32>
    %177 = vector.shape_cast %176 : vector<1x32x8xf32> to vector<32x8xf32>
    %cst_118 = arith.constant dense<0.000000e+00> : vector<8x8xf32>
    %178 = tpu.matmul %50, %177, %cst_118 {dimension_numbers = #tpu.dot_dimension_numbers<[1], [0], [0], [1], [0, 0, 1, 1], [], []>} : vector<8x32xf32>, vector<32x8xf32>, vector<8x8xf32> -> vector<8x8xf32>
    %c3_119 = arith.constant 3 : index
    %c0_120 = arith.constant 0 : index
    %c0_121 = arith.constant 0 : index
    %179 = vector.load %arg11[%c3_119, %c0_120, %c0_121] : memref<8x1x8xf32, #tpu.memory_space<vmem>>, vector<1x1x8xf32>
    %180 = vector.shape_cast %179 : vector<1x1x8xf32> to vector<1x8xf32>
    %181 = vector.broadcast %180 : vector<1x8xf32> to vector<8x8xf32>
    %182 = arith.addf %178, %181 : vector<8x8xf32>
    %c3_122 = arith.constant 3 : index
    %c0_123 = arith.constant 0 : index
    %c0_124 = arith.constant 0 : index
    %183 = vector.load %arg9[%c3_122, %c0_123, %c0_124] : memref<8x32x8xf32, #tpu.memory_space<vmem>>, vector<1x32x8xf32>
    %184 = vector.shape_cast %183 : vector<1x32x8xf32> to vector<32x8xf32>
    %cst_125 = arith.constant dense<0.000000e+00> : vector<8x8xf32>
    %185 = tpu.matmul %50, %184, %cst_125 {dimension_numbers = #tpu.dot_dimension_numbers<[1], [0], [0], [1], [0, 0, 1, 1], [], []>} : vector<8x32xf32>, vector<32x8xf32>, vector<8x8xf32> -> vector<8x8xf32>
    %c3_126 = arith.constant 3 : index
    %c0_127 = arith.constant 0 : index
    %c0_128 = arith.constant 0 : index
    %186 = vector.load %arg12[%c3_126, %c0_127, %c0_128] : memref<8x1x8xf32, #tpu.memory_space<vmem>>, vector<1x1x8xf32>
    %187 = vector.shape_cast %186 : vector<1x1x8xf32> to vector<1x8xf32>
    %188 = vector.broadcast %187 : vector<1x8xf32> to vector<8x8xf32>
    %189 = arith.addf %185, %188 : vector<8x8xf32>
    %cst_129 = arith.constant dense<0.000000e+00> : vector<8x8xf32>
    %190 = tpu.matmul %175, %182, %cst_129 {dimension_numbers = #tpu.dot_dimension_numbers<[1], [1], [0], [0], [0, 0, 1, 0], [], []>} : vector<8x8xf32>, vector<8x8xf32>, vector<8x8xf32> -> vector<8x8xf32>
    %191 = arith.addf %190, %53 : vector<8x8xf32>
    %cst_130 = arith.constant dense<0xFF800000> : vector<8xf32>
    %192 = vector.multi_reduction <maximumf>, %191, %cst_130 [1] : vector<8x8xf32> to vector<8xf32>
    %193 = vector.shape_cast %192 : vector<8xf32> to vector<8x1xf32>
    %194 = vector.broadcast %193 : vector<8x1xf32> to vector<8x8xf32>
    %195 = arith.subf %191, %194 : vector<8x8xf32>
    %196 = math.exp %195 : vector<8x8xf32>
    %cst_131 = arith.constant dense<0.000000e+00> : vector<8xf32>
    %197 = vector.multi_reduction <add>, %196, %cst_131 [1] : vector<8x8xf32> to vector<8xf32>
    %198 = vector.shape_cast %197 : vector<8xf32> to vector<8x1xf32>
    %199 = tpu.reciprocal %198 {approx = true} : vector<8x1xf32> -> vector<8x1xf32>
    %200 = vector.broadcast %199 : vector<8x1xf32> to vector<8x8xf32>
    %201 = arith.mulf %196, %200 : vector<8x8xf32>
    %cst_132 = arith.constant dense<0.000000e+00> : vector<8x8xf32>
    %202 = tpu.matmul %201, %189, %cst_132 {dimension_numbers = #tpu.dot_dimension_numbers<[1], [0], [0], [1], [0, 0, 1, 1], [], []>} : vector<8x8xf32>, vector<8x8xf32>, vector<8x8xf32> -> vector<8x8xf32>
    %c3_133 = arith.constant 3 : index
    %c0_134 = arith.constant 0 : index
    %c0_135 = arith.constant 0 : index
    %203 = vector.load %arg13[%c3_133, %c0_134, %c0_135] : memref<8x8x32xf32, #tpu.memory_space<vmem>>, vector<1x8x32xf32>
    %204 = vector.shape_cast %203 : vector<1x8x32xf32> to vector<8x32xf32>
    %cst_136 = arith.constant dense<0.000000e+00> : vector<8x32xf32>
    %205 = tpu.matmul %202, %204, %cst_136 {dimension_numbers = #tpu.dot_dimension_numbers<[1], [0], [0], [1], [0, 0, 1, 1], [], []>} : vector<8x8xf32>, vector<8x32xf32>, vector<8x32xf32> -> vector<8x32xf32>
    %206 = arith.addf %168, %205 : vector<8x32xf32>
    %c0_137 = arith.constant 0 : index
    %c0_138 = arith.constant 0 : index
    %207 = vector.load %arg26[%c0_137, %c0_138] : memref<16x32xf32, #tpu.memory_space<vmem>>, vector<8x32xf32>
    tpu.vector_store %arg26[%c0_137, %c0_138], %206 {strides = array<i32>} : memref<16x32xf32, #tpu.memory_space<vmem>>, vector<8x32xf32>,
    %208 = vector.extract_strided_slice %39 {offsets = [8, 0], sizes = [8, 32], strides = [1, 1]} : vector<16x32xf32> to vector<8x32xf32>
    %209 = vector.extract_strided_slice %49 {offsets = [1, 0], sizes = [1, 8], strides = [1, 1]} : vector<2x8xf32> to vector<1x8xf32>
    %210 = vector.shape_cast %209 : vector<1x8xf32> to vector<1x8xf32>
    %211 = vector.broadcast %210 : vector<1x8xf32> to vector<8x8xf32>
    %cst_139 = arith.constant 0.000000e+00 : f32
    %212 = vector.broadcast %cst_139 : f32 to vector<8x32xf32>
    %c0_140 = arith.constant 0 : index
    %c0_141 = arith.constant 0 : index
    %c0_142 = arith.constant 0 : index
    %213 = vector.load %arg7[%c0_140, %c0_141, %c0_142] : memref<8x32x8xf32, #tpu.memory_space<vmem>>, vector<1x32x8xf32>
    %214 = vector.shape_cast %213 : vector<1x32x8xf32> to vector<32x8xf32>
    %cst_143 = arith.constant dense<0.000000e+00> : vector<8x8xf32>
    %215 = tpu.matmul %208, %214, %cst_143 {dimension_numbers = #tpu.dot_dimension_numbers<[1], [0], [0], [1], [0, 0, 1, 1], [], []>} : vector<8x32xf32>, vector<32x8xf32>, vector<8x8xf32> -> vector<8x8xf32>
    %c0_144 = arith.constant 0 : index
    %c0_145 = arith.constant 0 : index
    %c0_146 = arith.constant 0 : index
    %216 = vector.load %arg10[%c0_144, %c0_145, %c0_146] : memref<8x1x8xf32, #tpu.memory_space<vmem>>, vector<1x1x8xf32>
    %217 = vector.shape_cast %216 : vector<1x1x8xf32> to vector<1x8xf32>
    %218 = vector.broadcast %217 : vector<1x8xf32> to vector<8x8xf32>
    %219 = arith.addf %215, %218 : vector<8x8xf32>
    %c0_147 = arith.constant 0 : index
    %c0_148 = arith.constant 0 : index
    %c0_149 = arith.constant 0 : index
    %220 = vector.load %arg8[%c0_147, %c0_148, %c0_149] : memref<8x32x8xf32, #tpu.memory_space<vmem>>, vector<1x32x8xf32>
    %221 = vector.shape_cast %220 : vector<1x32x8xf32> to vector<32x8xf32>
    %cst_150 = arith.constant dense<0.000000e+00> : vector<8x8xf32>
    %222 = tpu.matmul %208, %221, %cst_150 {dimension_numbers = #tpu.dot_dimension_numbers<[1], [0], [0], [1], [0, 0, 1, 1], [], []>} : vector<8x32xf32>, vector<32x8xf32>, vector<8x8xf32> -> vector<8x8xf32>
    %c0_151 = arith.constant 0 : index
    %c0_152 = arith.constant 0 : index
    %c0_153 = arith.constant 0 : index
    %223 = vector.load %arg11[%c0_151, %c0_152, %c0_153] : memref<8x1x8xf32, #tpu.memory_space<vmem>>, vector<1x1x8xf32>
    %224 = vector.shape_cast %223 : vector<1x1x8xf32> to vector<1x8xf32>
    %225 = vector.broadcast %224 : vector<1x8xf32> to vector<8x8xf32>
    %226 = arith.addf %222, %225 : vector<8x8xf32>
    %c0_154 = arith.constant 0 : index
    %c0_155 = arith.constant 0 : index
    %c0_156 = arith.constant 0 : index
    %227 = vector.load %arg9[%c0_154, %c0_155, %c0_156] : memref<8x32x8xf32, #tpu.memory_space<vmem>>, vector<1x32x8xf32>
    %228 = vector.shape_cast %227 : vector<1x32x8xf32> to vector<32x8xf32>
    %cst_157 = arith.constant dense<0.000000e+00> : vector<8x8xf32>
    %229 = tpu.matmul %208, %228, %cst_157 {dimension_numbers = #tpu.dot_dimension_numbers<[1], [0], [0], [1], [0, 0, 1, 1], [], []>} : vector<8x32xf32>, vector<32x8xf32>, vector<8x8xf32> -> vector<8x8xf32>
    %c0_158 = arith.constant 0 : index
    %c0_159 = arith.constant 0 : index
    %c0_160 = arith.constant 0 : index
    %230 = vector.load %arg12[%c0_158, %c0_159, %c0_160] : memref<8x1x8xf32, #tpu.memory_space<vmem>>, vector<1x1x8xf32>
    %231 = vector.shape_cast %230 : vector<1x1x8xf32> to vector<1x8xf32>
    %232 = vector.broadcast %231 : vector<1x8xf32> to vector<8x8xf32>
    %233 = arith.addf %229, %232 : vector<8x8xf32>
    %cst_161 = arith.constant dense<0.000000e+00> : vector<8x8xf32>
    %234 = tpu.matmul %219, %226, %cst_161 {dimension_numbers = #tpu.dot_dimension_numbers<[1], [1], [0], [0], [0, 0, 1, 0], [], []>} : vector<8x8xf32>, vector<8x8xf32>, vector<8x8xf32> -> vector<8x8xf32>
    %235 = arith.addf %234, %211 : vector<8x8xf32>
    %cst_162 = arith.constant dense<0xFF800000> : vector<8xf32>
    %236 = vector.multi_reduction <maximumf>, %235, %cst_162 [1] : vector<8x8xf32> to vector<8xf32>
    %237 = vector.shape_cast %236 : vector<8xf32> to vector<8x1xf32>
    %238 = vector.broadcast %237 : vector<8x1xf32> to vector<8x8xf32>
    %239 = arith.subf %235, %238 : vector<8x8xf32>
    %240 = math.exp %239 : vector<8x8xf32>
    %cst_163 = arith.constant dense<0.000000e+00> : vector<8xf32>
    %241 = vector.multi_reduction <add>, %240, %cst_163 [1] : vector<8x8xf32> to vector<8xf32>
    %242 = vector.shape_cast %241 : vector<8xf32> to vector<8x1xf32>
    %243 = tpu.reciprocal %242 {approx = true} : vector<8x1xf32> -> vector<8x1xf32>
    %244 = vector.broadcast %243 : vector<8x1xf32> to vector<8x8xf32>
    %245 = arith.mulf %240, %244 : vector<8x8xf32>
    %cst_164 = arith.constant dense<0.000000e+00> : vector<8x8xf32>
    %246 = tpu.matmul %245, %233, %cst_164 {dimension_numbers = #tpu.dot_dimension_numbers<[1], [0], [0], [1], [0, 0, 1, 1], [], []>} : vector<8x8xf32>, vector<8x8xf32>, vector<8x8xf32> -> vector<8x8xf32>
    %c0_165 = arith.constant 0 : index
    %c0_166 = arith.constant 0 : index
    %c0_167 = arith.constant 0 : index
    %247 = vector.load %arg13[%c0_165, %c0_166, %c0_167] : memref<8x8x32xf32, #tpu.memory_space<vmem>>, vector<1x8x32xf32>
    %248 = vector.shape_cast %247 : vector<1x8x32xf32> to vector<8x32xf32>
    %cst_168 = arith.constant dense<0.000000e+00> : vector<8x32xf32>
    %249 = tpu.matmul %246, %248, %cst_168 {dimension_numbers = #tpu.dot_dimension_numbers<[1], [0], [0], [1], [0, 0, 1, 1], [], []>} : vector<8x8xf32>, vector<8x32xf32>, vector<8x32xf32> -> vector<8x32xf32>
    %250 = arith.addf %212, %249 : vector<8x32xf32>
    %c1_169 = arith.constant 1 : index
    %c0_170 = arith.constant 0 : index
    %c0_171 = arith.constant 0 : index
    %251 = vector.load %arg7[%c1_169, %c0_170, %c0_171] : memref<8x32x8xf32, #tpu.memory_space<vmem>>, vector<1x32x8xf32>
    %252 = vector.shape_cast %251 : vector<1x32x8xf32> to vector<32x8xf32>
    %cst_172 = arith.constant dense<0.000000e+00> : vector<8x8xf32>
    %253 = tpu.matmul %208, %252, %cst_172 {dimension_numbers = #tpu.dot_dimension_numbers<[1], [0], [0], [1], [0, 0, 1, 1], [], []>} : vector<8x32xf32>, vector<32x8xf32>, vector<8x8xf32> -> vector<8x8xf32>
    %c1_173 = arith.constant 1 : index
    %c0_174 = arith.constant 0 : index
    %c0_175 = arith.constant 0 : index
    %254 = vector.load %arg10[%c1_173, %c0_174, %c0_175] : memref<8x1x8xf32, #tpu.memory_space<vmem>>, vector<1x1x8xf32>
    %255 = vector.shape_cast %254 : vector<1x1x8xf32> to vector<1x8xf32>
    %256 = vector.broadcast %255 : vector<1x8xf32> to vector<8x8xf32>
    %257 = arith.addf %253, %256 : vector<8x8xf32>
    %c1_176 = arith.constant 1 : index
    %c0_177 = arith.constant 0 : index
    %c0_178 = arith.constant 0 : index
    %258 = vector.load %arg8[%c1_176, %c0_177, %c0_178] : memref<8x32x8xf32, #tpu.memory_space<vmem>>, vector<1x32x8xf32>
    %259 = vector.shape_cast %258 : vector<1x32x8xf32> to vector<32x8xf32>
    %cst_179 = arith.constant dense<0.000000e+00> : vector<8x8xf32>
    %260 = tpu.matmul %208, %259, %cst_179 {dimension_numbers = #tpu.dot_dimension_numbers<[1], [0], [0], [1], [0, 0, 1, 1], [], []>} : vector<8x32xf32>, vector<32x8xf32>, vector<8x8xf32> -> vector<8x8xf32>
    %c1_180 = arith.constant 1 : index
    %c0_181 = arith.constant 0 : index
    %c0_182 = arith.constant 0 : index
    %261 = vector.load %arg11[%c1_180, %c0_181, %c0_182] : memref<8x1x8xf32, #tpu.memory_space<vmem>>, vector<1x1x8xf32>
    %262 = vector.shape_cast %261 : vector<1x1x8xf32> to vector<1x8xf32>
    %263 = vector.broadcast %262 : vector<1x8xf32> to vector<8x8xf32>
    %264 = arith.addf %260, %263 : vector<8x8xf32>
    %c1_183 = arith.constant 1 : index
    %c0_184 = arith.constant 0 : index
    %c0_185 = arith.constant 0 : index
    %265 = vector.load %arg9[%c1_183, %c0_184, %c0_185] : memref<8x32x8xf32, #tpu.memory_space<vmem>>, vector<1x32x8xf32>
    %266 = vector.shape_cast %265 : vector<1x32x8xf32> to vector<32x8xf32>
    %cst_186 = arith.constant dense<0.000000e+00> : vector<8x8xf32>
    %267 = tpu.matmul %208, %266, %cst_186 {dimension_numbers = #tpu.dot_dimension_numbers<[1], [0], [0], [1], [0, 0, 1, 1], [], []>} : vector<8x32xf32>, vector<32x8xf32>, vector<8x8xf32> -> vector<8x8xf32>
    %c1_187 = arith.constant 1 : index
    %c0_188 = arith.constant 0 : index
    %c0_189 = arith.constant 0 : index
    %268 = vector.load %arg12[%c1_187, %c0_188, %c0_189] : memref<8x1x8xf32, #tpu.memory_space<vmem>>, vector<1x1x8xf32>
    %269 = vector.shape_cast %268 : vector<1x1x8xf32> to vector<1x8xf32>
    %270 = vector.broadcast %269 : vector<1x8xf32> to vector<8x8xf32>
    %271 = arith.addf %267, %270 : vector<8x8xf32>
    %cst_190 = arith.constant dense<0.000000e+00> : vector<8x8xf32>
    %272 = tpu.matmul %257, %264, %cst_190 {dimension_numbers = #tpu.dot_dimension_numbers<[1], [1], [0], [0], [0, 0, 1, 0], [], []>} : vector<8x8xf32>, vector<8x8xf32>, vector<8x8xf32> -> vector<8x8xf32>
    %273 = arith.addf %272, %211 : vector<8x8xf32>
    %cst_191 = arith.constant dense<0xFF800000> : vector<8xf32>
    %274 = vector.multi_reduction <maximumf>, %273, %cst_191 [1] : vector<8x8xf32> to vector<8xf32>
    %275 = vector.shape_cast %274 : vector<8xf32> to vector<8x1xf32>
    %276 = vector.broadcast %275 : vector<8x1xf32> to vector<8x8xf32>
    %277 = arith.subf %273, %276 : vector<8x8xf32>
    %278 = math.exp %277 : vector<8x8xf32>
    %cst_192 = arith.constant dense<0.000000e+00> : vector<8xf32>
    %279 = vector.multi_reduction <add>, %278, %cst_192 [1] : vector<8x8xf32> to vector<8xf32>
    %280 = vector.shape_cast %279 : vector<8xf32> to vector<8x1xf32>
    %281 = tpu.reciprocal %280 {approx = true} : vector<8x1xf32> -> vector<8x1xf32>
    %282 = vector.broadcast %281 : vector<8x1xf32> to vector<8x8xf32>
    %283 = arith.mulf %278, %282 : vector<8x8xf32>
    %cst_193 = arith.constant dense<0.000000e+00> : vector<8x8xf32>
    %284 = tpu.matmul %283, %271, %cst_193 {dimension_numbers = #tpu.dot_dimension_numbers<[1], [0], [0], [1], [0, 0, 1, 1], [], []>} : vector<8x8xf32>, vector<8x8xf32>, vector<8x8xf32> -> vector<8x8xf32>
    %c1_194 = arith.constant 1 : index
    %c0_195 = arith.constant 0 : index
    %c0_196 = arith.constant 0 : index
    %285 = vector.load %arg13[%c1_194, %c0_195, %c0_196] : memref<8x8x32xf32, #tpu.memory_space<vmem>>, vector<1x8x32xf32>
    %286 = vector.shape_cast %285 : vector<1x8x32xf32> to vector<8x32xf32>
    %cst_197 = arith.constant dense<0.000000e+00> : vector<8x32xf32>
    %287 = tpu.matmul %284, %286, %cst_197 {dimension_numbers = #tpu.dot_dimension_numbers<[1], [0], [0], [1], [0, 0, 1, 1], [], []>} : vector<8x8xf32>, vector<8x32xf32>, vector<8x32xf32> -> vector<8x32xf32>
    %288 = arith.addf %250, %287 : vector<8x32xf32>
    %c2_198 = arith.constant 2 : index
    %c0_199 = arith.constant 0 : index
    %c0_200 = arith.constant 0 : index
    %289 = vector.load %arg7[%c2_198, %c0_199, %c0_200] : memref<8x32x8xf32, #tpu.memory_space<vmem>>, vector<1x32x8xf32>
    %290 = vector.shape_cast %289 : vector<1x32x8xf32> to vector<32x8xf32>
    %cst_201 = arith.constant dense<0.000000e+00> : vector<8x8xf32>
    %291 = tpu.matmul %208, %290, %cst_201 {dimension_numbers = #tpu.dot_dimension_numbers<[1], [0], [0], [1], [0, 0, 1, 1], [], []>} : vector<8x32xf32>, vector<32x8xf32>, vector<8x8xf32> -> vector<8x8xf32>
    %c2_202 = arith.constant 2 : index
    %c0_203 = arith.constant 0 : index
    %c0_204 = arith.constant 0 : index
    %292 = vector.load %arg10[%c2_202, %c0_203, %c0_204] : memref<8x1x8xf32, #tpu.memory_space<vmem>>, vector<1x1x8xf32>
    %293 = vector.shape_cast %292 : vector<1x1x8xf32> to vector<1x8xf32>
    %294 = vector.broadcast %293 : vector<1x8xf32> to vector<8x8xf32>
    %295 = arith.addf %291, %294 : vector<8x8xf32>
    %c2_205 = arith.constant 2 : index
    %c0_206 = arith.constant 0 : index
    %c0_207 = arith.constant 0 : index
    %296 = vector.load %arg8[%c2_205, %c0_206, %c0_207] : memref<8x32x8xf32, #tpu.memory_space<vmem>>, vector<1x32x8xf32>
    %297 = vector.shape_cast %296 : vector<1x32x8xf32> to vector<32x8xf32>
    %cst_208 = arith.constant dense<0.000000e+00> : vector<8x8xf32>
    %298 = tpu.matmul %208, %297, %cst_208 {dimension_numbers = #tpu.dot_dimension_numbers<[1], [0], [0], [1], [0, 0, 1, 1], [], []>} : vector<8x32xf32>, vector<32x8xf32>, vector<8x8xf32> -> vector<8x8xf32>
    %c2_209 = arith.constant 2 : index
    %c0_210 = arith.constant 0 : index
    %c0_211 = arith.constant 0 : index
    %299 = vector.load %arg11[%c2_209, %c0_210, %c0_211] : memref<8x1x8xf32, #tpu.memory_space<vmem>>, vector<1x1x8xf32>
    %300 = vector.shape_cast %299 : vector<1x1x8xf32> to vector<1x8xf32>
    %301 = vector.broadcast %300 : vector<1x8xf32> to vector<8x8xf32>
    %302 = arith.addf %298, %301 : vector<8x8xf32>
    %c2_212 = arith.constant 2 : index
    %c0_213 = arith.constant 0 : index
    %c0_214 = arith.constant 0 : index
    %303 = vector.load %arg9[%c2_212, %c0_213, %c0_214] : memref<8x32x8xf32, #tpu.memory_space<vmem>>, vector<1x32x8xf32>
    %304 = vector.shape_cast %303 : vector<1x32x8xf32> to vector<32x8xf32>
    %cst_215 = arith.constant dense<0.000000e+00> : vector<8x8xf32>
    %305 = tpu.matmul %208, %304, %cst_215 {dimension_numbers = #tpu.dot_dimension_numbers<[1], [0], [0], [1], [0, 0, 1, 1], [], []>} : vector<8x32xf32>, vector<32x8xf32>, vector<8x8xf32> -> vector<8x8xf32>
    %c2_216 = arith.constant 2 : index
    %c0_217 = arith.constant 0 : index
    %c0_218 = arith.constant 0 : index
    %306 = vector.load %arg12[%c2_216, %c0_217, %c0_218] : memref<8x1x8xf32, #tpu.memory_space<vmem>>, vector<1x1x8xf32>
    %307 = vector.shape_cast %306 : vector<1x1x8xf32> to vector<1x8xf32>
    %308 = vector.broadcast %307 : vector<1x8xf32> to vector<8x8xf32>
    %309 = arith.addf %305, %308 : vector<8x8xf32>
    %cst_219 = arith.constant dense<0.000000e+00> : vector<8x8xf32>
    %310 = tpu.matmul %295, %302, %cst_219 {dimension_numbers = #tpu.dot_dimension_numbers<[1], [1], [0], [0], [0, 0, 1, 0], [], []>} : vector<8x8xf32>, vector<8x8xf32>, vector<8x8xf32> -> vector<8x8xf32>
    %311 = arith.addf %310, %211 : vector<8x8xf32>
    %cst_220 = arith.constant dense<0xFF800000> : vector<8xf32>
    %312 = vector.multi_reduction <maximumf>, %311, %cst_220 [1] : vector<8x8xf32> to vector<8xf32>
    %313 = vector.shape_cast %312 : vector<8xf32> to vector<8x1xf32>
    %314 = vector.broadcast %313 : vector<8x1xf32> to vector<8x8xf32>
    %315 = arith.subf %311, %314 : vector<8x8xf32>
    %316 = math.exp %315 : vector<8x8xf32>
    %cst_221 = arith.constant dense<0.000000e+00> : vector<8xf32>
    %317 = vector.multi_reduction <add>, %316, %cst_221 [1] : vector<8x8xf32> to vector<8xf32>
    %318 = vector.shape_cast %317 : vector<8xf32> to vector<8x1xf32>
    %319 = tpu.reciprocal %318 {approx = true} : vector<8x1xf32> -> vector<8x1xf32>
    %320 = vector.broadcast %319 : vector<8x1xf32> to vector<8x8xf32>
    %321 = arith.mulf %316, %320 : vector<8x8xf32>
    %cst_222 = arith.constant dense<0.000000e+00> : vector<8x8xf32>
    %322 = tpu.matmul %321, %309, %cst_222 {dimension_numbers = #tpu.dot_dimension_numbers<[1], [0], [0], [1], [0, 0, 1, 1], [], []>} : vector<8x8xf32>, vector<8x8xf32>, vector<8x8xf32> -> vector<8x8xf32>
    %c2_223 = arith.constant 2 : index
    %c0_224 = arith.constant 0 : index
    %c0_225 = arith.constant 0 : index
    %323 = vector.load %arg13[%c2_223, %c0_224, %c0_225] : memref<8x8x32xf32, #tpu.memory_space<vmem>>, vector<1x8x32xf32>
    %324 = vector.shape_cast %323 : vector<1x8x32xf32> to vector<8x32xf32>
    %cst_226 = arith.constant dense<0.000000e+00> : vector<8x32xf32>
    %325 = tpu.matmul %322, %324, %cst_226 {dimension_numbers = #tpu.dot_dimension_numbers<[1], [0], [0], [1], [0, 0, 1, 1], [], []>} : vector<8x8xf32>, vector<8x32xf32>, vector<8x32xf32> -> vector<8x32xf32>
    %326 = arith.addf %288, %325 : vector<8x32xf32>
    %c3_227 = arith.constant 3 : index
    %c0_228 = arith.constant 0 : index
    %c0_229 = arith.constant 0 : index
    %327 = vector.load %arg7[%c3_227, %c0_228, %c0_229] : memref<8x32x8xf32, #tpu.memory_space<vmem>>, vector<1x32x8xf32>
    %328 = vector.shape_cast %327 : vector<1x32x8xf32> to vector<32x8xf32>
    %cst_230 = arith.constant dense<0.000000e+00> : vector<8x8xf32>
    %329 = tpu.matmul %208, %328, %cst_230 {dimension_numbers = #tpu.dot_dimension_numbers<[1], [0], [0], [1], [0, 0, 1, 1], [], []>} : vector<8x32xf32>, vector<32x8xf32>, vector<8x8xf32> -> vector<8x8xf32>
    %c3_231 = arith.constant 3 : index
    %c0_232 = arith.constant 0 : index
    %c0_233 = arith.constant 0 : index
    %330 = vector.load %arg10[%c3_231, %c0_232, %c0_233] : memref<8x1x8xf32, #tpu.memory_space<vmem>>, vector<1x1x8xf32>
    %331 = vector.shape_cast %330 : vector<1x1x8xf32> to vector<1x8xf32>
    %332 = vector.broadcast %331 : vector<1x8xf32> to vector<8x8xf32>
    %333 = arith.addf %329, %332 : vector<8x8xf32>
    %c3_234 = arith.constant 3 : index
    %c0_235 = arith.constant 0 : index
    %c0_236 = arith.constant 0 : index
    %334 = vector.load %arg8[%c3_234, %c0_235, %c0_236] : memref<8x32x8xf32, #tpu.memory_space<vmem>>, vector<1x32x8xf32>
    %335 = vector.shape_cast %334 : vector<1x32x8xf32> to vector<32x8xf32>
    %cst_237 = arith.constant dense<0.000000e+00> : vector<8x8xf32>
    %336 = tpu.matmul %208, %335, %cst_237 {dimension_numbers = #tpu.dot_dimension_numbers<[1], [0], [0], [1], [0, 0, 1, 1], [], []>} : vector<8x32xf32>, vector<32x8xf32>, vector<8x8xf32> -> vector<8x8xf32>
    %c3_238 = arith.constant 3 : index
    %c0_239 = arith.constant 0 : index
    %c0_240 = arith.constant 0 : index
    %337 = vector.load %arg11[%c3_238, %c0_239, %c0_240] : memref<8x1x8xf32, #tpu.memory_space<vmem>>, vector<1x1x8xf32>
    %338 = vector.shape_cast %337 : vector<1x1x8xf32> to vector<1x8xf32>
    %339 = vector.broadcast %338 : vector<1x8xf32> to vector<8x8xf32>
    %340 = arith.addf %336, %339 : vector<8x8xf32>
    %c3_241 = arith.constant 3 : index
    %c0_242 = arith.constant 0 : index
    %c0_243 = arith.constant 0 : index
    %341 = vector.load %arg9[%c3_241, %c0_242, %c0_243] : memref<8x32x8xf32, #tpu.memory_space<vmem>>, vector<1x32x8xf32>
    %342 = vector.shape_cast %341 : vector<1x32x8xf32> to vector<32x8xf32>
    %cst_244 = arith.constant dense<0.000000e+00> : vector<8x8xf32>
    %343 = tpu.matmul %208, %342, %cst_244 {dimension_numbers = #tpu.dot_dimension_numbers<[1], [0], [0], [1], [0, 0, 1, 1], [], []>} : vector<8x32xf32>, vector<32x8xf32>, vector<8x8xf32> -> vector<8x8xf32>
    %c3_245 = arith.constant 3 : index
    %c0_246 = arith.constant 0 : index
    %c0_247 = arith.constant 0 : index
    %344 = vector.load %arg12[%c3_245, %c0_246, %c0_247] : memref<8x1x8xf32, #tpu.memory_space<vmem>>, vector<1x1x8xf32>
    %345 = vector.shape_cast %344 : vector<1x1x8xf32> to vector<1x8xf32>
    %346 = vector.broadcast %345 : vector<1x8xf32> to vector<8x8xf32>
    %347 = arith.addf %343, %346 : vector<8x8xf32>
    %cst_248 = arith.constant dense<0.000000e+00> : vector<8x8xf32>
    %348 = tpu.matmul %333, %340, %cst_248 {dimension_numbers = #tpu.dot_dimension_numbers<[1], [1], [0], [0], [0, 0, 1, 0], [], []>} : vector<8x8xf32>, vector<8x8xf32>, vector<8x8xf32> -> vector<8x8xf32>
    %349 = arith.addf %348, %211 : vector<8x8xf32>
    %cst_249 = arith.constant dense<0xFF800000> : vector<8xf32>
    %350 = vector.multi_reduction <maximumf>, %349, %cst_249 [1] : vector<8x8xf32> to vector<8xf32>
    %351 = vector.shape_cast %350 : vector<8xf32> to vector<8x1xf32>
    %352 = vector.broadcast %351 : vector<8x1xf32> to vector<8x8xf32>
    %353 = arith.subf %349, %352 : vector<8x8xf32>
    %354 = math.exp %353 : vector<8x8xf32>
    %cst_250 = arith.constant dense<0.000000e+00> : vector<8xf32>
    %355 = vector.multi_reduction <add>, %354, %cst_250 [1] : vector<8x8xf32> to vector<8xf32>
    %356 = vector.shape_cast %355 : vector<8xf32> to vector<8x1xf32>
    %357 = tpu.reciprocal %356 {approx = true} : vector<8x1xf32> -> vector<8x1xf32>
    %358 = vector.broadcast %357 : vector<8x1xf32> to vector<8x8xf32>
    %359 = arith.mulf %354, %358 : vector<8x8xf32>
    %cst_251 = arith.constant dense<0.000000e+00> : vector<8x8xf32>
    %360 = tpu.matmul %359, %347, %cst_251 {dimension_numbers = #tpu.dot_dimension_numbers<[1], [0], [0], [1], [0, 0, 1, 1], [], []>} : vector<8x8xf32>, vector<8x8xf32>, vector<8x8xf32> -> vector<8x8xf32>
    %c3_252 = arith.constant 3 : index
    %c0_253 = arith.constant 0 : index
    %c0_254 = arith.constant 0 : index
    %361 = vector.load %arg13[%c3_252, %c0_253, %c0_254] : memref<8x8x32xf32, #tpu.memory_space<vmem>>, vector<1x8x32xf32>
    %362 = vector.shape_cast %361 : vector<1x8x32xf32> to vector<8x32xf32>
    %cst_255 = arith.constant dense<0.000000e+00> : vector<8x32xf32>
    %363 = tpu.matmul %360, %362, %cst_255 {dimension_numbers = #tpu.dot_dimension_numbers<[1], [0], [0], [1], [0, 0, 1, 1], [], []>} : vector<8x8xf32>, vector<8x32xf32>, vector<8x32xf32> -> vector<8x32xf32>
    %364 = arith.addf %326, %363 : vector<8x32xf32>
    %c8_256 = arith.constant 8 : index
    %c0_257 = arith.constant 0 : index
    %365 = vector.load %arg26[%c8_256, %c0_257] : memref<16x32xf32, #tpu.memory_space<vmem>>, vector<8x32xf32>
    tpu.vector_store %arg26[%c8_256, %c0_257], %364 {strides = array<i32>} : memref<16x32xf32, #tpu.memory_space<vmem>>, vector<8x32xf32>,
    %c0_258 = arith.constant 0 : index
    %c0_259 = arith.constant 0 : index
    %366 = vector.load %arg26[%c0_258, %c0_259] : memref<16x32xf32, #tpu.memory_space<vmem>>, vector<16x32xf32>
    %367 = arith.addf %39, %366 : vector<16x32xf32>
    %c0_260 = arith.constant 0 : index
    %c0_261 = arith.constant 0 : index
    %c0_262 = arith.constant 0 : index
    %368 = vector.load %arg14[%c0_260, %c0_261, %c0_262] : memref<2x1x32xf32, #tpu.memory_space<vmem>>, vector<1x1x32xf32>
    %369 = vector.shape_cast %368 : vector<1x1x32xf32> to vector<1x32xf32>
    %370 = vector.broadcast %369 : vector<1x32xf32> to vector<16x32xf32>
    %371 = arith.addf %367, %370 : vector<16x32xf32>
    %c0_263 = arith.constant 0 : index
    %c0_264 = arith.constant 0 : index
    %c0_265 = arith.constant 0 : index
    %372 = vector.load %arg15[%c0_263, %c0_264, %c0_265] : memref<2x1x32xf32, #tpu.memory_space<vmem>>, vector<1x1x32xf32>
    %373 = vector.shape_cast %372 : vector<1x1x32xf32> to vector<1x32xf32>
    %c0_266 = arith.constant 0 : index
    %c0_267 = arith.constant 0 : index
    %c0_268 = arith.constant 0 : index
    %374 = vector.load %arg16[%c0_266, %c0_267, %c0_268] : memref<2x1x32xf32, #tpu.memory_space<vmem>>, vector<1x1x32xf32>
    %375 = vector.shape_cast %374 : vector<1x1x32xf32> to vector<1x32xf32>
    %cst_269 = arith.constant dense<0.000000e+00> : vector<16xf32>
    %376 = vector.multi_reduction <add>, %371, %cst_269 [1] : vector<16x32xf32> to vector<16xf32>
    %377 = vector.shape_cast %376 : vector<16xf32> to vector<16x1xf32>
    %cst_270 = arith.constant 3.200000e+01 : f32
    %378 = vector.broadcast %cst_270 : f32 to vector<16x1xf32>
    %379 = arith.divf %377, %378 : vector<16x1xf32>
    %380 = vector.broadcast %379 : vector<16x1xf32> to vector<16x32xf32>
    %381 = arith.subf %371, %380 : vector<16x32xf32>
    %382 = arith.mulf %381, %381 : vector<16x32xf32>
    %cst_271 = arith.constant dense<0.000000e+00> : vector<16xf32>
    %383 = vector.multi_reduction <add>, %382, %cst_271 [1] : vector<16x32xf32> to vector<16xf32>
    %384 = vector.shape_cast %383 : vector<16xf32> to vector<16x1xf32>
    %cst_272 = arith.constant 3.200000e+01 : f32
    %385 = vector.broadcast %cst_272 : f32 to vector<16x1xf32>
    %386 = arith.divf %384, %385 : vector<16x1xf32>
    %387 = vector.broadcast %379 : vector<16x1xf32> to vector<16x32xf32>
    %388 = arith.subf %371, %387 : vector<16x32xf32>
    %cst_273 = arith.constant 9.99999996E-13 : f32
    %389 = vector.broadcast %cst_273 : f32 to vector<16x1xf32>
    %390 = arith.addf %386, %389 : vector<16x1xf32>
    %391 = math.rsqrt %390 : vector<16x1xf32>
    %392 = vector.broadcast %391 : vector<16x1xf32> to vector<16x32xf32>
    %393 = arith.mulf %388, %392 : vector<16x32xf32>
    %394 = vector.broadcast %373 : vector<1x32xf32> to vector<16x32xf32>
    %395 = arith.mulf %393, %394 : vector<16x32xf32>
    %396 = vector.broadcast %375 : vector<1x32xf32> to vector<16x32xf32>
    %397 = arith.addf %395, %396 : vector<16x32xf32>
    %c0_274 = arith.constant 0 : index
    %c0_275 = arith.constant 0 : index
    %c0_276 = arith.constant 0 : index
    %398 = vector.load %arg17[%c0_274, %c0_275, %c0_276] : memref<2x32x64xf32, #tpu.memory_space<vmem>>, vector<1x32x64xf32>
    %399 = vector.shape_cast %398 : vector<1x32x64xf32> to vector<32x64xf32>
    %cst_277 = arith.constant dense<0.000000e+00> : vector<16x64xf32>
    %400 = tpu.matmul %397, %399, %cst_277 {dimension_numbers = #tpu.dot_dimension_numbers<[1], [0], [0], [1], [0, 0, 1, 1], [], []>} : vector<16x32xf32>, vector<32x64xf32>, vector<16x64xf32> -> vector<16x64xf32>
    %c0_278 = arith.constant 0 : index
    %c0_279 = arith.constant 0 : index
    %c0_280 = arith.constant 0 : index
    %401 = vector.load %arg18[%c0_278, %c0_279, %c0_280] : memref<2x1x64xf32, #tpu.memory_space<vmem>>, vector<1x1x64xf32>
    %402 = vector.shape_cast %401 : vector<1x1x64xf32> to vector<1x64xf32>
    %403 = vector.broadcast %402 : vector<1x64xf32> to vector<16x64xf32>
    %404 = arith.addf %400, %403 : vector<16x64xf32>
    %cst_281 = arith.constant 5.000000e-01 : f32
    %405 = vector.broadcast %cst_281 : f32 to vector<16x64xf32>
    %406 = arith.mulf %405, %404 : vector<16x64xf32>
    %cst_282 = arith.constant 4.471500e-02 : f32
    %407 = vector.broadcast %cst_282 : f32 to vector<16x64xf32>
    %408 = arith.mulf %407, %404 : vector<16x64xf32>
    %409 = arith.mulf %408, %404 : vector<16x64xf32>
    %410 = arith.mulf %409, %404 : vector<16x64xf32>
    %411 = arith.addf %404, %410 : vector<16x64xf32>
    %cst_283 = arith.constant 0.797884583 : f32
    %412 = vector.broadcast %cst_283 : f32 to vector<16x64xf32>
    %413 = arith.mulf %412, %411 : vector<16x64xf32>
    %414 = math.tanh %413 : vector<16x64xf32>
    %cst_284 = arith.constant 1.000000e+00 : f32
    %415 = vector.broadcast %cst_284 : f32 to vector<16x64xf32>
    %416 = arith.addf %415, %414 : vector<16x64xf32>
    %417 = arith.mulf %406, %416 : vector<16x64xf32>
    %c0_285 = arith.constant 0 : index
    %c0_286 = arith.constant 0 : index
    %c0_287 = arith.constant 0 : index
    %418 = vector.load %arg19[%c0_285, %c0_286, %c0_287] : memref<2x64x32xf32, #tpu.memory_space<vmem>>, vector<1x64x32xf32>
    %419 = vector.shape_cast %418 : vector<1x64x32xf32> to vector<64x32xf32>
    %cst_288 = arith.constant dense<0.000000e+00> : vector<16x32xf32>
    %420 = tpu.matmul %417, %419, %cst_288 {dimension_numbers = #tpu.dot_dimension_numbers<[1], [0], [0], [1], [0, 0, 1, 1], [], []>} : vector<16x64xf32>, vector<64x32xf32>, vector<16x32xf32> -> vector<16x32xf32>
    %c0_289 = arith.constant 0 : index
    %c0_290 = arith.constant 0 : index
    %c0_291 = arith.constant 0 : index
    %421 = vector.load %arg20[%c0_289, %c0_290, %c0_291] : memref<2x1x32xf32, #tpu.memory_space<vmem>>, vector<1x1x32xf32>
    %422 = vector.shape_cast %421 : vector<1x1x32xf32> to vector<1x32xf32>
    %423 = vector.broadcast %422 : vector<1x32xf32> to vector<16x32xf32>
    %424 = arith.addf %420, %423 : vector<16x32xf32>
    %425 = arith.addf %397, %424 : vector<16x32xf32>
    %c0_292 = arith.constant 0 : index
    %c0_293 = arith.constant 0 : index
    %c0_294 = arith.constant 0 : index
    %426 = vector.load %arg21[%c0_292, %c0_293, %c0_294] : memref<2x1x32xf32, #tpu.memory_space<vmem>>, vector<1x1x32xf32>
    %427 = vector.shape_cast %426 : vector<1x1x32xf32> to vector<1x32xf32>
    %c0_295 = arith.constant 0 : index
    %c0_296 = arith.constant 0 : index
    %c0_297 = arith.constant 0 : index
    %428 = vector.load %arg22[%c0_295, %c0_296, %c0_297] : memref<2x1x32xf32, #tpu.memory_space<vmem>>, vector<1x1x32xf32>
    %429 = vector.shape_cast %428 : vector<1x1x32xf32> to vector<1x32xf32>
    %cst_298 = arith.constant dense<0.000000e+00> : vector<16xf32>
    %430 = vector.multi_reduction <add>, %425, %cst_298 [1] : vector<16x32xf32> to vector<16xf32>
    %431 = vector.shape_cast %430 : vector<16xf32> to vector<16x1xf32>
    %cst_299 = arith.constant 3.200000e+01 : f32
    %432 = vector.broadcast %cst_299 : f32 to vector<16x1xf32>
    %433 = arith.divf %431, %432 : vector<16x1xf32>
    %434 = vector.broadcast %433 : vector<16x1xf32> to vector<16x32xf32>
    %435 = arith.subf %425, %434 : vector<16x32xf32>
    %436 = arith.mulf %435, %435 : vector<16x32xf32>
    %cst_300 = arith.constant dense<0.000000e+00> : vector<16xf32>
    %437 = vector.multi_reduction <add>, %436, %cst_300 [1] : vector<16x32xf32> to vector<16xf32>
    %438 = vector.shape_cast %437 : vector<16xf32> to vector<16x1xf32>
    %cst_301 = arith.constant 3.200000e+01 : f32
    %439 = vector.broadcast %cst_301 : f32 to vector<16x1xf32>
    %440 = arith.divf %438, %439 : vector<16x1xf32>
    %441 = vector.broadcast %433 : vector<16x1xf32> to vector<16x32xf32>
    %442 = arith.subf %425, %441 : vector<16x32xf32>
    %cst_302 = arith.constant 9.99999996E-13 : f32
    %443 = vector.broadcast %cst_302 : f32 to vector<16x1xf32>
    %444 = arith.addf %440, %443 : vector<16x1xf32>
    %445 = math.rsqrt %444 : vector<16x1xf32>
    %446 = vector.broadcast %445 : vector<16x1xf32> to vector<16x32xf32>
    %447 = arith.mulf %442, %446 : vector<16x32xf32>
    %448 = vector.broadcast %427 : vector<1x32xf32> to vector<16x32xf32>
    %449 = arith.mulf %447, %448 : vector<16x32xf32>
    %450 = vector.broadcast %429 : vector<1x32xf32> to vector<16x32xf32>
    %451 = arith.addf %449, %450 : vector<16x32xf32>
    %452 = vector.extract_strided_slice %451 {offsets = [0, 0], sizes = [8, 32], strides = [1, 1]} : vector<16x32xf32> to vector<8x32xf32>
    %453 = vector.extract_strided_slice %49 {offsets = [0, 0], sizes = [1, 8], strides = [1, 1]} : vector<2x8xf32> to vector<1x8xf32>
    %454 = vector.shape_cast %453 : vector<1x8xf32> to vector<1x8xf32>
    %455 = vector.broadcast %454 : vector<1x8xf32> to vector<8x8xf32>
    %cst_303 = arith.constant 0.000000e+00 : f32
    %456 = vector.broadcast %cst_303 : f32 to vector<8x32xf32>
    %c4 = arith.constant 4 : index
    %c0_304 = arith.constant 0 : index
    %c0_305 = arith.constant 0 : index
    %457 = vector.load %arg7[%c4, %c0_304, %c0_305] : memref<8x32x8xf32, #tpu.memory_space<vmem>>, vector<1x32x8xf32>
    %458 = vector.shape_cast %457 : vector<1x32x8xf32> to vector<32x8xf32>
    %cst_306 = arith.constant dense<0.000000e+00> : vector<8x8xf32>
    %459 = tpu.matmul %452, %458, %cst_306 {dimension_numbers = #tpu.dot_dimension_numbers<[1], [0], [0], [1], [0, 0, 1, 1], [], []>} : vector<8x32xf32>, vector<32x8xf32>, vector<8x8xf32> -> vector<8x8xf32>
    %c4_307 = arith.constant 4 : index
    %c0_308 = arith.constant 0 : index
    %c0_309 = arith.constant 0 : index
    %460 = vector.load %arg10[%c4_307, %c0_308, %c0_309] : memref<8x1x8xf32, #tpu.memory_space<vmem>>, vector<1x1x8xf32>
    %461 = vector.shape_cast %460 : vector<1x1x8xf32> to vector<1x8xf32>
    %462 = vector.broadcast %461 : vector<1x8xf32> to vector<8x8xf32>
    %463 = arith.addf %459, %462 : vector<8x8xf32>
    %c4_310 = arith.constant 4 : index
    %c0_311 = arith.constant 0 : index
    %c0_312 = arith.constant 0 : index
    %464 = vector.load %arg8[%c4_310, %c0_311, %c0_312] : memref<8x32x8xf32, #tpu.memory_space<vmem>>, vector<1x32x8xf32>
    %465 = vector.shape_cast %464 : vector<1x32x8xf32> to vector<32x8xf32>
    %cst_313 = arith.constant dense<0.000000e+00> : vector<8x8xf32>
    %466 = tpu.matmul %452, %465, %cst_313 {dimension_numbers = #tpu.dot_dimension_numbers<[1], [0], [0], [1], [0, 0, 1, 1], [], []>} : vector<8x32xf32>, vector<32x8xf32>, vector<8x8xf32> -> vector<8x8xf32>
    %c4_314 = arith.constant 4 : index
    %c0_315 = arith.constant 0 : index
    %c0_316 = arith.constant 0 : index
    %467 = vector.load %arg11[%c4_314, %c0_315, %c0_316] : memref<8x1x8xf32, #tpu.memory_space<vmem>>, vector<1x1x8xf32>
    %468 = vector.shape_cast %467 : vector<1x1x8xf32> to vector<1x8xf32>
    %469 = vector.broadcast %468 : vector<1x8xf32> to vector<8x8xf32>
    %470 = arith.addf %466, %469 : vector<8x8xf32>
    %c4_317 = arith.constant 4 : index
    %c0_318 = arith.constant 0 : index
    %c0_319 = arith.constant 0 : index
    %471 = vector.load %arg9[%c4_317, %c0_318, %c0_319] : memref<8x32x8xf32, #tpu.memory_space<vmem>>, vector<1x32x8xf32>
    %472 = vector.shape_cast %471 : vector<1x32x8xf32> to vector<32x8xf32>
    %cst_320 = arith.constant dense<0.000000e+00> : vector<8x8xf32>
    %473 = tpu.matmul %452, %472, %cst_320 {dimension_numbers = #tpu.dot_dimension_numbers<[1], [0], [0], [1], [0, 0, 1, 1], [], []>} : vector<8x32xf32>, vector<32x8xf32>, vector<8x8xf32> -> vector<8x8xf32>
    %c4_321 = arith.constant 4 : index
    %c0_322 = arith.constant 0 : index
    %c0_323 = arith.constant 0 : index
    %474 = vector.load %arg12[%c4_321, %c0_322, %c0_323] : memref<8x1x8xf32, #tpu.memory_space<vmem>>, vector<1x1x8xf32>
    %475 = vector.shape_cast %474 : vector<1x1x8xf32> to vector<1x8xf32>
    %476 = vector.broadcast %475 : vector<1x8xf32> to vector<8x8xf32>
    %477 = arith.addf %473, %476 : vector<8x8xf32>
    %cst_324 = arith.constant dense<0.000000e+00> : vector<8x8xf32>
    %478 = tpu.matmul %463, %470, %cst_324 {dimension_numbers = #tpu.dot_dimension_numbers<[1], [1], [0], [0], [0, 0, 1, 0], [], []>} : vector<8x8xf32>, vector<8x8xf32>, vector<8x8xf32> -> vector<8x8xf32>
    %479 = arith.addf %478, %455 : vector<8x8xf32>
    %cst_325 = arith.constant dense<0xFF800000> : vector<8xf32>
    %480 = vector.multi_reduction <maximumf>, %479, %cst_325 [1] : vector<8x8xf32> to vector<8xf32>
    %481 = vector.shape_cast %480 : vector<8xf32> to vector<8x1xf32>
    %482 = vector.broadcast %481 : vector<8x1xf32> to vector<8x8xf32>
    %483 = arith.subf %479, %482 : vector<8x8xf32>
    %484 = math.exp %483 : vector<8x8xf32>
    %cst_326 = arith.constant dense<0.000000e+00> : vector<8xf32>
    %485 = vector.multi_reduction <add>, %484, %cst_326 [1] : vector<8x8xf32> to vector<8xf32>
    %486 = vector.shape_cast %485 : vector<8xf32> to vector<8x1xf32>
    %487 = tpu.reciprocal %486 {approx = true} : vector<8x1xf32> -> vector<8x1xf32>
    %488 = vector.broadcast %487 : vector<8x1xf32> to vector<8x8xf32>
    %489 = arith.mulf %484, %488 : vector<8x8xf32>
    %cst_327 = arith.constant dense<0.000000e+00> : vector<8x8xf32>
    %490 = tpu.matmul %489, %477, %cst_327 {dimension_numbers = #tpu.dot_dimension_numbers<[1], [0], [0], [1], [0, 0, 1, 1], [], []>} : vector<8x8xf32>, vector<8x8xf32>, vector<8x8xf32> -> vector<8x8xf32>
    %c4_328 = arith.constant 4 : index
    %c0_329 = arith.constant 0 : index
    %c0_330 = arith.constant 0 : index
    %491 = vector.load %arg13[%c4_328, %c0_329, %c0_330] : memref<8x8x32xf32, #tpu.memory_space<vmem>>, vector<1x8x32xf32>
    %492 = vector.shape_cast %491 : vector<1x8x32xf32> to vector<8x32xf32>
    %cst_331 = arith.constant dense<0.000000e+00> : vector<8x32xf32>
    %493 = tpu.matmul %490, %492, %cst_331 {dimension_numbers = #tpu.dot_dimension_numbers<[1], [0], [0], [1], [0, 0, 1, 1], [], []>} : vector<8x8xf32>, vector<8x32xf32>, vector<8x32xf32> -> vector<8x32xf32>
    %494 = arith.addf %456, %493 : vector<8x32xf32>
    %c5 = arith.constant 5 : index
    %c0_332 = arith.constant 0 : index
    %c0_333 = arith.constant 0 : index
    %495 = vector.load %arg7[%c5, %c0_332, %c0_333] : memref<8x32x8xf32, #tpu.memory_space<vmem>>, vector<1x32x8xf32>
    %496 = vector.shape_cast %495 : vector<1x32x8xf32> to vector<32x8xf32>
    %cst_334 = arith.constant dense<0.000000e+00> : vector<8x8xf32>
    %497 = tpu.matmul %452, %496, %cst_334 {dimension_numbers = #tpu.dot_dimension_numbers<[1], [0], [0], [1], [0, 0, 1, 1], [], []>} : vector<8x32xf32>, vector<32x8xf32>, vector<8x8xf32> -> vector<8x8xf32>
    %c5_335 = arith.constant 5 : index
    %c0_336 = arith.constant 0 : index
    %c0_337 = arith.constant 0 : index
    %498 = vector.load %arg10[%c5_335, %c0_336, %c0_337] : memref<8x1x8xf32, #tpu.memory_space<vmem>>, vector<1x1x8xf32>
    %499 = vector.shape_cast %498 : vector<1x1x8xf32> to vector<1x8xf32>
    %500 = vector.broadcast %499 : vector<1x8xf32> to vector<8x8xf32>
    %501 = arith.addf %497, %500 : vector<8x8xf32>
    %c5_338 = arith.constant 5 : index
    %c0_339 = arith.constant 0 : index
    %c0_340 = arith.constant 0 : index
    %502 = vector.load %arg8[%c5_338, %c0_339, %c0_340] : memref<8x32x8xf32, #tpu.memory_space<vmem>>, vector<1x32x8xf32>
    %503 = vector.shape_cast %502 : vector<1x32x8xf32> to vector<32x8xf32>
    %cst_341 = arith.constant dense<0.000000e+00> : vector<8x8xf32>
    %504 = tpu.matmul %452, %503, %cst_341 {dimension_numbers = #tpu.dot_dimension_numbers<[1], [0], [0], [1], [0, 0, 1, 1], [], []>} : vector<8x32xf32>, vector<32x8xf32>, vector<8x8xf32> -> vector<8x8xf32>
    %c5_342 = arith.constant 5 : index
    %c0_343 = arith.constant 0 : index
    %c0_344 = arith.constant 0 : index
    %505 = vector.load %arg11[%c5_342, %c0_343, %c0_344] : memref<8x1x8xf32, #tpu.memory_space<vmem>>, vector<1x1x8xf32>
    %506 = vector.shape_cast %505 : vector<1x1x8xf32> to vector<1x8xf32>
    %507 = vector.broadcast %506 : vector<1x8xf32> to vector<8x8xf32>
    %508 = arith.addf %504, %507 : vector<8x8xf32>
    %c5_345 = arith.constant 5 : index
    %c0_346 = arith.constant 0 : index
    %c0_347 = arith.constant 0 : index
    %509 = vector.load %arg9[%c5_345, %c0_346, %c0_347] : memref<8x32x8xf32, #tpu.memory_space<vmem>>, vector<1x32x8xf32>
    %510 = vector.shape_cast %509 : vector<1x32x8xf32> to vector<32x8xf32>
    %cst_348 = arith.constant dense<0.000000e+00> : vector<8x8xf32>
    %511 = tpu.matmul %452, %510, %cst_348 {dimension_numbers = #tpu.dot_dimension_numbers<[1], [0], [0], [1], [0, 0, 1, 1], [], []>} : vector<8x32xf32>, vector<32x8xf32>, vector<8x8xf32> -> vector<8x8xf32>
    %c5_349 = arith.constant 5 : index
    %c0_350 = arith.constant 0 : index
    %c0_351 = arith.constant 0 : index
    %512 = vector.load %arg12[%c5_349, %c0_350, %c0_351] : memref<8x1x8xf32, #tpu.memory_space<vmem>>, vector<1x1x8xf32>
    %513 = vector.shape_cast %512 : vector<1x1x8xf32> to vector<1x8xf32>
    %514 = vector.broadcast %513 : vector<1x8xf32> to vector<8x8xf32>
    %515 = arith.addf %511, %514 : vector<8x8xf32>
    %cst_352 = arith.constant dense<0.000000e+00> : vector<8x8xf32>
    %516 = tpu.matmul %501, %508, %cst_352 {dimension_numbers = #tpu.dot_dimension_numbers<[1], [1], [0], [0], [0, 0, 1, 0], [], []>} : vector<8x8xf32>, vector<8x8xf32>, vector<8x8xf32> -> vector<8x8xf32>
    %517 = arith.addf %516, %455 : vector<8x8xf32>
    %cst_353 = arith.constant dense<0xFF800000> : vector<8xf32>
    %518 = vector.multi_reduction <maximumf>, %517, %cst_353 [1] : vector<8x8xf32> to vector<8xf32>
    %519 = vector.shape_cast %518 : vector<8xf32> to vector<8x1xf32>
    %520 = vector.broadcast %519 : vector<8x1xf32> to vector<8x8xf32>
    %521 = arith.subf %517, %520 : vector<8x8xf32>
    %522 = math.exp %521 : vector<8x8xf32>
    %cst_354 = arith.constant dense<0.000000e+00> : vector<8xf32>
    %523 = vector.multi_reduction <add>, %522, %cst_354 [1] : vector<8x8xf32> to vector<8xf32>
    %524 = vector.shape_cast %523 : vector<8xf32> to vector<8x1xf32>
    %525 = tpu.reciprocal %524 {approx = true} : vector<8x1xf32> -> vector<8x1xf32>
    %526 = vector.broadcast %525 : vector<8x1xf32> to vector<8x8xf32>
    %527 = arith.mulf %522, %526 : vector<8x8xf32>
    %cst_355 = arith.constant dense<0.000000e+00> : vector<8x8xf32>
    %528 = tpu.matmul %527, %515, %cst_355 {dimension_numbers = #tpu.dot_dimension_numbers<[1], [0], [0], [1], [0, 0, 1, 1], [], []>} : vector<8x8xf32>, vector<8x8xf32>, vector<8x8xf32> -> vector<8x8xf32>
    %c5_356 = arith.constant 5 : index
    %c0_357 = arith.constant 0 : index
    %c0_358 = arith.constant 0 : index
    %529 = vector.load %arg13[%c5_356, %c0_357, %c0_358] : memref<8x8x32xf32, #tpu.memory_space<vmem>>, vector<1x8x32xf32>
    %530 = vector.shape_cast %529 : vector<1x8x32xf32> to vector<8x32xf32>
    %cst_359 = arith.constant dense<0.000000e+00> : vector<8x32xf32>
    %531 = tpu.matmul %528, %530, %cst_359 {dimension_numbers = #tpu.dot_dimension_numbers<[1], [0], [0], [1], [0, 0, 1, 1], [], []>} : vector<8x8xf32>, vector<8x32xf32>, vector<8x32xf32> -> vector<8x32xf32>
    %532 = arith.addf %494, %531 : vector<8x32xf32>
    %c6 = arith.constant 6 : index
    %c0_360 = arith.constant 0 : index
    %c0_361 = arith.constant 0 : index
    %533 = vector.load %arg7[%c6, %c0_360, %c0_361] : memref<8x32x8xf32, #tpu.memory_space<vmem>>, vector<1x32x8xf32>
    %534 = vector.shape_cast %533 : vector<1x32x8xf32> to vector<32x8xf32>
    %cst_362 = arith.constant dense<0.000000e+00> : vector<8x8xf32>
    %535 = tpu.matmul %452, %534, %cst_362 {dimension_numbers = #tpu.dot_dimension_numbers<[1], [0], [0], [1], [0, 0, 1, 1], [], []>} : vector<8x32xf32>, vector<32x8xf32>, vector<8x8xf32> -> vector<8x8xf32>
    %c6_363 = arith.constant 6 : index
    %c0_364 = arith.constant 0 : index
    %c0_365 = arith.constant 0 : index
    %536 = vector.load %arg10[%c6_363, %c0_364, %c0_365] : memref<8x1x8xf32, #tpu.memory_space<vmem>>, vector<1x1x8xf32>
    %537 = vector.shape_cast %536 : vector<1x1x8xf32> to vector<1x8xf32>
    %538 = vector.broadcast %537 : vector<1x8xf32> to vector<8x8xf32>
    %539 = arith.addf %535, %538 : vector<8x8xf32>
    %c6_366 = arith.constant 6 : index
    %c0_367 = arith.constant 0 : index
    %c0_368 = arith.constant 0 : index
    %540 = vector.load %arg8[%c6_366, %c0_367, %c0_368] : memref<8x32x8xf32, #tpu.memory_space<vmem>>, vector<1x32x8xf32>
    %541 = vector.shape_cast %540 : vector<1x32x8xf32> to vector<32x8xf32>
    %cst_369 = arith.constant dense<0.000000e+00> : vector<8x8xf32>
    %542 = tpu.matmul %452, %541, %cst_369 {dimension_numbers = #tpu.dot_dimension_numbers<[1], [0], [0], [1], [0, 0, 1, 1], [], []>} : vector<8x32xf32>, vector<32x8xf32>, vector<8x8xf32> -> vector<8x8xf32>
    %c6_370 = arith.constant 6 : index
    %c0_371 = arith.constant 0 : index
    %c0_372 = arith.constant 0 : index
    %543 = vector.load %arg11[%c6_370, %c0_371, %c0_372] : memref<8x1x8xf32, #tpu.memory_space<vmem>>, vector<1x1x8xf32>
    %544 = vector.shape_cast %543 : vector<1x1x8xf32> to vector<1x8xf32>
    %545 = vector.broadcast %544 : vector<1x8xf32> to vector<8x8xf32>
    %546 = arith.addf %542, %545 : vector<8x8xf32>
    %c6_373 = arith.constant 6 : index
    %c0_374 = arith.constant 0 : index
    %c0_375 = arith.constant 0 : index
    %547 = vector.load %arg9[%c6_373, %c0_374, %c0_375] : memref<8x32x8xf32, #tpu.memory_space<vmem>>, vector<1x32x8xf32>
    %548 = vector.shape_cast %547 : vector<1x32x8xf32> to vector<32x8xf32>
    %cst_376 = arith.constant dense<0.000000e+00> : vector<8x8xf32>
    %549 = tpu.matmul %452, %548, %cst_376 {dimension_numbers = #tpu.dot_dimension_numbers<[1], [0], [0], [1], [0, 0, 1, 1], [], []>} : vector<8x32xf32>, vector<32x8xf32>, vector<8x8xf32> -> vector<8x8xf32>
    %c6_377 = arith.constant 6 : index
    %c0_378 = arith.constant 0 : index
    %c0_379 = arith.constant 0 : index
    %550 = vector.load %arg12[%c6_377, %c0_378, %c0_379] : memref<8x1x8xf32, #tpu.memory_space<vmem>>, vector<1x1x8xf32>
    %551 = vector.shape_cast %550 : vector<1x1x8xf32> to vector<1x8xf32>
    %552 = vector.broadcast %551 : vector<1x8xf32> to vector<8x8xf32>
    %553 = arith.addf %549, %552 : vector<8x8xf32>
    %cst_380 = arith.constant dense<0.000000e+00> : vector<8x8xf32>
    %554 = tpu.matmul %539, %546, %cst_380 {dimension_numbers = #tpu.dot_dimension_numbers<[1], [1], [0], [0], [0, 0, 1, 0], [], []>} : vector<8x8xf32>, vector<8x8xf32>, vector<8x8xf32> -> vector<8x8xf32>
    %555 = arith.addf %554, %455 : vector<8x8xf32>
    %cst_381 = arith.constant dense<0xFF800000> : vector<8xf32>
    %556 = vector.multi_reduction <maximumf>, %555, %cst_381 [1] : vector<8x8xf32> to vector<8xf32>
    %557 = vector.shape_cast %556 : vector<8xf32> to vector<8x1xf32>
    %558 = vector.broadcast %557 : vector<8x1xf32> to vector<8x8xf32>
    %559 = arith.subf %555, %558 : vector<8x8xf32>
    %560 = math.exp %559 : vector<8x8xf32>
    %cst_382 = arith.constant dense<0.000000e+00> : vector<8xf32>
    %561 = vector.multi_reduction <add>, %560, %cst_382 [1] : vector<8x8xf32> to vector<8xf32>
    %562 = vector.shape_cast %561 : vector<8xf32> to vector<8x1xf32>
    %563 = tpu.reciprocal %562 {approx = true} : vector<8x1xf32> -> vector<8x1xf32>
    %564 = vector.broadcast %563 : vector<8x1xf32> to vector<8x8xf32>
    %565 = arith.mulf %560, %564 : vector<8x8xf32>
    %cst_383 = arith.constant dense<0.000000e+00> : vector<8x8xf32>
    %566 = tpu.matmul %565, %553, %cst_383 {dimension_numbers = #tpu.dot_dimension_numbers<[1], [0], [0], [1], [0, 0, 1, 1], [], []>} : vector<8x8xf32>, vector<8x8xf32>, vector<8x8xf32> -> vector<8x8xf32>
    %c6_384 = arith.constant 6 : index
    %c0_385 = arith.constant 0 : index
    %c0_386 = arith.constant 0 : index
    %567 = vector.load %arg13[%c6_384, %c0_385, %c0_386] : memref<8x8x32xf32, #tpu.memory_space<vmem>>, vector<1x8x32xf32>
    %568 = vector.shape_cast %567 : vector<1x8x32xf32> to vector<8x32xf32>
    %cst_387 = arith.constant dense<0.000000e+00> : vector<8x32xf32>
    %569 = tpu.matmul %566, %568, %cst_387 {dimension_numbers = #tpu.dot_dimension_numbers<[1], [0], [0], [1], [0, 0, 1, 1], [], []>} : vector<8x8xf32>, vector<8x32xf32>, vector<8x32xf32> -> vector<8x32xf32>
    %570 = arith.addf %532, %569 : vector<8x32xf32>
    %c7 = arith.constant 7 : index
    %c0_388 = arith.constant 0 : index
    %c0_389 = arith.constant 0 : index
    %571 = vector.load %arg7[%c7, %c0_388, %c0_389] : memref<8x32x8xf32, #tpu.memory_space<vmem>>, vector<1x32x8xf32>
    %572 = vector.shape_cast %571 : vector<1x32x8xf32> to vector<32x8xf32>
    %cst_390 = arith.constant dense<0.000000e+00> : vector<8x8xf32>
    %573 = tpu.matmul %452, %572, %cst_390 {dimension_numbers = #tpu.dot_dimension_numbers<[1], [0], [0], [1], [0, 0, 1, 1], [], []>} : vector<8x32xf32>, vector<32x8xf32>, vector<8x8xf32> -> vector<8x8xf32>
    %c7_391 = arith.constant 7 : index
    %c0_392 = arith.constant 0 : index
    %c0_393 = arith.constant 0 : index
    %574 = vector.load %arg10[%c7_391, %c0_392, %c0_393] : memref<8x1x8xf32, #tpu.memory_space<vmem>>, vector<1x1x8xf32>
    %575 = vector.shape_cast %574 : vector<1x1x8xf32> to vector<1x8xf32>
    %576 = vector.broadcast %575 : vector<1x8xf32> to vector<8x8xf32>
    %577 = arith.addf %573, %576 : vector<8x8xf32>
    %c7_394 = arith.constant 7 : index
    %c0_395 = arith.constant 0 : index
    %c0_396 = arith.constant 0 : index
    %578 = vector.load %arg8[%c7_394, %c0_395, %c0_396] : memref<8x32x8xf32, #tpu.memory_space<vmem>>, vector<1x32x8xf32>
    %579 = vector.shape_cast %578 : vector<1x32x8xf32> to vector<32x8xf32>
    %cst_397 = arith.constant dense<0.000000e+00> : vector<8x8xf32>
    %580 = tpu.matmul %452, %579, %cst_397 {dimension_numbers = #tpu.dot_dimension_numbers<[1], [0], [0], [1], [0, 0, 1, 1], [], []>} : vector<8x32xf32>, vector<32x8xf32>, vector<8x8xf32> -> vector<8x8xf32>
    %c7_398 = arith.constant 7 : index
    %c0_399 = arith.constant 0 : index
    %c0_400 = arith.constant 0 : index
    %581 = vector.load %arg11[%c7_398, %c0_399, %c0_400] : memref<8x1x8xf32, #tpu.memory_space<vmem>>, vector<1x1x8xf32>
    %582 = vector.shape_cast %581 : vector<1x1x8xf32> to vector<1x8xf32>
    %583 = vector.broadcast %582 : vector<1x8xf32> to vector<8x8xf32>
    %584 = arith.addf %580, %583 : vector<8x8xf32>
    %c7_401 = arith.constant 7 : index
    %c0_402 = arith.constant 0 : index
    %c0_403 = arith.constant 0 : index
    %585 = vector.load %arg9[%c7_401, %c0_402, %c0_403] : memref<8x32x8xf32, #tpu.memory_space<vmem>>, vector<1x32x8xf32>
    %586 = vector.shape_cast %585 : vector<1x32x8xf32> to vector<32x8xf32>
    %cst_404 = arith.constant dense<0.000000e+00> : vector<8x8xf32>
    %587 = tpu.matmul %452, %586, %cst_404 {dimension_numbers = #tpu.dot_dimension_numbers<[1], [0], [0], [1], [0, 0, 1, 1], [], []>} : vector<8x32xf32>, vector<32x8xf32>, vector<8x8xf32> -> vector<8x8xf32>
    %c7_405 = arith.constant 7 : index
    %c0_406 = arith.constant 0 : index
    %c0_407 = arith.constant 0 : index
    %588 = vector.load %arg12[%c7_405, %c0_406, %c0_407] : memref<8x1x8xf32, #tpu.memory_space<vmem>>, vector<1x1x8xf32>
    %589 = vector.shape_cast %588 : vector<1x1x8xf32> to vector<1x8xf32>
    %590 = vector.broadcast %589 : vector<1x8xf32> to vector<8x8xf32>
    %591 = arith.addf %587, %590 : vector<8x8xf32>
    %cst_408 = arith.constant dense<0.000000e+00> : vector<8x8xf32>
    %592 = tpu.matmul %577, %584, %cst_408 {dimension_numbers = #tpu.dot_dimension_numbers<[1], [1], [0], [0], [0, 0, 1, 0], [], []>} : vector<8x8xf32>, vector<8x8xf32>, vector<8x8xf32> -> vector<8x8xf32>
    %593 = arith.addf %592, %455 : vector<8x8xf32>
    %cst_409 = arith.constant dense<0xFF800000> : vector<8xf32>
    %594 = vector.multi_reduction <maximumf>, %593, %cst_409 [1] : vector<8x8xf32> to vector<8xf32>
    %595 = vector.shape_cast %594 : vector<8xf32> to vector<8x1xf32>
    %596 = vector.broadcast %595 : vector<8x1xf32> to vector<8x8xf32>
    %597 = arith.subf %593, %596 : vector<8x8xf32>
    %598 = math.exp %597 : vector<8x8xf32>
    %cst_410 = arith.constant dense<0.000000e+00> : vector<8xf32>
    %599 = vector.multi_reduction <add>, %598, %cst_410 [1] : vector<8x8xf32> to vector<8xf32>
    %600 = vector.shape_cast %599 : vector<8xf32> to vector<8x1xf32>
    %601 = tpu.reciprocal %600 {approx = true} : vector<8x1xf32> -> vector<8x1xf32>
    %602 = vector.broadcast %601 : vector<8x1xf32> to vector<8x8xf32>
    %603 = arith.mulf %598, %602 : vector<8x8xf32>
    %cst_411 = arith.constant dense<0.000000e+00> : vector<8x8xf32>
    %604 = tpu.matmul %603, %591, %cst_411 {dimension_numbers = #tpu.dot_dimension_numbers<[1], [0], [0], [1], [0, 0, 1, 1], [], []>} : vector<8x8xf32>, vector<8x8xf32>, vector<8x8xf32> -> vector<8x8xf32>
    %c7_412 = arith.constant 7 : index
    %c0_413 = arith.constant 0 : index
    %c0_414 = arith.constant 0 : index
    %605 = vector.load %arg13[%c7_412, %c0_413, %c0_414] : memref<8x8x32xf32, #tpu.memory_space<vmem>>, vector<1x8x32xf32>
    %606 = vector.shape_cast %605 : vector<1x8x32xf32> to vector<8x32xf32>
    %cst_415 = arith.constant dense<0.000000e+00> : vector<8x32xf32>
    %607 = tpu.matmul %604, %606, %cst_415 {dimension_numbers = #tpu.dot_dimension_numbers<[1], [0], [0], [1], [0, 0, 1, 1], [], []>} : vector<8x8xf32>, vector<8x32xf32>, vector<8x32xf32> -> vector<8x32xf32>
    %608 = arith.addf %570, %607 : vector<8x32xf32>
    %c0_416 = arith.constant 0 : index
    %c0_417 = arith.constant 0 : index
    %609 = vector.load %arg26[%c0_416, %c0_417] : memref<16x32xf32, #tpu.memory_space<vmem>>, vector<8x32xf32>
    tpu.vector_store %arg26[%c0_416, %c0_417], %608 {strides = array<i32>} : memref<16x32xf32, #tpu.memory_space<vmem>>, vector<8x32xf32>,
    %610 = vector.extract_strided_slice %451 {offsets = [8, 0], sizes = [8, 32], strides = [1, 1]} : vector<16x32xf32> to vector<8x32xf32>
    %611 = vector.extract_strided_slice %49 {offsets = [1, 0], sizes = [1, 8], strides = [1, 1]} : vector<2x8xf32> to vector<1x8xf32>
    %612 = vector.shape_cast %611 : vector<1x8xf32> to vector<1x8xf32>
    %613 = vector.broadcast %612 : vector<1x8xf32> to vector<8x8xf32>
    %cst_418 = arith.constant 0.000000e+00 : f32
    %614 = vector.broadcast %cst_418 : f32 to vector<8x32xf32>
    %c4_419 = arith.constant 4 : index
    %c0_420 = arith.constant 0 : index
    %c0_421 = arith.constant 0 : index
    %615 = vector.load %arg7[%c4_419, %c0_420, %c0_421] : memref<8x32x8xf32, #tpu.memory_space<vmem>>, vector<1x32x8xf32>
    %616 = vector.shape_cast %615 : vector<1x32x8xf32> to vector<32x8xf32>
    %cst_422 = arith.constant dense<0.000000e+00> : vector<8x8xf32>
    %617 = tpu.matmul %610, %616, %cst_422 {dimension_numbers = #tpu.dot_dimension_numbers<[1], [0], [0], [1], [0, 0, 1, 1], [], []>} : vector<8x32xf32>, vector<32x8xf32>, vector<8x8xf32> -> vector<8x8xf32>
    %c4_423 = arith.constant 4 : index
    %c0_424 = arith.constant 0 : index
    %c0_425 = arith.constant 0 : index
    %618 = vector.load %arg10[%c4_423, %c0_424, %c0_425] : memref<8x1x8xf32, #tpu.memory_space<vmem>>, vector<1x1x8xf32>
    %619 = vector.shape_cast %618 : vector<1x1x8xf32> to vector<1x8xf32>
    %620 = vector.broadcast %619 : vector<1x8xf32> to vector<8x8xf32>
    %621 = arith.addf %617, %620 : vector<8x8xf32>
    %c4_426 = arith.constant 4 : index
    %c0_427 = arith.constant 0 : index
    %c0_428 = arith.constant 0 : index
    %622 = vector.load %arg8[%c4_426, %c0_427, %c0_428] : memref<8x32x8xf32, #tpu.memory_space<vmem>>, vector<1x32x8xf32>
    %623 = vector.shape_cast %622 : vector<1x32x8xf32> to vector<32x8xf32>
    %cst_429 = arith.constant dense<0.000000e+00> : vector<8x8xf32>
    %624 = tpu.matmul %610, %623, %cst_429 {dimension_numbers = #tpu.dot_dimension_numbers<[1], [0], [0], [1], [0, 0, 1, 1], [], []>} : vector<8x32xf32>, vector<32x8xf32>, vector<8x8xf32> -> vector<8x8xf32>
    %c4_430 = arith.constant 4 : index
    %c0_431 = arith.constant 0 : index
    %c0_432 = arith.constant 0 : index
    %625 = vector.load %arg11[%c4_430, %c0_431, %c0_432] : memref<8x1x8xf32, #tpu.memory_space<vmem>>, vector<1x1x8xf32>
    %626 = vector.shape_cast %625 : vector<1x1x8xf32> to vector<1x8xf32>
    %627 = vector.broadcast %626 : vector<1x8xf32> to vector<8x8xf32>
    %628 = arith.addf %624, %627 : vector<8x8xf32>
    %c4_433 = arith.constant 4 : index
    %c0_434 = arith.constant 0 : index
    %c0_435 = arith.constant 0 : index
    %629 = vector.load %arg9[%c4_433, %c0_434, %c0_435] : memref<8x32x8xf32, #tpu.memory_space<vmem>>, vector<1x32x8xf32>
    %630 = vector.shape_cast %629 : vector<1x32x8xf32> to vector<32x8xf32>
    %cst_436 = arith.constant dense<0.000000e+00> : vector<8x8xf32>
    %631 = tpu.matmul %610, %630, %cst_436 {dimension_numbers = #tpu.dot_dimension_numbers<[1], [0], [0], [1], [0, 0, 1, 1], [], []>} : vector<8x32xf32>, vector<32x8xf32>, vector<8x8xf32> -> vector<8x8xf32>
    %c4_437 = arith.constant 4 : index
    %c0_438 = arith.constant 0 : index
    %c0_439 = arith.constant 0 : index
    %632 = vector.load %arg12[%c4_437, %c0_438, %c0_439] : memref<8x1x8xf32, #tpu.memory_space<vmem>>, vector<1x1x8xf32>
    %633 = vector.shape_cast %632 : vector<1x1x8xf32> to vector<1x8xf32>
    %634 = vector.broadcast %633 : vector<1x8xf32> to vector<8x8xf32>
    %635 = arith.addf %631, %634 : vector<8x8xf32>
    %cst_440 = arith.constant dense<0.000000e+00> : vector<8x8xf32>
    %636 = tpu.matmul %621, %628, %cst_440 {dimension_numbers = #tpu.dot_dimension_numbers<[1], [1], [0], [0], [0, 0, 1, 0], [], []>} : vector<8x8xf32>, vector<8x8xf32>, vector<8x8xf32> -> vector<8x8xf32>
    %637 = arith.addf %636, %613 : vector<8x8xf32>
    %cst_441 = arith.constant dense<0xFF800000> : vector<8xf32>
    %638 = vector.multi_reduction <maximumf>, %637, %cst_441 [1] : vector<8x8xf32> to vector<8xf32>
    %639 = vector.shape_cast %638 : vector<8xf32> to vector<8x1xf32>
    %640 = vector.broadcast %639 : vector<8x1xf32> to vector<8x8xf32>
    %641 = arith.subf %637, %640 : vector<8x8xf32>
    %642 = math.exp %641 : vector<8x8xf32>
    %cst_442 = arith.constant dense<0.000000e+00> : vector<8xf32>
    %643 = vector.multi_reduction <add>, %642, %cst_442 [1] : vector<8x8xf32> to vector<8xf32>
    %644 = vector.shape_cast %643 : vector<8xf32> to vector<8x1xf32>
    %645 = tpu.reciprocal %644 {approx = true} : vector<8x1xf32> -> vector<8x1xf32>
    %646 = vector.broadcast %645 : vector<8x1xf32> to vector<8x8xf32>
    %647 = arith.mulf %642, %646 : vector<8x8xf32>
    %cst_443 = arith.constant dense<0.000000e+00> : vector<8x8xf32>
    %648 = tpu.matmul %647, %635, %cst_443 {dimension_numbers = #tpu.dot_dimension_numbers<[1], [0], [0], [1], [0, 0, 1, 1], [], []>} : vector<8x8xf32>, vector<8x8xf32>, vector<8x8xf32> -> vector<8x8xf32>
    %c4_444 = arith.constant 4 : index
    %c0_445 = arith.constant 0 : index
    %c0_446 = arith.constant 0 : index
    %649 = vector.load %arg13[%c4_444, %c0_445, %c0_446] : memref<8x8x32xf32, #tpu.memory_space<vmem>>, vector<1x8x32xf32>
    %650 = vector.shape_cast %649 : vector<1x8x32xf32> to vector<8x32xf32>
    %cst_447 = arith.constant dense<0.000000e+00> : vector<8x32xf32>
    %651 = tpu.matmul %648, %650, %cst_447 {dimension_numbers = #tpu.dot_dimension_numbers<[1], [0], [0], [1], [0, 0, 1, 1], [], []>} : vector<8x8xf32>, vector<8x32xf32>, vector<8x32xf32> -> vector<8x32xf32>
    %652 = arith.addf %614, %651 : vector<8x32xf32>
    %c5_448 = arith.constant 5 : index
    %c0_449 = arith.constant 0 : index
    %c0_450 = arith.constant 0 : index
    %653 = vector.load %arg7[%c5_448, %c0_449, %c0_450] : memref<8x32x8xf32, #tpu.memory_space<vmem>>, vector<1x32x8xf32>
    %654 = vector.shape_cast %653 : vector<1x32x8xf32> to vector<32x8xf32>
    %cst_451 = arith.constant dense<0.000000e+00> : vector<8x8xf32>
    %655 = tpu.matmul %610, %654, %cst_451 {dimension_numbers = #tpu.dot_dimension_numbers<[1], [0], [0], [1], [0, 0, 1, 1], [], []>} : vector<8x32xf32>, vector<32x8xf32>, vector<8x8xf32> -> vector<8x8xf32>
    %c5_452 = arith.constant 5 : index
    %c0_453 = arith.constant 0 : index
    %c0_454 = arith.constant 0 : index
    %656 = vector.load %arg10[%c5_452, %c0_453, %c0_454] : memref<8x1x8xf32, #tpu.memory_space<vmem>>, vector<1x1x8xf32>
    %657 = vector.shape_cast %656 : vector<1x1x8xf32> to vector<1x8xf32>
    %658 = vector.broadcast %657 : vector<1x8xf32> to vector<8x8xf32>
    %659 = arith.addf %655, %658 : vector<8x8xf32>
    %c5_455 = arith.constant 5 : index
    %c0_456 = arith.constant 0 : index
    %c0_457 = arith.constant 0 : index
    %660 = vector.load %arg8[%c5_455, %c0_456, %c0_457] : memref<8x32x8xf32, #tpu.memory_space<vmem>>, vector<1x32x8xf32>
    %661 = vector.shape_cast %660 : vector<1x32x8xf32> to vector<32x8xf32>
    %cst_458 = arith.constant dense<0.000000e+00> : vector<8x8xf32>
    %662 = tpu.matmul %610, %661, %cst_458 {dimension_numbers = #tpu.dot_dimension_numbers<[1], [0], [0], [1], [0, 0, 1, 1], [], []>} : vector<8x32xf32>, vector<32x8xf32>, vector<8x8xf32> -> vector<8x8xf32>
    %c5_459 = arith.constant 5 : index
    %c0_460 = arith.constant 0 : index
    %c0_461 = arith.constant 0 : index
    %663 = vector.load %arg11[%c5_459, %c0_460, %c0_461] : memref<8x1x8xf32, #tpu.memory_space<vmem>>, vector<1x1x8xf32>
    %664 = vector.shape_cast %663 : vector<1x1x8xf32> to vector<1x8xf32>
    %665 = vector.broadcast %664 : vector<1x8xf32> to vector<8x8xf32>
    %666 = arith.addf %662, %665 : vector<8x8xf32>
    %c5_462 = arith.constant 5 : index
    %c0_463 = arith.constant 0 : index
    %c0_464 = arith.constant 0 : index
    %667 = vector.load %arg9[%c5_462, %c0_463, %c0_464] : memref<8x32x8xf32, #tpu.memory_space<vmem>>, vector<1x32x8xf32>
    %668 = vector.shape_cast %667 : vector<1x32x8xf32> to vector<32x8xf32>
    %cst_465 = arith.constant dense<0.000000e+00> : vector<8x8xf32>
    %669 = tpu.matmul %610, %668, %cst_465 {dimension_numbers = #tpu.dot_dimension_numbers<[1], [0], [0], [1], [0, 0, 1, 1], [], []>} : vector<8x32xf32>, vector<32x8xf32>, vector<8x8xf32> -> vector<8x8xf32>
    %c5_466 = arith.constant 5 : index
    %c0_467 = arith.constant 0 : index
    %c0_468 = arith.constant 0 : index
    %670 = vector.load %arg12[%c5_466, %c0_467, %c0_468] : memref<8x1x8xf32, #tpu.memory_space<vmem>>, vector<1x1x8xf32>
    %671 = vector.shape_cast %670 : vector<1x1x8xf32> to vector<1x8xf32>
    %672 = vector.broadcast %671 : vector<1x8xf32> to vector<8x8xf32>
    %673 = arith.addf %669, %672 : vector<8x8xf32>
    %cst_469 = arith.constant dense<0.000000e+00> : vector<8x8xf32>
    %674 = tpu.matmul %659, %666, %cst_469 {dimension_numbers = #tpu.dot_dimension_numbers<[1], [1], [0], [0], [0, 0, 1, 0], [], []>} : vector<8x8xf32>, vector<8x8xf32>, vector<8x8xf32> -> vector<8x8xf32>
    %675 = arith.addf %674, %613 : vector<8x8xf32>
    %cst_470 = arith.constant dense<0xFF800000> : vector<8xf32>
    %676 = vector.multi_reduction <maximumf>, %675, %cst_470 [1] : vector<8x8xf32> to vector<8xf32>
    %677 = vector.shape_cast %676 : vector<8xf32> to vector<8x1xf32>
    %678 = vector.broadcast %677 : vector<8x1xf32> to vector<8x8xf32>
    %679 = arith.subf %675, %678 : vector<8x8xf32>
    %680 = math.exp %679 : vector<8x8xf32>
    %cst_471 = arith.constant dense<0.000000e+00> : vector<8xf32>
    %681 = vector.multi_reduction <add>, %680, %cst_471 [1] : vector<8x8xf32> to vector<8xf32>
    %682 = vector.shape_cast %681 : vector<8xf32> to vector<8x1xf32>
    %683 = tpu.reciprocal %682 {approx = true} : vector<8x1xf32> -> vector<8x1xf32>
    %684 = vector.broadcast %683 : vector<8x1xf32> to vector<8x8xf32>
    %685 = arith.mulf %680, %684 : vector<8x8xf32>
    %cst_472 = arith.constant dense<0.000000e+00> : vector<8x8xf32>
    %686 = tpu.matmul %685, %673, %cst_472 {dimension_numbers = #tpu.dot_dimension_numbers<[1], [0], [0], [1], [0, 0, 1, 1], [], []>} : vector<8x8xf32>, vector<8x8xf32>, vector<8x8xf32> -> vector<8x8xf32>
    %c5_473 = arith.constant 5 : index
    %c0_474 = arith.constant 0 : index
    %c0_475 = arith.constant 0 : index
    %687 = vector.load %arg13[%c5_473, %c0_474, %c0_475] : memref<8x8x32xf32, #tpu.memory_space<vmem>>, vector<1x8x32xf32>
    %688 = vector.shape_cast %687 : vector<1x8x32xf32> to vector<8x32xf32>
    %cst_476 = arith.constant dense<0.000000e+00> : vector<8x32xf32>
    %689 = tpu.matmul %686, %688, %cst_476 {dimension_numbers = #tpu.dot_dimension_numbers<[1], [0], [0], [1], [0, 0, 1, 1], [], []>} : vector<8x8xf32>, vector<8x32xf32>, vector<8x32xf32> -> vector<8x32xf32>
    %690 = arith.addf %652, %689 : vector<8x32xf32>
    %c6_477 = arith.constant 6 : index
    %c0_478 = arith.constant 0 : index
    %c0_479 = arith.constant 0 : index
    %691 = vector.load %arg7[%c6_477, %c0_478, %c0_479] : memref<8x32x8xf32, #tpu.memory_space<vmem>>, vector<1x32x8xf32>
    %692 = vector.shape_cast %691 : vector<1x32x8xf32> to vector<32x8xf32>
    %cst_480 = arith.constant dense<0.000000e+00> : vector<8x8xf32>
    %693 = tpu.matmul %610, %692, %cst_480 {dimension_numbers = #tpu.dot_dimension_numbers<[1], [0], [0], [1], [0, 0, 1, 1], [], []>} : vector<8x32xf32>, vector<32x8xf32>, vector<8x8xf32> -> vector<8x8xf32>
    %c6_481 = arith.constant 6 : index
    %c0_482 = arith.constant 0 : index
    %c0_483 = arith.constant 0 : index
    %694 = vector.load %arg10[%c6_481, %c0_482, %c0_483] : memref<8x1x8xf32, #tpu.memory_space<vmem>>, vector<1x1x8xf32>
    %695 = vector.shape_cast %694 : vector<1x1x8xf32> to vector<1x8xf32>
    %696 = vector.broadcast %695 : vector<1x8xf32> to vector<8x8xf32>
    %697 = arith.addf %693, %696 : vector<8x8xf32>
    %c6_484 = arith.constant 6 : index
    %c0_485 = arith.constant 0 : index
    %c0_486 = arith.constant 0 : index
    %698 = vector.load %arg8[%c6_484, %c0_485, %c0_486] : memref<8x32x8xf32, #tpu.memory_space<vmem>>, vector<1x32x8xf32>
    %699 = vector.shape_cast %698 : vector<1x32x8xf32> to vector<32x8xf32>
    %cst_487 = arith.constant dense<0.000000e+00> : vector<8x8xf32>
    %700 = tpu.matmul %610, %699, %cst_487 {dimension_numbers = #tpu.dot_dimension_numbers<[1], [0], [0], [1], [0, 0, 1, 1], [], []>} : vector<8x32xf32>, vector<32x8xf32>, vector<8x8xf32> -> vector<8x8xf32>
    %c6_488 = arith.constant 6 : index
    %c0_489 = arith.constant 0 : index
    %c0_490 = arith.constant 0 : index
    %701 = vector.load %arg11[%c6_488, %c0_489, %c0_490] : memref<8x1x8xf32, #tpu.memory_space<vmem>>, vector<1x1x8xf32>
    %702 = vector.shape_cast %701 : vector<1x1x8xf32> to vector<1x8xf32>
    %703 = vector.broadcast %702 : vector<1x8xf32> to vector<8x8xf32>
    %704 = arith.addf %700, %703 : vector<8x8xf32>
    %c6_491 = arith.constant 6 : index
    %c0_492 = arith.constant 0 : index
    %c0_493 = arith.constant 0 : index
    %705 = vector.load %arg9[%c6_491, %c0_492, %c0_493] : memref<8x32x8xf32, #tpu.memory_space<vmem>>, vector<1x32x8xf32>
    %706 = vector.shape_cast %705 : vector<1x32x8xf32> to vector<32x8xf32>
    %cst_494 = arith.constant dense<0.000000e+00> : vector<8x8xf32>
    %707 = tpu.matmul %610, %706, %cst_494 {dimension_numbers = #tpu.dot_dimension_numbers<[1], [0], [0], [1], [0, 0, 1, 1], [], []>} : vector<8x32xf32>, vector<32x8xf32>, vector<8x8xf32> -> vector<8x8xf32>
    %c6_495 = arith.constant 6 : index
    %c0_496 = arith.constant 0 : index
    %c0_497 = arith.constant 0 : index
    %708 = vector.load %arg12[%c6_495, %c0_496, %c0_497] : memref<8x1x8xf32, #tpu.memory_space<vmem>>, vector<1x1x8xf32>
    %709 = vector.shape_cast %708 : vector<1x1x8xf32> to vector<1x8xf32>
    %710 = vector.broadcast %709 : vector<1x8xf32> to vector<8x8xf32>
    %711 = arith.addf %707, %710 : vector<8x8xf32>
    %cst_498 = arith.constant dense<0.000000e+00> : vector<8x8xf32>
    %712 = tpu.matmul %697, %704, %cst_498 {dimension_numbers = #tpu.dot_dimension_numbers<[1], [1], [0], [0], [0, 0, 1, 0], [], []>} : vector<8x8xf32>, vector<8x8xf32>, vector<8x8xf32> -> vector<8x8xf32>
    %713 = arith.addf %712, %613 : vector<8x8xf32>
    %cst_499 = arith.constant dense<0xFF800000> : vector<8xf32>
    %714 = vector.multi_reduction <maximumf>, %713, %cst_499 [1] : vector<8x8xf32> to vector<8xf32>
    %715 = vector.shape_cast %714 : vector<8xf32> to vector<8x1xf32>
    %716 = vector.broadcast %715 : vector<8x1xf32> to vector<8x8xf32>
    %717 = arith.subf %713, %716 : vector<8x8xf32>
    %718 = math.exp %717 : vector<8x8xf32>
    %cst_500 = arith.constant dense<0.000000e+00> : vector<8xf32>
    %719 = vector.multi_reduction <add>, %718, %cst_500 [1] : vector<8x8xf32> to vector<8xf32>
    %720 = vector.shape_cast %719 : vector<8xf32> to vector<8x1xf32>
    %721 = tpu.reciprocal %720 {approx = true} : vector<8x1xf32> -> vector<8x1xf32>
    %722 = vector.broadcast %721 : vector<8x1xf32> to vector<8x8xf32>
    %723 = arith.mulf %718, %722 : vector<8x8xf32>
    %cst_501 = arith.constant dense<0.000000e+00> : vector<8x8xf32>
    %724 = tpu.matmul %723, %711, %cst_501 {dimension_numbers = #tpu.dot_dimension_numbers<[1], [0], [0], [1], [0, 0, 1, 1], [], []>} : vector<8x8xf32>, vector<8x8xf32>, vector<8x8xf32> -> vector<8x8xf32>
    %c6_502 = arith.constant 6 : index
    %c0_503 = arith.constant 0 : index
    %c0_504 = arith.constant 0 : index
    %725 = vector.load %arg13[%c6_502, %c0_503, %c0_504] : memref<8x8x32xf32, #tpu.memory_space<vmem>>, vector<1x8x32xf32>
    %726 = vector.shape_cast %725 : vector<1x8x32xf32> to vector<8x32xf32>
    %cst_505 = arith.constant dense<0.000000e+00> : vector<8x32xf32>
    %727 = tpu.matmul %724, %726, %cst_505 {dimension_numbers = #tpu.dot_dimension_numbers<[1], [0], [0], [1], [0, 0, 1, 1], [], []>} : vector<8x8xf32>, vector<8x32xf32>, vector<8x32xf32> -> vector<8x32xf32>
    %728 = arith.addf %690, %727 : vector<8x32xf32>
    %c7_506 = arith.constant 7 : index
    %c0_507 = arith.constant 0 : index
    %c0_508 = arith.constant 0 : index
    %729 = vector.load %arg7[%c7_506, %c0_507, %c0_508] : memref<8x32x8xf32, #tpu.memory_space<vmem>>, vector<1x32x8xf32>
    %730 = vector.shape_cast %729 : vector<1x32x8xf32> to vector<32x8xf32>
    %cst_509 = arith.constant dense<0.000000e+00> : vector<8x8xf32>
    %731 = tpu.matmul %610, %730, %cst_509 {dimension_numbers = #tpu.dot_dimension_numbers<[1], [0], [0], [1], [0, 0, 1, 1], [], []>} : vector<8x32xf32>, vector<32x8xf32>, vector<8x8xf32> -> vector<8x8xf32>
    %c7_510 = arith.constant 7 : index
    %c0_511 = arith.constant 0 : index
    %c0_512 = arith.constant 0 : index
    %732 = vector.load %arg10[%c7_510, %c0_511, %c0_512] : memref<8x1x8xf32, #tpu.memory_space<vmem>>, vector<1x1x8xf32>
    %733 = vector.shape_cast %732 : vector<1x1x8xf32> to vector<1x8xf32>
    %734 = vector.broadcast %733 : vector<1x8xf32> to vector<8x8xf32>
    %735 = arith.addf %731, %734 : vector<8x8xf32>
    %c7_513 = arith.constant 7 : index
    %c0_514 = arith.constant 0 : index
    %c0_515 = arith.constant 0 : index
    %736 = vector.load %arg8[%c7_513, %c0_514, %c0_515] : memref<8x32x8xf32, #tpu.memory_space<vmem>>, vector<1x32x8xf32>
    %737 = vector.shape_cast %736 : vector<1x32x8xf32> to vector<32x8xf32>
    %cst_516 = arith.constant dense<0.000000e+00> : vector<8x8xf32>
    %738 = tpu.matmul %610, %737, %cst_516 {dimension_numbers = #tpu.dot_dimension_numbers<[1], [0], [0], [1], [0, 0, 1, 1], [], []>} : vector<8x32xf32>, vector<32x8xf32>, vector<8x8xf32> -> vector<8x8xf32>
    %c7_517 = arith.constant 7 : index
    %c0_518 = arith.constant 0 : index
    %c0_519 = arith.constant 0 : index
    %739 = vector.load %arg11[%c7_517, %c0_518, %c0_519] : memref<8x1x8xf32, #tpu.memory_space<vmem>>, vector<1x1x8xf32>
    %740 = vector.shape_cast %739 : vector<1x1x8xf32> to vector<1x8xf32>
    %741 = vector.broadcast %740 : vector<1x8xf32> to vector<8x8xf32>
    %742 = arith.addf %738, %741 : vector<8x8xf32>
    %c7_520 = arith.constant 7 : index
    %c0_521 = arith.constant 0 : index
    %c0_522 = arith.constant 0 : index
    %743 = vector.load %arg9[%c7_520, %c0_521, %c0_522] : memref<8x32x8xf32, #tpu.memory_space<vmem>>, vector<1x32x8xf32>
    %744 = vector.shape_cast %743 : vector<1x32x8xf32> to vector<32x8xf32>
    %cst_523 = arith.constant dense<0.000000e+00> : vector<8x8xf32>
    %745 = tpu.matmul %610, %744, %cst_523 {dimension_numbers = #tpu.dot_dimension_numbers<[1], [0], [0], [1], [0, 0, 1, 1], [], []>} : vector<8x32xf32>, vector<32x8xf32>, vector<8x8xf32> -> vector<8x8xf32>
    %c7_524 = arith.constant 7 : index
    %c0_525 = arith.constant 0 : index
    %c0_526 = arith.constant 0 : index
    %746 = vector.load %arg12[%c7_524, %c0_525, %c0_526] : memref<8x1x8xf32, #tpu.memory_space<vmem>>, vector<1x1x8xf32>
    %747 = vector.shape_cast %746 : vector<1x1x8xf32> to vector<1x8xf32>
    %748 = vector.broadcast %747 : vector<1x8xf32> to vector<8x8xf32>
    %749 = arith.addf %745, %748 : vector<8x8xf32>
    %cst_527 = arith.constant dense<0.000000e+00> : vector<8x8xf32>
    %750 = tpu.matmul %735, %742, %cst_527 {dimension_numbers = #tpu.dot_dimension_numbers<[1], [1], [0], [0], [0, 0, 1, 0], [], []>} : vector<8x8xf32>, vector<8x8xf32>, vector<8x8xf32> -> vector<8x8xf32>
    %751 = arith.addf %750, %613 : vector<8x8xf32>
    %cst_528 = arith.constant dense<0xFF800000> : vector<8xf32>
    %752 = vector.multi_reduction <maximumf>, %751, %cst_528 [1] : vector<8x8xf32> to vector<8xf32>
    %753 = vector.shape_cast %752 : vector<8xf32> to vector<8x1xf32>
    %754 = vector.broadcast %753 : vector<8x1xf32> to vector<8x8xf32>
    %755 = arith.subf %751, %754 : vector<8x8xf32>
    %756 = math.exp %755 : vector<8x8xf32>
    %cst_529 = arith.constant dense<0.000000e+00> : vector<8xf32>
    %757 = vector.multi_reduction <add>, %756, %cst_529 [1] : vector<8x8xf32> to vector<8xf32>
    %758 = vector.shape_cast %757 : vector<8xf32> to vector<8x1xf32>
    %759 = tpu.reciprocal %758 {approx = true} : vector<8x1xf32> -> vector<8x1xf32>
    %760 = vector.broadcast %759 : vector<8x1xf32> to vector<8x8xf32>
    %761 = arith.mulf %756, %760 : vector<8x8xf32>
    %cst_530 = arith.constant dense<0.000000e+00> : vector<8x8xf32>
    %762 = tpu.matmul %761, %749, %cst_530 {dimension_numbers = #tpu.dot_dimension_numbers<[1], [0], [0], [1], [0, 0, 1, 1], [], []>} : vector<8x8xf32>, vector<8x8xf32>, vector<8x8xf32> -> vector<8x8xf32>
    %c7_531 = arith.constant 7 : index
    %c0_532 = arith.constant 0 : index
    %c0_533 = arith.constant 0 : index
    %763 = vector.load %arg13[%c7_531, %c0_532, %c0_533] : memref<8x8x32xf32, #tpu.memory_space<vmem>>, vector<1x8x32xf32>
    %764 = vector.shape_cast %763 : vector<1x8x32xf32> to vector<8x32xf32>
    %cst_534 = arith.constant dense<0.000000e+00> : vector<8x32xf32>
    %765 = tpu.matmul %762, %764, %cst_534 {dimension_numbers = #tpu.dot_dimension_numbers<[1], [0], [0], [1], [0, 0, 1, 1], [], []>} : vector<8x8xf32>, vector<8x32xf32>, vector<8x32xf32> -> vector<8x32xf32>
    %766 = arith.addf %728, %765 : vector<8x32xf32>
    %c8_535 = arith.constant 8 : index
    %c0_536 = arith.constant 0 : index
    %767 = vector.load %arg26[%c8_535, %c0_536] : memref<16x32xf32, #tpu.memory_space<vmem>>, vector<8x32xf32>
    tpu.vector_store %arg26[%c8_535, %c0_536], %766 {strides = array<i32>} : memref<16x32xf32, #tpu.memory_space<vmem>>, vector<8x32xf32>,
    %c0_537 = arith.constant 0 : index
    %c0_538 = arith.constant 0 : index
    %768 = vector.load %arg26[%c0_537, %c0_538] : memref<16x32xf32, #tpu.memory_space<vmem>>, vector<16x32xf32>
    %769 = arith.addf %451, %768 : vector<16x32xf32>
    %c1_539 = arith.constant 1 : index
    %c0_540 = arith.constant 0 : index
    %c0_541 = arith.constant 0 : index
    %770 = vector.load %arg14[%c1_539, %c0_540, %c0_541] : memref<2x1x32xf32, #tpu.memory_space<vmem>>, vector<1x1x32xf32>
    %771 = vector.shape_cast %770 : vector<1x1x32xf32> to vector<1x32xf32>
    %772 = vector.broadcast %771 : vector<1x32xf32> to vector<16x32xf32>
    %773 = arith.addf %769, %772 : vector<16x32xf32>
    %c1_542 = arith.constant 1 : index
    %c0_543 = arith.constant 0 : index
    %c0_544 = arith.constant 0 : index
    %774 = vector.load %arg15[%c1_542, %c0_543, %c0_544] : memref<2x1x32xf32, #tpu.memory_space<vmem>>, vector<1x1x32xf32>
    %775 = vector.shape_cast %774 : vector<1x1x32xf32> to vector<1x32xf32>
    %c1_545 = arith.constant 1 : index
    %c0_546 = arith.constant 0 : index
    %c0_547 = arith.constant 0 : index
    %776 = vector.load %arg16[%c1_545, %c0_546, %c0_547] : memref<2x1x32xf32, #tpu.memory_space<vmem>>, vector<1x1x32xf32>
    %777 = vector.shape_cast %776 : vector<1x1x32xf32> to vector<1x32xf32>
    %cst_548 = arith.constant dense<0.000000e+00> : vector<16xf32>
    %778 = vector.multi_reduction <add>, %773, %cst_548 [1] : vector<16x32xf32> to vector<16xf32>
    %779 = vector.shape_cast %778 : vector<16xf32> to vector<16x1xf32>
    %cst_549 = arith.constant 3.200000e+01 : f32
    %780 = vector.broadcast %cst_549 : f32 to vector<16x1xf32>
    %781 = arith.divf %779, %780 : vector<16x1xf32>
    %782 = vector.broadcast %781 : vector<16x1xf32> to vector<16x32xf32>
    %783 = arith.subf %773, %782 : vector<16x32xf32>
    %784 = arith.mulf %783, %783 : vector<16x32xf32>
    %cst_550 = arith.constant dense<0.000000e+00> : vector<16xf32>
    %785 = vector.multi_reduction <add>, %784, %cst_550 [1] : vector<16x32xf32> to vector<16xf32>
    %786 = vector.shape_cast %785 : vector<16xf32> to vector<16x1xf32>
    %cst_551 = arith.constant 3.200000e+01 : f32
    %787 = vector.broadcast %cst_551 : f32 to vector<16x1xf32>
    %788 = arith.divf %786, %787 : vector<16x1xf32>
    %789 = vector.broadcast %781 : vector<16x1xf32> to vector<16x32xf32>
    %790 = arith.subf %773, %789 : vector<16x32xf32>
    %cst_552 = arith.constant 9.99999996E-13 : f32
    %791 = vector.broadcast %cst_552 : f32 to vector<16x1xf32>
    %792 = arith.addf %788, %791 : vector<16x1xf32>
    %793 = math.rsqrt %792 : vector<16x1xf32>
    %794 = vector.broadcast %793 : vector<16x1xf32> to vector<16x32xf32>
    %795 = arith.mulf %790, %794 : vector<16x32xf32>
    %796 = vector.broadcast %775 : vector<1x32xf32> to vector<16x32xf32>
    %797 = arith.mulf %795, %796 : vector<16x32xf32>
    %798 = vector.broadcast %777 : vector<1x32xf32> to vector<16x32xf32>
    %799 = arith.addf %797, %798 : vector<16x32xf32>
    %c1_553 = arith.constant 1 : index
    %c0_554 = arith.constant 0 : index
    %c0_555 = arith.constant 0 : index
    %800 = vector.load %arg17[%c1_553, %c0_554, %c0_555] : memref<2x32x64xf32, #tpu.memory_space<vmem>>, vector<1x32x64xf32>
    %801 = vector.shape_cast %800 : vector<1x32x64xf32> to vector<32x64xf32>
    %cst_556 = arith.constant dense<0.000000e+00> : vector<16x64xf32>
    %802 = tpu.matmul %799, %801, %cst_556 {dimension_numbers = #tpu.dot_dimension_numbers<[1], [0], [0], [1], [0, 0, 1, 1], [], []>} : vector<16x32xf32>, vector<32x64xf32>, vector<16x64xf32> -> vector<16x64xf32>
    %c1_557 = arith.constant 1 : index
    %c0_558 = arith.constant 0 : index
    %c0_559 = arith.constant 0 : index
    %803 = vector.load %arg18[%c1_557, %c0_558, %c0_559] : memref<2x1x64xf32, #tpu.memory_space<vmem>>, vector<1x1x64xf32>
    %804 = vector.shape_cast %803 : vector<1x1x64xf32> to vector<1x64xf32>
    %805 = vector.broadcast %804 : vector<1x64xf32> to vector<16x64xf32>
    %806 = arith.addf %802, %805 : vector<16x64xf32>
    %cst_560 = arith.constant 5.000000e-01 : f32
    %807 = vector.broadcast %cst_560 : f32 to vector<16x64xf32>
    %808 = arith.mulf %807, %806 : vector<16x64xf32>
    %cst_561 = arith.constant 4.471500e-02 : f32
    %809 = vector.broadcast %cst_561 : f32 to vector<16x64xf32>
    %810 = arith.mulf %809, %806 : vector<16x64xf32>
    %811 = arith.mulf %810, %806 : vector<16x64xf32>
    %812 = arith.mulf %811, %806 : vector<16x64xf32>
    %813 = arith.addf %806, %812 : vector<16x64xf32>
    %cst_562 = arith.constant 0.797884583 : f32
    %814 = vector.broadcast %cst_562 : f32 to vector<16x64xf32>
    %815 = arith.mulf %814, %813 : vector<16x64xf32>
    %816 = math.tanh %815 : vector<16x64xf32>
    %cst_563 = arith.constant 1.000000e+00 : f32
    %817 = vector.broadcast %cst_563 : f32 to vector<16x64xf32>
    %818 = arith.addf %817, %816 : vector<16x64xf32>
    %819 = arith.mulf %808, %818 : vector<16x64xf32>
    %c1_564 = arith.constant 1 : index
    %c0_565 = arith.constant 0 : index
    %c0_566 = arith.constant 0 : index
    %820 = vector.load %arg19[%c1_564, %c0_565, %c0_566] : memref<2x64x32xf32, #tpu.memory_space<vmem>>, vector<1x64x32xf32>
    %821 = vector.shape_cast %820 : vector<1x64x32xf32> to vector<64x32xf32>
    %cst_567 = arith.constant dense<0.000000e+00> : vector<16x32xf32>
    %822 = tpu.matmul %819, %821, %cst_567 {dimension_numbers = #tpu.dot_dimension_numbers<[1], [0], [0], [1], [0, 0, 1, 1], [], []>} : vector<16x64xf32>, vector<64x32xf32>, vector<16x32xf32> -> vector<16x32xf32>
    %c1_568 = arith.constant 1 : index
    %c0_569 = arith.constant 0 : index
    %c0_570 = arith.constant 0 : index
    %823 = vector.load %arg20[%c1_568, %c0_569, %c0_570] : memref<2x1x32xf32, #tpu.memory_space<vmem>>, vector<1x1x32xf32>
    %824 = vector.shape_cast %823 : vector<1x1x32xf32> to vector<1x32xf32>
    %825 = vector.broadcast %824 : vector<1x32xf32> to vector<16x32xf32>
    %826 = arith.addf %822, %825 : vector<16x32xf32>
    %827 = arith.addf %799, %826 : vector<16x32xf32>
    %c1_571 = arith.constant 1 : index
    %c0_572 = arith.constant 0 : index
    %c0_573 = arith.constant 0 : index
    %828 = vector.load %arg21[%c1_571, %c0_572, %c0_573] : memref<2x1x32xf32, #tpu.memory_space<vmem>>, vector<1x1x32xf32>
    %829 = vector.shape_cast %828 : vector<1x1x32xf32> to vector<1x32xf32>
    %c1_574 = arith.constant 1 : index
    %c0_575 = arith.constant 0 : index
    %c0_576 = arith.constant 0 : index
    %830 = vector.load %arg22[%c1_574, %c0_575, %c0_576] : memref<2x1x32xf32, #tpu.memory_space<vmem>>, vector<1x1x32xf32>
    %831 = vector.shape_cast %830 : vector<1x1x32xf32> to vector<1x32xf32>
    %cst_577 = arith.constant dense<0.000000e+00> : vector<16xf32>
    %832 = vector.multi_reduction <add>, %827, %cst_577 [1] : vector<16x32xf32> to vector<16xf32>
    %833 = vector.shape_cast %832 : vector<16xf32> to vector<16x1xf32>
    %cst_578 = arith.constant 3.200000e+01 : f32
    %834 = vector.broadcast %cst_578 : f32 to vector<16x1xf32>
    %835 = arith.divf %833, %834 : vector<16x1xf32>
    %836 = vector.broadcast %835 : vector<16x1xf32> to vector<16x32xf32>
    %837 = arith.subf %827, %836 : vector<16x32xf32>
    %838 = arith.mulf %837, %837 : vector<16x32xf32>
    %cst_579 = arith.constant dense<0.000000e+00> : vector<16xf32>
    %839 = vector.multi_reduction <add>, %838, %cst_579 [1] : vector<16x32xf32> to vector<16xf32>
    %840 = vector.shape_cast %839 : vector<16xf32> to vector<16x1xf32>
    %cst_580 = arith.constant 3.200000e+01 : f32
    %841 = vector.broadcast %cst_580 : f32 to vector<16x1xf32>
    %842 = arith.divf %840, %841 : vector<16x1xf32>
    %843 = vector.broadcast %835 : vector<16x1xf32> to vector<16x32xf32>
    %844 = arith.subf %827, %843 : vector<16x32xf32>
    %cst_581 = arith.constant 9.99999996E-13 : f32
    %845 = vector.broadcast %cst_581 : f32 to vector<16x1xf32>
    %846 = arith.addf %842, %845 : vector<16x1xf32>
    %847 = math.rsqrt %846 : vector<16x1xf32>
    %848 = vector.broadcast %847 : vector<16x1xf32> to vector<16x32xf32>
    %849 = arith.mulf %844, %848 : vector<16x32xf32>
    %850 = vector.broadcast %829 : vector<1x32xf32> to vector<16x32xf32>
    %851 = arith.mulf %849, %850 : vector<16x32xf32>
    %852 = vector.broadcast %831 : vector<1x32xf32> to vector<16x32xf32>
    %853 = arith.addf %851, %852 : vector<16x32xf32>
    %c0_582 = arith.constant 0 : index
    %c0_583 = arith.constant 0 : index
    %854 = vector.load %arg23[%c0_582, %c0_583] : memref<32x128xf32, #tpu.memory_space<vmem>>, vector<32x128xf32>
    %cst_584 = arith.constant dense<0.000000e+00> : vector<16x128xf32>
    %855 = tpu.matmul %853, %854, %cst_584 {dimension_numbers = #tpu.dot_dimension_numbers<[1], [0], [0], [1], [0, 0, 1, 1], [], []>} : vector<16x32xf32>, vector<32x128xf32>, vector<16x128xf32> -> vector<16x128xf32>
    %c0_585 = arith.constant 0 : index
    %c0_586 = arith.constant 0 : index
    %856 = vector.load %arg24[%c0_585, %c0_586] : memref<1x128xf32, #tpu.memory_space<vmem>>, vector<1x128xf32>
    %857 = vector.broadcast %856 : vector<1x128xf32> to vector<16x128xf32>
    %858 = arith.addf %855, %857 : vector<16x128xf32>
    %cst_587 = arith.constant dense<0xFF800000> : vector<16xf32>
    %859 = vector.multi_reduction <maximumf>, %858, %cst_587 [1] : vector<16x128xf32> to vector<16xf32>
    %860 = vector.shape_cast %859 : vector<16xf32> to vector<16x1xf32>
    %861 = vector.broadcast %860 : vector<16x1xf32> to vector<16x128xf32>
    %862 = arith.subf %858, %861 : vector<16x128xf32>
    %863 = math.exp %862 : vector<16x128xf32>
    %cst_588 = arith.constant dense<0.000000e+00> : vector<16xf32>
    %864 = vector.multi_reduction <add>, %863, %cst_588 [1] : vector<16x128xf32> to vector<16xf32>
    %865 = vector.shape_cast %864 : vector<16xf32> to vector<16x1xf32>
    %866 = math.log %865 : vector<16x1xf32>
    %867 = vector.broadcast %866 : vector<16x1xf32> to vector<16x128xf32>
    %868 = arith.subf %862, %867 : vector<16x128xf32>
    %c0_589 = arith.constant 0 : index
    %c0_590 = arith.constant 0 : index
    %869 = vector.load %arg25[%c0_589, %c0_590] : memref<16x128xf32, #tpu.memory_space<vmem>>, vector<16x128xf32>
    tpu.vector_store %arg25[%c0_589, %c0_590], %868 {strides = array<i32>} : memref<16x128xf32, #tpu.memory_space<vmem>>, vector<16x128xf32>,
    return
  }
  func.func @transform_0(%arg0: i32) -> (i32, i32) {
    %c0_i32 = arith.constant 0 : i32
    %c0_i32_0 = arith.constant 0 : i32
    %c0_i32_1 = arith.constant 0 : i32
    return %c0_i32, %c0_i32_0 : i32, i32
  }
  func.func @transform_1(%arg0: i32) -> (i32, i32) {
    %c0_i32 = arith.constant 0 : i32
    %c0_i32_0 = arith.constant 0 : i32
    %c0_i32_1 = arith.constant 0 : i32
    return %c0_i32, %c0_i32_0 : i32, i32
  }
  func.func @transform_2(%arg0: i32) -> (i32, i32) {
    %c0_i32 = arith.constant 0 : i32
    %c0_i32_0 = arith.constant 0 : i32
    %c0_i32_1 = arith.constant 0 : i32
    return %c0_i32, %c0_i32_0 : i32, i32
  }
  func.func @transform_3(%arg0: i32) -> (i32, i32) {
    %c0_i32 = arith.constant 0 : i32
    %c0_i32_0 = arith.constant 0 : i32
    %c0_i32_1 = arith.constant 0 : i32
    return %c0_i32, %c0_i32_0 : i32, i32
  }
  func.func @transform_4(%arg0: i32) -> (i32, i32) {
    %c0_i32 = arith.constant 0 : i32
    %c0_i32_0 = arith.constant 0 : i32
    %c0_i32_1 = arith.constant 0 : i32
    return %c0_i32, %c0_i32_0 : i32, i32
  }
  func.func @transform_5(%arg0: i32) -> (i32, i32) {
    %c0_i32 = arith.constant 0 : i32
    %c0_i32_0 = arith.constant 0 : i32
    %c0_i32_1 = arith.constant 0 : i32
    return %c0_i32, %c0_i32_0 : i32, i32
  }
  func.func @transform_6(%arg0: i32) -> (i32, i32, i32) {
    %c0_i32 = arith.constant 0 : i32
    %c0_i32_0 = arith.constant 0 : i32
    %c0_i32_1 = arith.constant 0 : i32
    %c0_i32_2 = arith.constant 0 : i32
    return %c0_i32, %c0_i32_0, %c0_i32_1 : i32, i32, i32
  }
  func.func @transform_7(%arg0: i32) -> (i32, i32, i32) {
    %c0_i32 = arith.constant 0 : i32
    %c0_i32_0 = arith.constant 0 : i32
    %c0_i32_1 = arith.constant 0 : i32
    %c0_i32_2 = arith.constant 0 : i32
    return %c0_i32, %c0_i32_0, %c0_i32_1 : i32, i32, i32
  }
  func.func @transform_8(%arg0: i32) -> (i32, i32, i32) {
    %c0_i32 = arith.constant 0 : i32
    %c0_i32_0 = arith.constant 0 : i32
    %c0_i32_1 = arith.constant 0 : i32
    %c0_i32_2 = arith.constant 0 : i32
    return %c0_i32, %c0_i32_0, %c0_i32_1 : i32, i32, i32
  }
  func.func @transform_9(%arg0: i32) -> (i32, i32, i32) {
    %c0_i32 = arith.constant 0 : i32
    %c0_i32_0 = arith.constant 0 : i32
    %c0_i32_1 = arith.constant 0 : i32
    %c0_i32_2 = arith.constant 0 : i32
    return %c0_i32, %c0_i32_0, %c0_i32_1 : i32, i32, i32
  }
  func.func @transform_10(%arg0: i32) -> (i32, i32, i32) {
    %c0_i32 = arith.constant 0 : i32
    %c0_i32_0 = arith.constant 0 : i32
    %c0_i32_1 = arith.constant 0 : i32
    %c0_i32_2 = arith.constant 0 : i32
    return %c0_i32, %c0_i32_0, %c0_i32_1 : i32, i32, i32
  }
  func.func @transform_11(%arg0: i32) -> (i32, i32, i32) {
    %c0_i32 = arith.constant 0 : i32
    %c0_i32_0 = arith.constant 0 : i32
    %c0_i32_1 = arith.constant 0 : i32
    %c0_i32_2 = arith.constant 0 : i32
    return %c0_i32, %c0_i32_0, %c0_i32_1 : i32, i32, i32
  }
  func.func @transform_12(%arg0: i32) -> (i32, i32, i32) {
    %c0_i32 = arith.constant 0 : i32
    %c0_i32_0 = arith.constant 0 : i32
    %c0_i32_1 = arith.constant 0 : i32
    %c0_i32_2 = arith.constant 0 : i32
    return %c0_i32, %c0_i32_0, %c0_i32_1 : i32, i32, i32
  }
  func.func @transform_13(%arg0: i32) -> (i32, i32, i32) {
    %c0_i32 = arith.constant 0 : i32
    %c0_i32_0 = arith.constant 0 : i32
    %c0_i32_1 = arith.constant 0 : i32
    %c0_i32_2 = arith.constant 0 : i32
    return %c0_i32, %c0_i32_0, %c0_i32_1 : i32, i32, i32
  }
  func.func @transform_14(%arg0: i32) -> (i32, i32, i32) {
    %c0_i32 = arith.constant 0 : i32
    %c0_i32_0 = arith.constant 0 : i32
    %c0_i32_1 = arith.constant 0 : i32
    %c0_i32_2 = arith.constant 0 : i32
    return %c0_i32, %c0_i32_0, %c0_i32_1 : i32, i32, i32
  }
  func.func @transform_15(%arg0: i32) -> (i32, i32, i32) {
    %c0_i32 = arith.constant 0 : i32
    %c0_i32_0 = arith.constant 0 : i32
    %c0_i32_1 = arith.constant 0 : i32
    %c0_i32_2 = arith.constant 0 : i32
    return %c0_i32, %c0_i32_0, %c0_i32_1 : i32, i32, i32
  }
  func.func @transform_16(%arg0: i32) -> (i32, i32, i32) {
    %c0_i32 = arith.constant 0 : i32
    %c0_i32_0 = arith.constant 0 : i32
    %c0_i32_1 = arith.constant 0 : i32
    %c0_i32_2 = arith.constant 0 : i32
    return %c0_i32, %c0_i32_0, %c0_i32_1 : i32, i32, i32
  }
  func.func @transform_17(%arg0: i32) -> (i32, i32, i32) {
    %c0_i32 = arith.constant 0 : i32
    %c0_i32_0 = arith.constant 0 : i32
    %c0_i32_1 = arith.constant 0 : i32
    %c0_i32_2 = arith.constant 0 : i32
    return %c0_i32, %c0_i32_0, %c0_i32_1 : i32, i32, i32
  }
  func.func @transform_18(%arg0: i32) -> (i32, i32, i32) {
    %c0_i32 = arith.constant 0 : i32
    %c0_i32_0 = arith.constant 0 : i32
    %c0_i32_1 = arith.constant 0 : i32
    %c0_i32_2 = arith.constant 0 : i32
    return %c0_i32, %c0_i32_0, %c0_i32_1 : i32, i32, i32
  }
  func.func @transform_19(%arg0: i32) -> (i32, i32, i32) {
    %c0_i32 = arith.constant 0 : i32
    %c0_i32_0 = arith.constant 0 : i32
    %c0_i32_1 = arith.constant 0 : i32
    %c0_i32_2 = arith.constant 0 : i32
    return %c0_i32, %c0_i32_0, %c0_i32_1 : i32, i32, i32
  }
  func.func @transform_20(%arg0: i32) -> (i32, i32, i32) {
    %c0_i32 = arith.constant 0 : i32
    %c0_i32_0 = arith.constant 0 : i32
    %c0_i32_1 = arith.constant 0 : i32
    %c0_i32_2 = arith.constant 0 : i32
    return %c0_i32, %c0_i32_0, %c0_i32_1 : i32, i32, i32
  }
  func.func @transform_21(%arg0: i32) -> (i32, i32, i32) {
    %c0_i32 = arith.constant 0 : i32
    %c0_i32_0 = arith.constant 0 : i32
    %c0_i32_1 = arith.constant 0 : i32
    %c0_i32_2 = arith.constant 0 : i32
    return %c0_i32, %c0_i32_0, %c0_i32_1 : i32, i32, i32
  }
  func.func @transform_22(%arg0: i32) -> (i32, i32) {
    %c0_i32 = arith.constant 0 : i32
    %c0_i32_0 = arith.constant 0 : i32
    %c0_i32_1 = arith.constant 0 : i32
    return %c0_i32, %c0_i32_0 : i32, i32
  }
  func.func @transform_23(%arg0: i32) -> (i32, i32) {
    %c0_i32 = arith.constant 0 : i32
    %c0_i32_0 = arith.constant 0 : i32
    %c0_i32_1 = arith.constant 0 : i32
    return %c0_i32, %c0_i32_0 : i32, i32
  }
  func.func @transform_24(%arg0: i32) -> (i32, i32) {
    %c0_i32 = arith.constant 0 : i32
    %c0_i32_0 = arith.constant 0 : i32
    %c0_i32_1 = arith.constant 0 : i32
    return %c0_i32, %c0_i32_0 : i32, i32
  }
}

</mosaic_0001>

<llo_original>
// kernel: bert_ner_forward.1
$region0: #{bert_ner_forward.1}
  #allocation0 [shape = 'u32[]', space=smem, size = 0x4, offset = 0x4, fixed_abs, tag = 'smem constant byte address 0x4 - core index']
  #allocation1 [shape = 'u32[72,128]{1,0:T(1,128)}', space=vmem, size = 0x9000, scoped, tag = 'internal scratch']
  #allocation2 [shape = 'f32[16,32]{1,0:T(8,128)}', space=vmem, size = 0x2000, scoped, tag = 'scratch operand']
  %s0 = inlined_call_operand.vmem [shape: s32[16,1], index: 0, kind: input, shape index: {}]
  %s1 = inlined_call_operand.vmem [shape: s32[2,8], index: 1, kind: input, shape index: {}]
  %s2 = inlined_call_operand.vmem [shape: f32[128,32], index: 2, kind: input, shape index: {}]
  %s3 = inlined_call_operand.vmem [shape: f32[16,32], index: 3, kind: input, shape index: {}]
  %s4 = inlined_call_operand.vmem [shape: f32[1,32], index: 4, kind: input, shape index: {}]
  %s5 = inlined_call_operand.vmem [shape: f32[1,32], index: 5, kind: input, shape index: {}]
  %s6 = inlined_call_operand.vmem [shape: f32[8,32,8], index: 6, kind: input, shape index: {}]
  %s7 = inlined_call_operand.vmem [shape: f32[8,32,8], index: 7, kind: input, shape index: {}]
  %s8 = inlined_call_operand.vmem [shape: f32[8,32,8], index: 8, kind: input, shape index: {}]
  %s9 = inlined_call_operand.vmem [shape: f32[8,1,8], index: 9, kind: input, shape index: {}]
  %s10 = inlined_call_operand.vmem [shape: f32[8,1,8], index: 10, kind: input, shape index: {}]
  %s11 = inlined_call_operand.vmem [shape: f32[8,1,8], index: 11, kind: input, shape index: {}]
  %s12 = inlined_call_operand.vmem [shape: f32[8,8,32], index: 12, kind: input, shape index: {}]
  %s13 = inlined_call_operand.vmem [shape: f32[2,1,32], index: 13, kind: input, shape index: {}]
  %s14 = inlined_call_operand.vmem [shape: f32[2,1,32], index: 14, kind: input, shape index: {}]
  %s15 = inlined_call_operand.vmem [shape: f32[2,1,32], index: 15, kind: input, shape index: {}]
  %s16 = inlined_call_operand.vmem [shape: f32[2,32,64], index: 16, kind: input, shape index: {}]
  %s17 = inlined_call_operand.vmem [shape: f32[2,1,64], index: 17, kind: input, shape index: {}]
  %s18 = inlined_call_operand.vmem [shape: f32[2,64,32], index: 18, kind: input, shape index: {}]
  %s19 = inlined_call_operand.vmem [shape: f32[2,1,32], index: 19, kind: input, shape index: {}]
  %s20 = inlined_call_operand.vmem [shape: f32[2,1,32], index: 20, kind: input, shape index: {}]
  %s21 = inlined_call_operand.vmem [shape: f32[2,1,32], index: 21, kind: input, shape index: {}]
  %s22 = inlined_call_operand.vmem [shape: f32[32,128], index: 22, kind: input, shape index: {}]
  %s23 = inlined_call_operand.vmem [shape: f32[1,128], index: 23, kind: input, shape index: {}]
  %s24 = inlined_call_operand.hbm [shape: f32[16,128], index: 24, kind: output, shape index: {}]
  %s25 = sld [smem:[#allocation0]]
  $region106: #{bert_ner_forward.1} parent=0
    _
  %s27 = ssub.s32 1, %s25
  %s28 = scalar_select 0, %s27, %s25
  $region1: #{bert_ner_forward.1} parent=0
    #allocation3 [shape = 'u8[8192]{0}', space=vmem, size = 0x2000, scoped, tag = 'output window, operand 0, single buffered']
    #allocation4 [shape = 's32[1]{0}', space=sflag, size = 0x4, scoped, tag = 'scoped memory for bert_ner_forward.1']
    %29 = vsyncpa [#allocation4], 0
    // Predicated region
    $region2: #{bert_ner_forward.1} parent=1 // pred_check
      _
    $region3: #{bert_ner_forward.1} parent=1 // pred_check_branch
      %31 = sbr.rel (0) target = $region5
    $region4: #{bert_ner_forward.1} parent=1 // pred_region
      _
    $region5: #{bert_ner_forward.1} parent=1 // pred_fallthru
      _
    // Predicated region
    $region6: #{bert_ner_forward.1} parent=1 // pred_check
      _
    $region7: #{bert_ner_forward.1} parent=1 // pred_check_branch
      %33 = sbr.rel (0) target = $region9
    $region8: #{bert_ner_forward.1} parent=1 // pred_region
      _
    $region9: #{bert_ner_forward.1} parent=1 // pred_fallthru
      _
    // Predicated region
    $region10: #{bert_ner_forward.1} parent=1 // pred_check
      _
    $region11: #{bert_ner_forward.1} parent=1 // pred_check_branch
      %35 = sbr.rel (0) target = $region13
    $region12: #{bert_ner_forward.1} parent=1 // pred_region
      _
    $region13: #{bert_ner_forward.1} parent=1 // pred_fallthru
      _
    // Predicated region
    $region14: #{bert_ner_forward.1} parent=1 // pred_check
      _
    $region15: #{bert_ner_forward.1} parent=1 // pred_check_branch
      %37 = sbr.rel (0) target = $region17
    $region16: #{bert_ner_forward.1} parent=1 // pred_region
      _
    $region17: #{bert_ner_forward.1} parent=1 // pred_fallthru
      _
    // Predicated region
    $region18: #{bert_ner_forward.1} parent=1 // pred_check
      _
    $region19: #{bert_ner_forward.1} parent=1 // pred_check_branch
      %39 = sbr.rel (0) target = $region21
    $region20: #{bert_ner_forward.1} parent=1 // pred_region
      _
    $region21: #{bert_ner_forward.1} parent=1 // pred_fallthru
      _
    // Predicated region
    $region22: #{bert_ner_forward.1} parent=1 // pred_check
      _
    $region23: #{bert_ner_forward.1} parent=1 // pred_check_branch
      %41 = sbr.rel (0) target = $region25
    $region24: #{bert_ner_forward.1} parent=1 // pred_region
      _
    $region25: #{bert_ner_forward.1} parent=1 // pred_fallthru
      _
    // Predicated region
    $region26: #{bert_ner_forward.1} parent=1 // pred_check
      _
    $region27: #{bert_ner_forward.1} parent=1 // pred_check_branch
      %43 = sbr.rel (0) target = $region29
    $region28: #{bert_ner_forward.1} parent=1 // pred_region
      _
    $region29: #{bert_ner_forward.1} parent=1 // pred_fallthru
      _
    // Predicated region
    $region30: #{bert_ner_forward.1} parent=1 // pred_check
      _
    $region31: #{bert_ner_forward.1} parent=1 // pred_check_branch
      %45 = sbr.rel (0) target = $region33
    $region32: #{bert_ner_forward.1} parent=1 // pred_region
      _
    $region33: #{bert_ner_forward.1} parent=1 // pred_fallthru
      _
    // Predicated region
    $region34: #{bert_ner_forward.1} parent=1 // pred_check
      _
    $region35: #{bert_ner_forward.1} parent=1 // pred_check_branch
      %47 = sbr.rel (0) target = $region37
    $region36: #{bert_ner_forward.1} parent=1 // pred_region
      _
    $region37: #{bert_ner_forward.1} parent=1 // pred_fallthru
      _
    // Predicated region
    $region38: #{bert_ner_forward.1} parent=1 // pred_check
      _
    $region39: #{bert_ner_forward.1} parent=1 // pred_check_branch
      %49 = sbr.rel (0) target = $region41
    $region40: #{bert_ner_forward.1} parent=1 // pred_region
      _
    $region41: #{bert_ner_forward.1} parent=1 // pred_fallthru
      _
    // Predicated region
    $region42: #{bert_ner_forward.1} parent=1 // pred_check
      _
    $region43: #{bert_ner_forward.1} parent=1 // pred_check_branch
      %51 = sbr.rel (0) target = $region45
    $region44: #{bert_ner_forward.1} parent=1 // pred_region
      _
    $region45: #{bert_ner_forward.1} parent=1 // pred_fallthru
      _
    // Predicated region
    $region46: #{bert_ner_forward.1} parent=1 // pred_check
      _
    $region47: #{bert_ner_forward.1} parent=1 // pred_check_branch
      %53 = sbr.rel (0) target = $region49
    $region48: #{bert_ner_forward.1} parent=1 // pred_region
      _
    $region49: #{bert_ner_forward.1} parent=1 // pred_fallthru
      _
    // Predicated region
    $region50: #{bert_ner_forward.1} parent=1 // pred_check
      _
    $region51: #{bert_ner_forward.1} parent=1 // pred_check_branch
      %55 = sbr.rel (0) target = $region53
    $region52: #{bert_ner_forward.1} parent=1 // pred_region
      _
    $region53: #{bert_ner_forward.1} parent=1 // pred_fallthru
      _
    // Predicated region
    $region54: #{bert_ner_forward.1} parent=1 // pred_check
      _
    $region55: #{bert_ner_forward.1} parent=1 // pred_check_branch
      %57 = sbr.rel (0) target = $region57
    $region56: #{bert_ner_forward.1} parent=1 // pred_region
      _
    $region57: #{bert_ner_forward.1} parent=1 // pred_fallthru
      _
    // Predicated region
    $region58: #{bert_ner_forward.1} parent=1 // pred_check
      _
    $region59: #{bert_ner_forward.1} parent=1 // pred_check_branch
      %59 = sbr.rel (0) target = $region61
    $region60: #{bert_ner_forward.1} parent=1 // pred_region
      _
    $region61: #{bert_ner_forward.1} parent=1 // pred_fallthru
      _
    // Predicated region
    $region62: #{bert_ner_forward.1} parent=1 // pred_check
      _
    $region63: #{bert_ner_forward.1} parent=1 // pred_check_branch
      %61 = sbr.rel (0) target = $region65
    $region64: #{bert_ner_forward.1} parent=1 // pred_region
      _
    $region65: #{bert_ner_forward.1} parent=1 // pred_fallthru
      _
    // Predicated region
    $region66: #{bert_ner_forward.1} parent=1 // pred_check
      _
    $region67: #{bert_ner_forward.1} parent=1 // pred_check_branch
      %63 = sbr.rel (0) target = $region69
    $region68: #{bert_ner_forward.1} parent=1 // pred_region
      _
    $region69: #{bert_ner_forward.1} parent=1 // pred_fallthru
      _
    // Predicated region
    $region70: #{bert_ner_forward.1} parent=1 // pred_check
      _
    $region71: #{bert_ner_forward.1} parent=1 // pred_check_branch
      %65 = sbr.rel (0) target = $region73
    $region72: #{bert_ner_forward.1} parent=1 // pred_region
      _
    $region73: #{bert_ner_forward.1} parent=1 // pred_fallthru
      _
    // Predicated region
    $region74: #{bert_ner_forward.1} parent=1 // pred_check
      _
    $region75: #{bert_ner_forward.1} parent=1 // pred_check_branch
      %67 = sbr.rel (0) target = $region77
    $region76: #{bert_ner_forward.1} parent=1 // pred_region
      _
    $region77: #{bert_ner_forward.1} parent=1 // pred_fallthru
      _
    // Predicated region
    $region78: #{bert_ner_forward.1} parent=1 // pred_check
      _
    $region79: #{bert_ner_forward.1} parent=1 // pred_check_branch
      %69 = sbr.rel (0) target = $region81
    $region80: #{bert_ner_forward.1} parent=1 // pred_region
      _
    $region81: #{bert_ner_forward.1} parent=1 // pred_fallthru
      _
    // Predicated region
    $region82: #{bert_ner_forward.1} parent=1 // pred_check
      _
    $region83: #{bert_ner_forward.1} parent=1 // pred_check_branch
      %71 = sbr.rel (0) target = $region85
    $region84: #{bert_ner_forward.1} parent=1 // pred_region
      _
    $region85: #{bert_ner_forward.1} parent=1 // pred_fallthru
      _
    // Predicated region
    $region86: #{bert_ner_forward.1} parent=1 // pred_check
      _
    $region87: #{bert_ner_forward.1} parent=1 // pred_check_branch
      %73 = sbr.rel (0) target = $region89
    $region88: #{bert_ner_forward.1} parent=1 // pred_region
      _
    $region89: #{bert_ner_forward.1} parent=1 // pred_fallthru
      _
    // Predicated region
    $region90: #{bert_ner_forward.1} parent=1 // pred_check
      _
    $region91: #{bert_ner_forward.1} parent=1 // pred_check_branch
      %75 = sbr.rel (0) target = $region93
    $region92: #{bert_ner_forward.1} parent=1 // pred_region
      _
    $region93: #{bert_ner_forward.1} parent=1 // pred_fallthru
      _
    // Predicated region
    $region94: #{bert_ner_forward.1} parent=1 // pred_check
      _
    $region95: #{bert_ner_forward.1} parent=1 // pred_check_branch
      %77 = sbr.rel (0) target = $region97
    $region96: #{bert_ner_forward.1} parent=1 // pred_region
      _
    $region97: #{bert_ner_forward.1} parent=1 // pred_fallthru
      _
    %v78 = vld [vmem:[%s0] sm:$0xff]
    %v79 = vld [vmem:[%s0 + $0x8] sm:$0xff]
    %v80 = vlaneseq
    %v81 = vand.u32 %v80, 127
    %82 = vset.pattern.permute.xlu0 0
    %83 = vperm.xlu0 %82, %v78
    %v84 = vpop.permute.xlu0 %83
    %85 = vset.pattern.permute.xlu0 0
    %86 = vperm.xlu0 %85, %v79
    %v87 = vpop.permute.xlu0 %86
    %vm88 = vcmp.eq.s32.totalorder %v81, %v84
    %vm89 = vcmp.eq.s32.totalorder %v81, %v87
    %v90 = vsel %vm88, 1, 0
    %v91 = vsel %vm89, 1, 0
    %v92 = vcvt.s32.f32 %v90
    %v93 = vcvt.s32.f32 %v91
    %v94 = vld [vmem:[%s2] sm:$0xff]
    %v95 = vld [vmem:[%s2 + $0x8] sm:$0xff]
    %v96 = vld [vmem:[%s2 + $0x10] sm:$0xff]
    %v97 = vld [vmem:[%s2 + $0x18] sm:$0xff]
    %v98 = vld [vmem:[%s2 + $0x20] sm:$0xff]
    %v99 = vld [vmem:[%s2 + $0x28] sm:$0xff]
    %v100 = vld [vmem:[%s2 + $0x30] sm:$0xff]
    %v101 = vld [vmem:[%s2 + $0x38] sm:$0xff]
    %v102 = vld [vmem:[%s2 + $0x40] sm:$0xff]
    %v103 = vld [vmem:[%s2 + $0x48] sm:$0xff]
    %v104 = vld [vmem:[%s2 + $0x50] sm:$0xff]
    %v105 = vld [vmem:[%s2 + $0x58] sm:$0xff]
    %v106 = vld [vmem:[%s2 + $0x60] sm:$0xff]
    %v107 = vld [vmem:[%s2 + $0x68] sm:$0xff]
    %v108 = vld [vmem:[%s2 + $0x70] sm:$0xff]
    %v109 = vld [vmem:[%s2 + $0x78] sm:$0xff]
    %110 = vmatpush.msra.mxu0 %v109
    %111 = vmatpush.msra.mxu0 %v108
    %112 = vmatpush.msra.mxu0 %v107
    %113 = vmatpush.msra.mxu0 %v106
    %114 = vmatpush.msra.mxu0 %v105
    %115 = vmatpush.msra.mxu0 %v104
    %116 = vmatpush.msra.mxu0 %v103
    %117 = vmatpush.msra.mxu0 %v102
    %118 = vmatpush.msra.mxu0 %v101
    %119 = vmatpush.msra.mxu0 %v100
    %120 = vmatpush.msra.mxu0 %v99
    %121 = vmatpush.msra.mxu0 %v98
    %122 = vmatpush.msra.mxu0 %v97
    %123 = vmatpush.msra.mxu0 %v96
    %124 = vmatpush.msra.mxu0 %v95
    %125 = vmatpush.msra.mxu0 %v94
    %126 = vmatmul.f32.gmra.mxu0 %v92
    %v127 = vpop.f32.mrf.mxu0
    %v128 = vadd.f32 0.0, %v127
    %129 = vmatmul.f32.gmra.mxu0 %v93
    %v130 = vpop.f32.mrf.mxu0
    %v131 = vadd.f32 0.0, %v130
    %132 = vdwg.mxu0
    %v133 = vld [vmem:[%s3] sm:$0xff]
    %v134 = vadd.f32 %v128, %v133
    %vm135 = vcmask 261120
    %136 = vst.msk [vmem:[#allocation2] sm:$0xff] %vm135, %v134
    %v137 = vadd.f32 %v131, %v133
    %138 = vst.msk [vmem:[#allocation2 + $0x8] sm:$0xff] %vm135, %v137
    %v139 = vld [vmem:[#allocation2] sm:$0xff]
    %v140 = vld [vmem:[#allocation2 + $0x8] sm:$0xff]
    %v141 = vld [vmem:[%s4] sm:$0x1]
    %v142 = vld [vmem:[%s5] sm:$0x1]
    %v143 = vsel %vm135, %v139, 0.0
    %144 = vadd.xlane.f32.xlu0 %v143
    %v145 = vpop.xlane.xlu0 %144
    %v146 = vsel %vm135, %v140, 0.0
    %147 = vadd.xlane.f32.xlu0 %v146
    %v148 = vpop.xlane.xlu0 %147
    %v149 = vrcp.pop 32.0
    %v150 = vmul.f32 32.0, %v149
    %v151 = vsub.f32 1.0, %v150
    %v152 = vmul.f32 %v149, %v151
    %v153 = vadd.f32 %v149, %v152
    %vm154 = vweird.f32 %v149
    %v155 = vsel %vm154, %v149, %v153
    %v156 = vmul.f32 %v145, %v155
    %v157 = vmul.f32 %v148, %v155
    %v158 = vsub.f32 %v139, %v156
    %v159 = vsub.f32 %v140, %v157
    %v160 = vmul.f32 %v158, %v158
    %v161 = vmul.f32 %v159, %v159
    %v162 = vsel %vm135, %v160, 0.0
    %163 = vadd.xlane.f32.xlu0 %v162
    %v164 = vpop.xlane.xlu0 %163
    %v165 = vsel %vm135, %v161, 0.0
    %166 = vadd.xlane.f32.xlu0 %v165
    %v167 = vpop.xlane.xlu0 %166
    %v168 = vmul.f32 %v164, %v155
    %v169 = vmul.f32 %v167, %v155
    %v170 = vadd.f32 %v168, 1e-12
    %v171 = vadd.f32 %v169, 1e-12
    %v172 = vrsqrt.pop %v170
    %v173 = vmul.f32 %v172, %v170
    %v174 = vmul.f32 %v173, %v172
    %v175 = vmul.f32 0.5, %v174
    %v176 = vsub.f32 1.5, %v175
    %v177 = vmul.f32 %v172, %v176
    %vm178 = vweird.f32 %v170
    %vm179 = vweird.f32 %v172
    %vm180 = vmor %vm178, %vm179
    %v181 = vsel %vm180, %v172, %v177
    %v182 = vrsqrt.pop %v171
    %v183 = vmul.f32 %v182, %v171
    %v184 = vmul.f32 %v183, %v182
    %v185 = vmul.f32 0.5, %v184
    %v186 = vsub.f32 1.5, %v185
    %v187 = vmul.f32 %v182, %v186
    %vm188 = vweird.f32 %v171
    %vm189 = vweird.f32 %v182
    %vm190 = vmor %vm188, %vm189
    %v191 = vsel %vm190, %v182, %v187
    %v192 = vmul.f32 %v158, %v181
    %v193 = vmul.f32 %v159, %v191
    %v195 = vperm.slane %v141, 0
    %v197 = vmul.f32 %v192, %v195
    %v198 = vmul.f32 %v193, %v195
    %v200 = vperm.slane %v142, 0
    %v202 = vadd.f32 %v197, %v200
    %v203 = vadd.f32 %v198, %v200
    %v204 = vld [vmem:[%s1] sm:$0x3]
    %vm205 = vcmp.eq.s32.totalorder %v204, 4294967295
    %v206 = vsel %vm205, 1, %v204
    %v207 = vcvt.s32.f32 %v206
    %v208 = vsub.f32 1.0, %v207
    %v209 = vmul.f32 %v208, -10000.0
    %v210 = vperm.slane %v209, 0
    %v211 = vld [vmem:[%s6] sm:$0xff]
    %v212 = vld [vmem:[%s6 + $0x8] sm:$0xff]
    %v213 = vld [vmem:[%s6 + $0x10] sm:$0xff]
    %v214 = vld [vmem:[%s6 + $0x18] sm:$0xff]
    %v215 = vld [vmem:[%s9] sm:$0x1]
    %v217 = vperm.slane %v215, 0
    %v220 = vsel %vm135, %v202, 0
    %222 = vmatpush.msra.mxu0 0.0
    %223 = vmatpush.msra.mxu0 0.0
    %224 = vmatpush.msra.mxu0 0.0
    %225 = vmatpush.msra.mxu0 0.0
    %226 = vmatpush.msra.mxu0 0.0
    %227 = vmatpush.msra.mxu0 0.0
    %228 = vmatpush.msra.mxu0 0.0
    %229 = vmatpush.msra.mxu0 0.0
    %230 = vmatpush.msra.mxu0 0.0
    %231 = vmatpush.msra.mxu0 0.0
    %232 = vmatpush.msra.mxu0 0.0
    %233 = vmatpush.msra.mxu0 0.0
    %234 = vmatpush.msra.mxu0 %v214
    %235 = vmatpush.msra.mxu0 %v213
    %236 = vmatpush.msra.mxu0 %v212
    %237 = vmatpush.msra.mxu0 %v211
    %238 = vmatmul.f32.gmra.mxu0 %v220
    %v239 = vpop.f32.mrf.mxu0
    %v240 = vadd.f32 %v217, %v239
    %241 = vdwg.mxu0
    %v242 = vld [vmem:[%s7] sm:$0xff]
    %v243 = vld [vmem:[%s7 + $0x8] sm:$0xff]
    %v244 = vld [vmem:[%s7 + $0x10] sm:$0xff]
    %v245 = vld [vmem:[%s7 + $0x18] sm:$0xff]
    %v246 = vld [vmem:[%s10] sm:$0x1]
    %v248 = vperm.slane %v246, 0
    %250 = vmatpush.msra.mxu0 0.0
    %251 = vmatpush.msra.mxu0 0.0
    %252 = vmatpush.msra.mxu0 0.0
    %253 = vmatpush.msra.mxu0 0.0
    %254 = vmatpush.msra.mxu0 0.0
    %255 = vmatpush.msra.mxu0 0.0
    %256 = vmatpush.msra.mxu0 0.0
    %257 = vmatpush.msra.mxu0 0.0
    %258 = vmatpush.msra.mxu0 0.0
    %259 = vmatpush.msra.mxu0 0.0
    %260 = vmatpush.msra.mxu0 0.0
    %261 = vmatpush.msra.mxu0 0.0
    %262 = vmatpush.msra.mxu0 %v245
    %263 = vmatpush.msra.mxu0 %v244
    %264 = vmatpush.msra.mxu0 %v243
    %265 = vmatpush.msra.mxu0 %v242
    %266 = vmatmul.f32.gmra.mxu0 %v220
    %v267 = vpop.f32.mrf.mxu0
    %v268 = vadd.f32 %v248, %v267
    %269 = vdwg.mxu0
    %v270 = vld [vmem:[%s8] sm:$0xff]
    %v271 = vld [vmem:[%s8 + $0x8] sm:$0xff]
    %v272 = vld [vmem:[%s8 + $0x10] sm:$0xff]
    %v273 = vld [vmem:[%s8 + $0x18] sm:$0xff]
    %v274 = vld [vmem:[%s11] sm:$0x1]
    %v276 = vperm.slane %v274, 0
    %278 = vmatpush.msra.mxu0 0.0
    %279 = vmatpush.msra.mxu0 0.0
    %280 = vmatpush.msra.mxu0 0.0
    %281 = vmatpush.msra.mxu0 0.0
    %282 = vmatpush.msra.mxu0 0.0
    %283 = vmatpush.msra.mxu0 0.0
    %284 = vmatpush.msra.mxu0 0.0
    %285 = vmatpush.msra.mxu0 0.0
    %286 = vmatpush.msra.mxu0 0.0
    %287 = vmatpush.msra.mxu0 0.0
    %288 = vmatpush.msra.mxu0 0.0
    %289 = vmatpush.msra.mxu0 0.0
    %290 = vmatpush.msra.mxu0 %v273
    %291 = vmatpush.msra.mxu0 %v272
    %292 = vmatpush.msra.mxu0 %v271
    %293 = vmatpush.msra.mxu0 %v270
    %294 = vmatmul.f32.gmra.mxu0 %v220
    %v295 = vpop.f32.mrf.mxu0
    %v296 = vadd.f32 %v276, %v295
    %297 = vdwg.mxu0
    %vm298 = vcmask 64512
    %v300 = vsel %vm298, %v240, 0
    %v303 = vsel %vm298, %v268, 0
    %305 = vmatpush.xpose.msra.mxu0 0.0
    %306 = vmatpush.xpose.msra.mxu0 0.0
    %307 = vmatpush.xpose.msra.mxu0 0.0
    %308 = vmatpush.xpose.msra.mxu0 0.0
    %309 = vmatpush.xpose.msra.mxu0 0.0
    %310 = vmatpush.xpose.msra.mxu0 0.0
    %311 = vmatpush.xpose.msra.mxu0 0.0
    %312 = vmatpush.xpose.msra.mxu0 0.0
    %313 = vmatpush.xpose.msra.mxu0 0.0
    %314 = vmatpush.xpose.msra.mxu0 0.0
    %315 = vmatpush.xpose.msra.mxu0 0.0
    %316 = vmatpush.xpose.msra.mxu0 0.0
    %317 = vmatpush.xpose.msra.mxu0 0.0
    %318 = vmatpush.xpose.msra.mxu0 0.0
    %319 = vmatpush.xpose.msra.mxu0 0.0
    %320 = vmatpush.xpose.msra.mxu0 %v303
    %321 = vmatmul.f32.gmra.mxu0 %v300
    %v322 = vpop.f32.mrf.mxu0
    %v323 = vadd.f32 %v210, %v322
    %324 = vdwg.mxu0
    %v325 = vsel %vm298, %v323, -inf
    %326 = vmax.xlane.f32.xlu0 %v325
    %v327 = vpop.xlane.xlu0 %326
    %v328 = vsub.f32 %v323, %v327
    %v329 = vmul.f32 %v328, 1.442695
    %v330 = vpow.pop %v329
    %v331 = vsel %vm298, %v330, 0.0
    %332 = vadd.xlane.f32.xlu0 %v331
    %v333 = vpop.xlane.xlu0 %332
    %v334 = vrcp.pop %v333
    %v335 = vmul.f32 %v330, %v334
    %v337 = vsel %vm298, %v335, 0
    %339 = vmatpush.msra.mxu0 0.0
    %340 = vmatpush.msra.mxu0 0.0
    %341 = vmatpush.msra.mxu0 0.0
    %342 = vmatpush.msra.mxu0 0.0
    %343 = vmatpush.msra.mxu0 0.0
    %344 = vmatpush.msra.mxu0 0.0
    %345 = vmatpush.msra.mxu0 0.0
    %346 = vmatpush.msra.mxu0 0.0
    %347 = vmatpush.msra.mxu0 0.0
    %348 = vmatpush.msra.mxu0 0.0
    %349 = vmatpush.msra.mxu0 0.0
    %350 = vmatpush.msra.mxu0 0.0
    %351 = vmatpush.msra.mxu0 0.0
    %352 = vmatpush.msra.mxu0 0.0
    %353 = vmatpush.msra.mxu0 0.0
    %354 = vmatpush.msra.mxu0 %v296
    %355 = vmatmul.f32.gmra.mxu0 %v337
    %v356 = vpop.f32.mrf.mxu0
    %v357 = vadd.f32 0.0, %v356
    %358 = vdwg.mxu0
    %v359 = vld [vmem:[%s12] sm:$0xff]
    %s360 = scalar_lea.vmem %s6, 32
    %v361 = vld [vmem:[%s360] sm:$0xff]
    %v362 = vld [vmem:[%s360 + $0x8] sm:$0xff]
    %v363 = vld [vmem:[%s360 + $0x10] sm:$0xff]
    %v364 = vld [vmem:[%s360 + $0x18] sm:$0xff]
    %s365 = scalar_lea.vmem %s9, 1
    %v366 = vld [vmem:[%s365] sm:$0x1]
    %v368 = vperm.slane %v366, 0
    %370 = vmatpush.msra.mxu0 0.0
    %371 = vmatpush.msra.mxu0 0.0
    %372 = vmatpush.msra.mxu0 0.0
    %373 = vmatpush.msra.mxu0 0.0
    %374 = vmatpush.msra.mxu0 0.0
    %375 = vmatpush.msra.mxu0 0.0
    %376 = vmatpush.msra.mxu0 0.0
    %377 = vmatpush.msra.mxu0 0.0
    %378 = vmatpush.msra.mxu0 0.0
    %379 = vmatpush.msra.mxu0 0.0
    %380 = vmatpush.msra.mxu0 0.0
    %381 = vmatpush.msra.mxu0 0.0
    %382 = vmatpush.msra.mxu0 %v364
    %383 = vmatpush.msra.mxu0 %v363
    %384 = vmatpush.msra.mxu0 %v362
    %385 = vmatpush.msra.mxu0 %v361
    %386 = vmatmul.f32.gmra.mxu0 %v220
    %v387 = vpop.f32.mrf.mxu0
    %v388 = vadd.f32 %v368, %v387
    %389 = vdwg.mxu0
    %s390 = scalar_lea.vmem %s7, 32
    %v391 = vld [vmem:[%s390] sm:$0xff]
    %v392 = vld [vmem:[%s390 + $0x8] sm:$0xff]
    %v393 = vld [vmem:[%s390 + $0x10] sm:$0xff]
    %v394 = vld [vmem:[%s390 + $0x18] sm:$0xff]
    %s395 = scalar_lea.vmem %s10, 1
    %v396 = vld [vmem:[%s395] sm:$0x1]
    %v398 = vperm.slane %v396, 0
    %400 = vmatpush.msra.mxu0 0.0
    %401 = vmatpush.msra.mxu0 0.0
    %402 = vmatpush.msra.mxu0 0.0
    %403 = vmatpush.msra.mxu0 0.0
    %404 = vmatpush.msra.mxu0 0.0
    %405 = vmatpush.msra.mxu0 0.0
    %406 = vmatpush.msra.mxu0 0.0
    %407 = vmatpush.msra.mxu0 0.0
    %408 = vmatpush.msra.mxu0 0.0
    %409 = vmatpush.msra.mxu0 0.0
    %410 = vmatpush.msra.mxu0 0.0
    %411 = vmatpush.msra.mxu0 0.0
    %412 = vmatpush.msra.mxu0 %v394
    %413 = vmatpush.msra.mxu0 %v393
    %414 = vmatpush.msra.mxu0 %v392
    %415 = vmatpush.msra.mxu0 %v391
    %416 = vmatmul.f32.gmra.mxu0 %v220
    %v417 = vpop.f32.mrf.mxu0
    %v418 = vadd.f32 %v398, %v417
    %419 = vdwg.mxu0
    %s420 = scalar_lea.vmem %s8, 32
    %v421 = vld [vmem:[%s420] sm:$0xff]
    %v422 = vld [vmem:[%s420 + $0x8] sm:$0xff]
    %v423 = vld [vmem:[%s420 + $0x10] sm:$0xff]
    %v424 = vld [vmem:[%s420 + $0x18] sm:$0xff]
    %s425 = scalar_lea.vmem %s11, 1
    %v426 = vld [vmem:[%s425] sm:$0x1]
    %v428 = vperm.slane %v426, 0
    %430 = vmatpush.msra.mxu0 0.0
    %431 = vmatpush.msra.mxu0 0.0
    %432 = vmatpush.msra.mxu0 0.0
    %433 = vmatpush.msra.mxu0 0.0
    %434 = vmatpush.msra.mxu0 0.0
    %435 = vmatpush.msra.mxu0 0.0
    %436 = vmatpush.msra.mxu0 0.0
    %437 = vmatpush.msra.mxu0 0.0
    %438 = vmatpush.msra.mxu0 0.0
    %439 = vmatpush.msra.mxu0 0.0
    %440 = vmatpush.msra.mxu0 0.0
    %441 = vmatpush.msra.mxu0 0.0
    %442 = vmatpush.msra.mxu0 %v424
    %443 = vmatpush.msra.mxu0 %v423
    %444 = vmatpush.msra.mxu0 %v422
    %445 = vmatpush.msra.mxu0 %v421
    %446 = vmatmul.f32.gmra.mxu0 %v220
    %v447 = vpop.f32.mrf.mxu0
    %v448 = vadd.f32 %v428, %v447
    %449 = vdwg.mxu0
    %v451 = vsel %vm298, %v388, 0
    %v454 = vsel %vm298, %v418, 0
    %456 = vmatpush.xpose.msra.mxu0 0.0
    %457 = vmatpush.xpose.msra.mxu0 0.0
    %458 = vmatpush.xpose.msra.mxu0 0.0
    %459 = vmatpush.xpose.msra.mxu0 0.0
    %460 = vmatpush.xpose.msra.mxu0 0.0
    %461 = vmatpush.xpose.msra.mxu0 0.0
    %462 = vmatpush.xpose.msra.mxu0 0.0
    %463 = vmatpush.xpose.msra.mxu0 0.0
    %464 = vmatpush.xpose.msra.mxu0 0.0
    %465 = vmatpush.xpose.msra.mxu0 0.0
    %466 = vmatpush.xpose.msra.mxu0 0.0
    %467 = vmatpush.xpose.msra.mxu0 0.0
    %468 = vmatpush.xpose.msra.mxu0 0.0
    %469 = vmatpush.xpose.msra.mxu0 0.0
    %470 = vmatpush.xpose.msra.mxu0 0.0
    %471 = vmatpush.xpose.msra.mxu0 %v454
    %472 = vmatmul.f32.gmra.mxu0 %v451
    %v473 = vpop.f32.mrf.mxu0
    %v474 = vadd.f32 %v210, %v473
    %475 = vdwg.mxu0
    %v476 = vsel %vm298, %v474, -inf
    %477 = vmax.xlane.f32.xlu0 %v476
    %v478 = vpop.xlane.xlu0 %477
    %v479 = vsub.f32 %v474, %v478
    %v480 = vmul.f32 %v479, 1.442695
    %v481 = vpow.pop %v480
    %v482 = vsel %vm298, %v481, 0.0
    %483 = vadd.xlane.f32.xlu0 %v482
    %v484 = vpop.xlane.xlu0 %483
    %v485 = vrcp.pop %v484
    %v486 = vmul.f32 %v481, %v485
    %v488 = vsel %vm298, %v486, 0
    %490 = vmatpush.msra.mxu0 0.0
    %491 = vmatpush.msra.mxu0 0.0
    %492 = vmatpush.msra.mxu0 0.0
    %493 = vmatpush.msra.mxu0 0.0
    %494 = vmatpush.msra.mxu0 0.0
    %495 = vmatpush.msra.mxu0 0.0
    %496 = vmatpush.msra.mxu0 0.0
    %497 = vmatpush.msra.mxu0 0.0
    %498 = vmatpush.msra.mxu0 0.0
    %499 = vmatpush.msra.mxu0 0.0
    %500 = vmatpush.msra.mxu0 0.0
    %501 = vmatpush.msra.mxu0 0.0
    %502 = vmatpush.msra.mxu0 0.0
    %503 = vmatpush.msra.mxu0 0.0
    %504 = vmatpush.msra.mxu0 0.0
    %505 = vmatpush.msra.mxu0 %v448
    %506 = vmatmul.f32.gmra.mxu0 %v488
    %v507 = vpop.f32.mrf.mxu0
    %v508 = vadd.f32 0.0, %v507
    %509 = vdwg.mxu0
    %s510 = scalar_lea.vmem %s12, 8
    %v511 = vld [vmem:[%s510] sm:$0xff]
    %v513 = vsel %vm298, %v508, 0
    %515 = vmatpush.msra.mxu0 0.0
    %516 = vmatpush.msra.mxu0 0.0
    %517 = vmatpush.msra.mxu0 0.0
    %518 = vmatpush.msra.mxu0 0.0
    %519 = vmatpush.msra.mxu0 0.0
    %520 = vmatpush.msra.mxu0 0.0
    %521 = vmatpush.msra.mxu0 0.0
    %522 = vmatpush.msra.mxu0 0.0
    %523 = vmatpush.msra.mxu0 0.0
    %524 = vmatpush.msra.mxu0 0.0
    %525 = vmatpush.msra.mxu0 0.0
    %526 = vmatpush.msra.mxu0 0.0
    %527 = vmatpush.msra.mxu0 0.0
    %528 = vmatpush.msra.mxu0 0.0
    %529 = vmatpush.msra.mxu0 0.0
    %530 = vmatpush.msra.mxu0 %v511
    %531 = vmatmul.f32.gmra.mxu0 %v513
    %v532 = vpop.f32.mrf.mxu0
    %v533 = vadd.f32 0.0, %v532
    %534 = vdwg.mxu0
    %v536 = vsel %vm298, %v357, 0
    %538 = vmatpush.msra.mxu0 0.0
    %539 = vmatpush.msra.mxu0 0.0
    %540 = vmatpush.msra.mxu0 0.0
    %541 = vmatpush.msra.mxu0 0.0
    %542 = vmatpush.msra.mxu0 0.0
    %543 = vmatpush.msra.mxu0 0.0
    %544 = vmatpush.msra.mxu0 0.0
    %545 = vmatpush.msra.mxu0 0.0
    %546 = vmatpush.msra.mxu0 0.0
    %547 = vmatpush.msra.mxu0 0.0
    %548 = vmatpush.msra.mxu0 0.0
    %549 = vmatpush.msra.mxu0 0.0
    %550 = vmatpush.msra.mxu0 0.0
    %551 = vmatpush.msra.mxu0 0.0
    %552 = vmatpush.msra.mxu0 0.0
    %553 = vmatpush.msra.mxu0 %v359
    %554 = vmatmul.f32.gmra.mxu0 %v536
    %v555 = vpop.f32.mrf.mxu0
    %v556 = vadd.f32 %v533, %v555
    %557 = vdwg.mxu0
    %s558 = scalar_lea.vmem %s6, 64
    %v559 = vld [vmem:[%s558] sm:$0xff]
    %v560 = vld [vmem:[%s558 + $0x8] sm:$0xff]
    %v561 = vld [vmem:[%s558 + $0x10] sm:$0xff]
    %v562 = vld [vmem:[%s558 + $0x18] sm:$0xff]
    %s563 = scalar_lea.vmem %s9, 2
    %v564 = vld [vmem:[%s563] sm:$0x1]
    %v566 = vperm.slane %v564, 0
    %568 = vmatpush.msra.mxu0 0.0
    %569 = vmatpush.msra.mxu0 0.0
    %570 = vmatpush.msra.mxu0 0.0
    %571 = vmatpush.msra.mxu0 0.0
    %572 = vmatpush.msra.mxu0 0.0
    %573 = vmatpush.msra.mxu0 0.0
    %574 = vmatpush.msra.mxu0 0.0
    %575 = vmatpush.msra.mxu0 0.0
    %576 = vmatpush.msra.mxu0 0.0
    %577 = vmatpush.msra.mxu0 0.0
    %578 = vmatpush.msra.mxu0 0.0
    %579 = vmatpush.msra.mxu0 0.0
    %580 = vmatpush.msra.mxu0 %v562
    %581 = vmatpush.msra.mxu0 %v561
    %582 = vmatpush.msra.mxu0 %v560
    %583 = vmatpush.msra.mxu0 %v559
    %584 = vmatmul.f32.gmra.mxu0 %v220
    %v585 = vpop.f32.mrf.mxu0
    %v586 = vadd.f32 %v566, %v585
    %587 = vdwg.mxu0
    %s588 = scalar_lea.vmem %s7, 64
    %v589 = vld [vmem:[%s588] sm:$0xff]
    %v590 = vld [vmem:[%s588 + $0x8] sm:$0xff]
    %v591 = vld [vmem:[%s588 + $0x10] sm:$0xff]
    %v592 = vld [vmem:[%s588 + $0x18] sm:$0xff]
    %s593 = scalar_lea.vmem %s10, 2
    %v594 = vld [vmem:[%s593] sm:$0x1]
    %v596 = vperm.slane %v594, 0
    %598 = vmatpush.msra.mxu0 0.0
    %599 = vmatpush.msra.mxu0 0.0
    %600 = vmatpush.msra.mxu0 0.0
    %601 = vmatpush.msra.mxu0 0.0
    %602 = vmatpush.msra.mxu0 0.0
    %603 = vmatpush.msra.mxu0 0.0
    %604 = vmatpush.msra.mxu0 0.0
    %605 = vmatpush.msra.mxu0 0.0
    %606 = vmatpush.msra.mxu0 0.0
    %607 = vmatpush.msra.mxu0 0.0
    %608 = vmatpush.msra.mxu0 0.0
    %609 = vmatpush.msra.mxu0 0.0
    %610 = vmatpush.msra.mxu0 %v592
    %611 = vmatpush.msra.mxu0 %v591
    %612 = vmatpush.msra.mxu0 %v590
    %613 = vmatpush.msra.mxu0 %v589
    %614 = vmatmul.f32.gmra.mxu0 %v220
    %v615 = vpop.f32.mrf.mxu0
    %v616 = vadd.f32 %v596, %v615
    %617 = vdwg.mxu0
    %s618 = scalar_lea.vmem %s8, 64
    %v619 = vld [vmem:[%s618] sm:$0xff]
    %v620 = vld [vmem:[%s618 + $0x8] sm:$0xff]
    %v621 = vld [vmem:[%s618 + $0x10] sm:$0xff]
    %v622 = vld [vmem:[%s618 + $0x18] sm:$0xff]
    %s623 = scalar_lea.vmem %s11, 2
    %v624 = vld [vmem:[%s623] sm:$0x1]
    %v626 = vperm.slane %v624, 0
    %628 = vmatpush.msra.mxu0 0.0
    %629 = vmatpush.msra.mxu0 0.0
    %630 = vmatpush.msra.mxu0 0.0
    %631 = vmatpush.msra.mxu0 0.0
    %632 = vmatpush.msra.mxu0 0.0
    %633 = vmatpush.msra.mxu0 0.0
    %634 = vmatpush.msra.mxu0 0.0
    %635 = vmatpush.msra.mxu0 0.0
    %636 = vmatpush.msra.mxu0 0.0
    %637 = vmatpush.msra.mxu0 0.0
    %638 = vmatpush.msra.mxu0 0.0
    %639 = vmatpush.msra.mxu0 0.0
    %640 = vmatpush.msra.mxu0 %v622
    %641 = vmatpush.msra.mxu0 %v621
    %642 = vmatpush.msra.mxu0 %v620
    %643 = vmatpush.msra.mxu0 %v619
    %644 = vmatmul.f32.gmra.mxu0 %v220
    %v645 = vpop.f32.mrf.mxu0
    %v646 = vadd.f32 %v626, %v645
    %647 = vdwg.mxu0
    %v649 = vsel %vm298, %v586, 0
    %v652 = vsel %vm298, %v616, 0
    %654 = vmatpush.xpose.msra.mxu0 0.0
    %655 = vmatpush.xpose.msra.mxu0 0.0
    %656 = vmatpush.xpose.msra.mxu0 0.0
    %657 = vmatpush.xpose.msra.mxu0 0.0
    %658 = vmatpush.xpose.msra.mxu0 0.0
    %659 = vmatpush.xpose.msra.mxu0 0.0
    %660 = vmatpush.xpose.msra.mxu0 0.0
    %661 = vmatpush.xpose.msra.mxu0 0.0
    %662 = vmatpush.xpose.msra.mxu0 0.0
    %663 = vmatpush.xpose.msra.mxu0 0.0
    %664 = vmatpush.xpose.msra.mxu0 0.0
    %665 = vmatpush.xpose.msra.mxu0 0.0
    %666 = vmatpush.xpose.msra.mxu0 0.0
    %667 = vmatpush.xpose.msra.mxu0 0.0
    %668 = vmatpush.xpose.msra.mxu0 0.0
    %669 = vmatpush.xpose.msra.mxu0 %v652
    %670 = vmatmul.f32.gmra.mxu0 %v649
    %v671 = vpop.f32.mrf.mxu0
    %v672 = vadd.f32 %v210, %v671
    %673 = vdwg.mxu0
    %v674 = vsel %vm298, %v672, -inf
    %675 = vmax.xlane.f32.xlu0 %v674
    %v676 = vpop.xlane.xlu0 %675
    %v677 = vsub.f32 %v672, %v676
    %v678 = vmul.f32 %v677, 1.442695
    %v679 = vpow.pop %v678
    %v680 = vsel %vm298, %v679, 0.0
    %681 = vadd.xlane.f32.xlu0 %v680
    %v682 = vpop.xlane.xlu0 %681
    %v683 = vrcp.pop %v682
    %v684 = vmul.f32 %v679, %v683
    %v686 = vsel %vm298, %v684, 0
    %688 = vmatpush.msra.mxu0 0.0
    %689 = vmatpush.msra.mxu0 0.0
    %690 = vmatpush.msra.mxu0 0.0
    %691 = vmatpush.msra.mxu0 0.0
    %692 = vmatpush.msra.mxu0 0.0
    %693 = vmatpush.msra.mxu0 0.0
    %694 = vmatpush.msra.mxu0 0.0
    %695 = vmatpush.msra.mxu0 0.0
    %696 = vmatpush.msra.mxu0 0.0
    %697 = vmatpush.msra.mxu0 0.0
    %698 = vmatpush.msra.mxu0 0.0
    %699 = vmatpush.msra.mxu0 0.0
    %700 = vmatpush.msra.mxu0 0.0
    %701 = vmatpush.msra.mxu0 0.0
    %702 = vmatpush.msra.mxu0 0.0
    %703 = vmatpush.msra.mxu0 %v646
    %704 = vmatmul.f32.gmra.mxu0 %v686
    %v705 = vpop.f32.mrf.mxu0
    %v706 = vadd.f32 0.0, %v705
    %707 = vdwg.mxu0
    %s708 = scalar_lea.vmem %s12, 16
    %v709 = vld [vmem:[%s708] sm:$0xff]
    %v711 = vsel %vm298, %v706, 0
    %713 = vmatpush.msra.mxu0 0.0
    %714 = vmatpush.msra.mxu0 0.0
    %715 = vmatpush.msra.mxu0 0.0
    %716 = vmatpush.msra.mxu0 0.0
    %717 = vmatpush.msra.mxu0 0.0
    %718 = vmatpush.msra.mxu0 0.0
    %719 = vmatpush.msra.mxu0 0.0
    %720 = vmatpush.msra.mxu0 0.0
    %721 = vmatpush.msra.mxu0 0.0
    %722 = vmatpush.msra.mxu0 0.0
    %723 = vmatpush.msra.mxu0 0.0
    %724 = vmatpush.msra.mxu0 0.0
    %725 = vmatpush.msra.mxu0 0.0
    %726 = vmatpush.msra.mxu0 0.0
    %727 = vmatpush.msra.mxu0 0.0
    %728 = vmatpush.msra.mxu0 %v709
    %729 = vmatmul.f32.gmra.mxu0 %v711
    %v730 = vpop.f32.mrf.mxu0
    %v731 = vadd.f32 0.0, %v730
    %732 = vdwg.mxu0
    %v733 = vadd.f32 %v556, %v731
    %s734 = scalar_lea.vmem %s6, 96
    %v735 = vld [vmem:[%s734] sm:$0xff]
    %v736 = vld [vmem:[%s734 + $0x8] sm:$0xff]
    %v737 = vld [vmem:[%s734 + $0x10] sm:$0xff]
    %v738 = vld [vmem:[%s734 + $0x18] sm:$0xff]
    %s739 = scalar_lea.vmem %s9, 3
    %v740 = vld [vmem:[%s739] sm:$0x1]
    %v742 = vperm.slane %v740, 0
    %744 = vmatpush.msra.mxu0 0.0
    %745 = vmatpush.msra.mxu0 0.0
    %746 = vmatpush.msra.mxu0 0.0
    %747 = vmatpush.msra.mxu0 0.0
    %748 = vmatpush.msra.mxu0 0.0
    %749 = vmatpush.msra.mxu0 0.0
    %750 = vmatpush.msra.mxu0 0.0
    %751 = vmatpush.msra.mxu0 0.0
    %752 = vmatpush.msra.mxu0 0.0
    %753 = vmatpush.msra.mxu0 0.0
    %754 = vmatpush.msra.mxu0 0.0
    %755 = vmatpush.msra.mxu0 0.0
    %756 = vmatpush.msra.mxu0 %v738
    %757 = vmatpush.msra.mxu0 %v737
    %758 = vmatpush.msra.mxu0 %v736
    %759 = vmatpush.msra.mxu0 %v735
    %760 = vmatmul.f32.gmra.mxu0 %v220
    %v761 = vpop.f32.mrf.mxu0
    %v762 = vadd.f32 %v742, %v761
    %763 = vdwg.mxu0
    %s764 = scalar_lea.vmem %s7, 96
    %v765 = vld [vmem:[%s764] sm:$0xff]
    %v766 = vld [vmem:[%s764 + $0x8] sm:$0xff]
    %v767 = vld [vmem:[%s764 + $0x10] sm:$0xff]
    %v768 = vld [vmem:[%s764 + $0x18] sm:$0xff]
    %s769 = scalar_lea.vmem %s10, 3
    %v770 = vld [vmem:[%s769] sm:$0x1]
    %v772 = vperm.slane %v770, 0
    %774 = vmatpush.msra.mxu0 0.0
    %775 = vmatpush.msra.mxu0 0.0
    %776 = vmatpush.msra.mxu0 0.0
    %777 = vmatpush.msra.mxu0 0.0
    %778 = vmatpush.msra.mxu0 0.0
    %779 = vmatpush.msra.mxu0 0.0
    %780 = vmatpush.msra.mxu0 0.0
    %781 = vmatpush.msra.mxu0 0.0
    %782 = vmatpush.msra.mxu0 0.0
    %783 = vmatpush.msra.mxu0 0.0
    %784 = vmatpush.msra.mxu0 0.0
    %785 = vmatpush.msra.mxu0 0.0
    %786 = vmatpush.msra.mxu0 %v768
    %787 = vmatpush.msra.mxu0 %v767
    %788 = vmatpush.msra.mxu0 %v766
    %789 = vmatpush.msra.mxu0 %v765
    %790 = vmatmul.f32.gmra.mxu0 %v220
    %v791 = vpop.f32.mrf.mxu0
    %v792 = vadd.f32 %v772, %v791
    %793 = vdwg.mxu0
    %s794 = scalar_lea.vmem %s8, 96
    %v795 = vld [vmem:[%s794] sm:$0xff]
    %v796 = vld [vmem:[%s794 + $0x8] sm:$0xff]
    %v797 = vld [vmem:[%s794 + $0x10] sm:$0xff]
    %v798 = vld [vmem:[%s794 + $0x18] sm:$0xff]
    %s799 = scalar_lea.vmem %s11, 3
    %v800 = vld [vmem:[%s799] sm:$0x1]
    %v802 = vperm.slane %v800, 0
    %804 = vmatpush.msra.mxu0 0.0
    %805 = vmatpush.msra.mxu0 0.0
    %806 = vmatpush.msra.mxu0 0.0
    %807 = vmatpush.msra.mxu0 0.0
    %808 = vmatpush.msra.mxu0 0.0
    %809 = vmatpush.msra.mxu0 0.0
    %810 = vmatpush.msra.mxu0 0.0
    %811 = vmatpush.msra.mxu0 0.0
    %812 = vmatpush.msra.mxu0 0.0
    %813 = vmatpush.msra.mxu0 0.0
    %814 = vmatpush.msra.mxu0 0.0
    %815 = vmatpush.msra.mxu0 0.0
    %816 = vmatpush.msra.mxu0 %v798
    %817 = vmatpush.msra.mxu0 %v797
    %818 = vmatpush.msra.mxu0 %v796
    %819 = vmatpush.msra.mxu0 %v795
    %820 = vmatmul.f32.gmra.mxu0 %v220
    %v821 = vpop.f32.mrf.mxu0
    %v822 = vadd.f32 %v802, %v821
    %823 = vdwg.mxu0
    %v825 = vsel %vm298, %v762, 0
    %v828 = vsel %vm298, %v792, 0
    %830 = vmatpush.xpose.msra.mxu0 0.0
    %831 = vmatpush.xpose.msra.mxu0 0.0
    %832 = vmatpush.xpose.msra.mxu0 0.0
    %833 = vmatpush.xpose.msra.mxu0 0.0
    %834 = vmatpush.xpose.msra.mxu0 0.0
    %835 = vmatpush.xpose.msra.mxu0 0.0
    %836 = vmatpush.xpose.msra.mxu0 0.0
    %837 = vmatpush.xpose.msra.mxu0 0.0
    %838 = vmatpush.xpose.msra.mxu0 0.0
    %839 = vmatpush.xpose.msra.mxu0 0.0
    %840 = vmatpush.xpose.msra.mxu0 0.0
    %841 = vmatpush.xpose.msra.mxu0 0.0
    %842 = vmatpush.xpose.msra.mxu0 0.0
    %843 = vmatpush.xpose.msra.mxu0 0.0
    %844 = vmatpush.xpose.msra.mxu0 0.0
    %845 = vmatpush.xpose.msra.mxu0 %v828
    %846 = vmatmul.f32.gmra.mxu0 %v825
    %v847 = vpop.f32.mrf.mxu0
    %v848 = vadd.f32 %v210, %v847
    %849 = vdwg.mxu0
    %v850 = vsel %vm298, %v848, -inf
    %851 = vmax.xlane.f32.xlu0 %v850
    %v852 = vpop.xlane.xlu0 %851
    %v853 = vsub.f32 %v848, %v852
    %v854 = vmul.f32 %v853, 1.442695
    %v855 = vpow.pop %v854
    %v856 = vsel %vm298, %v855, 0.0
    %857 = vadd.xlane.f32.xlu0 %v856
    %v858 = vpop.xlane.xlu0 %857
    %v859 = vrcp.pop %v858
    %v860 = vmul.f32 %v855, %v859
    %v862 = vsel %vm298, %v860, 0
    %864 = vmatpush.msra.mxu0 0.0
    %865 = vmatpush.msra.mxu0 0.0
    %866 = vmatpush.msra.mxu0 0.0
    %867 = vmatpush.msra.mxu0 0.0
    %868 = vmatpush.msra.mxu0 0.0
    %869 = vmatpush.msra.mxu0 0.0
    %870 = vmatpush.msra.mxu0 0.0
    %871 = vmatpush.msra.mxu0 0.0
    %872 = vmatpush.msra.mxu0 0.0
    %873 = vmatpush.msra.mxu0 0.0
    %874 = vmatpush.msra.mxu0 0.0
    %875 = vmatpush.msra.mxu0 0.0
    %876 = vmatpush.msra.mxu0 0.0
    %877 = vmatpush.msra.mxu0 0.0
    %878 = vmatpush.msra.mxu0 0.0
    %879 = vmatpush.msra.mxu0 %v822
    %880 = vmatmul.f32.gmra.mxu0 %v862
    %v881 = vpop.f32.mrf.mxu0
    %v882 = vadd.f32 0.0, %v881
    %883 = vdwg.mxu0
    %s884 = scalar_lea.vmem %s12, 24
    %v885 = vld [vmem:[%s884] sm:$0xff]
    %v887 = vsel %vm298, %v882, 0
    %889 = vmatpush.msra.mxu0 0.0
    %890 = vmatpush.msra.mxu0 0.0
    %891 = vmatpush.msra.mxu0 0.0
    %892 = vmatpush.msra.mxu0 0.0
    %893 = vmatpush.msra.mxu0 0.0
    %894 = vmatpush.msra.mxu0 0.0
    %895 = vmatpush.msra.mxu0 0.0
    %896 = vmatpush.msra.mxu0 0.0
    %897 = vmatpush.msra.mxu0 0.0
    %898 = vmatpush.msra.mxu0 0.0
    %899 = vmatpush.msra.mxu0 0.0
    %900 = vmatpush.msra.mxu0 0.0
    %901 = vmatpush.msra.mxu0 0.0
    %902 = vmatpush.msra.mxu0 0.0
    %903 = vmatpush.msra.mxu0 0.0
    %904 = vmatpush.msra.mxu0 %v885
    %905 = vmatmul.f32.gmra.mxu0 %v887
    %v906 = vpop.f32.mrf.mxu0
    %v907 = vadd.f32 0.0, %v906
    %908 = vdwg.mxu0
    %v909 = vadd.f32 %v733, %v907
    %910 = vst.msk [vmem:[#allocation2] sm:$0xff] %vm135, %v909
    %v911 = vperm.slane %v209, 1
    %v912 = vld [vmem:[%s6] sm:$0xff]
    %v913 = vld [vmem:[%s6 + $0x8] sm:$0xff]
    %v914 = vld [vmem:[%s6 + $0x10] sm:$0xff]
    %v915 = vld [vmem:[%s6 + $0x18] sm:$0xff]
    %v916 = vld [vmem:[%s9] sm:$0x1]
    %v918 = vperm.slane %v916, 0
    %v921 = vsel %vm135, %v203, 0
    %923 = vmatpush.msra.mxu0 0.0
    %924 = vmatpush.msra.mxu0 0.0
    %925 = vmatpush.msra.mxu0 0.0
    %926 = vmatpush.msra.mxu0 0.0
    %927 = vmatpush.msra.mxu0 0.0
    %928 = vmatpush.msra.mxu0 0.0
    %929 = vmatpush.msra.mxu0 0.0
    %930 = vmatpush.msra.mxu0 0.0
    %931 = vmatpush.msra.mxu0 0.0
    %932 = vmatpush.msra.mxu0 0.0
    %933 = vmatpush.msra.mxu0 0.0
    %934 = vmatpush.msra.mxu0 0.0
    %935 = vmatpush.msra.mxu0 %v915
    %936 = vmatpush.msra.mxu0 %v914
    %937 = vmatpush.msra.mxu0 %v913
    %938 = vmatpush.msra.mxu0 %v912
    %939 = vmatmul.f32.gmra.mxu0 %v921
    %v940 = vpop.f32.mrf.mxu0
    %v941 = vadd.f32 %v918, %v940
    %942 = vdwg.mxu0
    %v943 = vld [vmem:[%s7] sm:$0xff]
    %v944 = vld [vmem:[%s7 + $0x8] sm:$0xff]
    %v945 = vld [vmem:[%s7 + $0x10] sm:$0xff]
    %v946 = vld [vmem:[%s7 + $0x18] sm:$0xff]
    %v947 = vld [vmem:[%s10] sm:$0x1]
    %v949 = vperm.slane %v947, 0
    %951 = vmatpush.msra.mxu0 0.0
    %952 = vmatpush.msra.mxu0 0.0
    %953 = vmatpush.msra.mxu0 0.0
    %954 = vmatpush.msra.mxu0 0.0
    %955 = vmatpush.msra.mxu0 0.0
    %956 = vmatpush.msra.mxu0 0.0
    %957 = vmatpush.msra.mxu0 0.0
    %958 = vmatpush.msra.mxu0 0.0
    %959 = vmatpush.msra.mxu0 0.0
    %960 = vmatpush.msra.mxu0 0.0
    %961 = vmatpush.msra.mxu0 0.0
    %962 = vmatpush.msra.mxu0 0.0
    %963 = vmatpush.msra.mxu0 %v946
    %964 = vmatpush.msra.mxu0 %v945
    %965 = vmatpush.msra.mxu0 %v944
    %966 = vmatpush.msra.mxu0 %v943
    %967 = vmatmul.f32.gmra.mxu0 %v921
    %v968 = vpop.f32.mrf.mxu0
    %v969 = vadd.f32 %v949, %v968
    %970 = vdwg.mxu0
    %v971 = vld [vmem:[%s8] sm:$0xff]
    %v972 = vld [vmem:[%s8 + $0x8] sm:$0xff]
    %v973 = vld [vmem:[%s8 + $0x10] sm:$0xff]
    %v974 = vld [vmem:[%s8 + $0x18] sm:$0xff]
    %v975 = vld [vmem:[%s11] sm:$0x1]
    %v977 = vperm.slane %v975, 0
    %979 = vmatpush.msra.mxu0 0.0
    %980 = vmatpush.msra.mxu0 0.0
    %981 = vmatpush.msra.mxu0 0.0
    %982 = vmatpush.msra.mxu0 0.0
    %983 = vmatpush.msra.mxu0 0.0
    %984 = vmatpush.msra.mxu0 0.0
    %985 = vmatpush.msra.mxu0 0.0
    %986 = vmatpush.msra.mxu0 0.0
    %987 = vmatpush.msra.mxu0 0.0
    %988 = vmatpush.msra.mxu0 0.0
    %989 = vmatpush.msra.mxu0 0.0
    %990 = vmatpush.msra.mxu0 0.0
    %991 = vmatpush.msra.mxu0 %v974
    %992 = vmatpush.msra.mxu0 %v973
    %993 = vmatpush.msra.mxu0 %v972
    %994 = vmatpush.msra.mxu0 %v971
    %995 = vmatmul.f32.gmra.mxu0 %v921
    %v996 = vpop.f32.mrf.mxu0
    %v997 = vadd.f32 %v977, %v996
    %998 = vdwg.mxu0
    %v1000 = vsel %vm298, %v941, 0
    %v1003 = vsel %vm298, %v969, 0
    %1005 = vmatpush.xpose.msra.mxu0 0.0
    %1006 = vmatpush.xpose.msra.mxu0 0.0
    %1007 = vmatpush.xpose.msra.mxu0 0.0
    %1008 = vmatpush.xpose.msra.mxu0 0.0
    %1009 = vmatpush.xpose.msra.mxu0 0.0
    %1010 = vmatpush.xpose.msra.mxu0 0.0
    %1011 = vmatpush.xpose.msra.mxu0 0.0
    %1012 = vmatpush.xpose.msra.mxu0 0.0
    %1013 = vmatpush.xpose.msra.mxu0 0.0
    %1014 = vmatpush.xpose.msra.mxu0 0.0
    %1015 = vmatpush.xpose.msra.mxu0 0.0
    %1016 = vmatpush.xpose.msra.mxu0 0.0
    %1017 = vmatpush.xpose.msra.mxu0 0.0
    %1018 = vmatpush.xpose.msra.mxu0 0.0
    %1019 = vmatpush.xpose.msra.mxu0 0.0
    %1020 = vmatpush.xpose.msra.mxu0 %v1003
    %1021 = vmatmul.f32.gmra.mxu0 %v1000
    %v1022 = vpop.f32.mrf.mxu0
    %v1023 = vadd.f32 %v911, %v1022
    %1024 = vdwg.mxu0
    %v1025 = vsel %vm298, %v1023, -inf
    %1026 = vmax.xlane.f32.xlu0 %v1025
    %v1027 = vpop.xlane.xlu0 %1026
    %v1028 = vsub.f32 %v1023, %v1027
    %v1029 = vmul.f32 %v1028, 1.442695
    %v1030 = vpow.pop %v1029
    %v1031 = vsel %vm298, %v1030, 0.0
    %1032 = vadd.xlane.f32.xlu0 %v1031
    %v1033 = vpop.xlane.xlu0 %1032
    %v1034 = vrcp.pop %v1033
    %v1035 = vmul.f32 %v1030, %v1034
    %v1037 = vsel %vm298, %v1035, 0
    %1039 = vmatpush.msra.mxu0 0.0
    %1040 = vmatpush.msra.mxu0 0.0
    %1041 = vmatpush.msra.mxu0 0.0
    %1042 = vmatpush.msra.mxu0 0.0
    %1043 = vmatpush.msra.mxu0 0.0
    %1044 = vmatpush.msra.mxu0 0.0
    %1045 = vmatpush.msra.mxu0 0.0
    %1046 = vmatpush.msra.mxu0 0.0
    %1047 = vmatpush.msra.mxu0 0.0
    %1048 = vmatpush.msra.mxu0 0.0
    %1049 = vmatpush.msra.mxu0 0.0
    %1050 = vmatpush.msra.mxu0 0.0
    %1051 = vmatpush.msra.mxu0 0.0
    %1052 = vmatpush.msra.mxu0 0.0
    %1053 = vmatpush.msra.mxu0 0.0
    %1054 = vmatpush.msra.mxu0 %v997
    %1055 = vmatmul.f32.gmra.mxu0 %v1037
    %v1056 = vpop.f32.mrf.mxu0
    %v1057 = vadd.f32 0.0, %v1056
    %1058 = vdwg.mxu0
    %v1059 = vld [vmem:[%s12] sm:$0xff]
    %v1060 = vld [vmem:[%s360] sm:$0xff]
    %v1061 = vld [vmem:[%s360 + $0x8] sm:$0xff]
    %v1062 = vld [vmem:[%s360 + $0x10] sm:$0xff]
    %v1063 = vld [vmem:[%s360 + $0x18] sm:$0xff]
    %v1064 = vld [vmem:[%s365] sm:$0x1]
    %v1066 = vperm.slane %v1064, 0
    %1068 = vmatpush.msra.mxu0 0.0
    %1069 = vmatpush.msra.mxu0 0.0
    %1070 = vmatpush.msra.mxu0 0.0
    %1071 = vmatpush.msra.mxu0 0.0
    %1072 = vmatpush.msra.mxu0 0.0
    %1073 = vmatpush.msra.mxu0 0.0
    %1074 = vmatpush.msra.mxu0 0.0
    %1075 = vmatpush.msra.mxu0 0.0
    %1076 = vmatpush.msra.mxu0 0.0
    %1077 = vmatpush.msra.mxu0 0.0
    %1078 = vmatpush.msra.mxu0 0.0
    %1079 = vmatpush.msra.mxu0 0.0
    %1080 = vmatpush.msra.mxu0 %v1063
    %1081 = vmatpush.msra.mxu0 %v1062
    %1082 = vmatpush.msra.mxu0 %v1061
    %1083 = vmatpush.msra.mxu0 %v1060
    %1084 = vmatmul.f32.gmra.mxu0 %v921
    %v1085 = vpop.f32.mrf.mxu0
    %v1086 = vadd.f32 %v1066, %v1085
    %1087 = vdwg.mxu0
    %v1088 = vld [vmem:[%s390] sm:$0xff]
    %v1089 = vld [vmem:[%s390 + $0x8] sm:$0xff]
    %v1090 = vld [vmem:[%s390 + $0x10] sm:$0xff]
    %v1091 = vld [vmem:[%s390 + $0x18] sm:$0xff]
    %v1092 = vld [vmem:[%s395] sm:$0x1]
    %v1094 = vperm.slane %v1092, 0
    %1096 = vmatpush.msra.mxu0 0.0
    %1097 = vmatpush.msra.mxu0 0.0
    %1098 = vmatpush.msra.mxu0 0.0
    %1099 = vmatpush.msra.mxu0 0.0
    %1100 = vmatpush.msra.mxu0 0.0
    %1101 = vmatpush.msra.mxu0 0.0
    %1102 = vmatpush.msra.mxu0 0.0
    %1103 = vmatpush.msra.mxu0 0.0
    %1104 = vmatpush.msra.mxu0 0.0
    %1105 = vmatpush.msra.mxu0 0.0
    %1106 = vmatpush.msra.mxu0 0.0
    %1107 = vmatpush.msra.mxu0 0.0
    %1108 = vmatpush.msra.mxu0 %v1091
    %1109 = vmatpush.msra.mxu0 %v1090
    %1110 = vmatpush.msra.mxu0 %v1089
    %1111 = vmatpush.msra.mxu0 %v1088
    %1112 = vmatmul.f32.gmra.mxu0 %v921
    %v1113 = vpop.f32.mrf.mxu0
    %v1114 = vadd.f32 %v1094, %v1113
    %1115 = vdwg.mxu0
    %v1116 = vld [vmem:[%s420] sm:$0xff]
    %v1117 = vld [vmem:[%s420 + $0x8] sm:$0xff]
    %v1118 = vld [vmem:[%s420 + $0x10] sm:$0xff]
    %v1119 = vld [vmem:[%s420 + $0x18] sm:$0xff]
    %v1120 = vld [vmem:[%s425] sm:$0x1]
    %v1122 = vperm.slane %v1120, 0
    %1124 = vmatpush.msra.mxu0 0.0
    %1125 = vmatpush.msra.mxu0 0.0
    %1126 = vmatpush.msra.mxu0 0.0
    %1127 = vmatpush.msra.mxu0 0.0
    %1128 = vmatpush.msra.mxu0 0.0
    %1129 = vmatpush.msra.mxu0 0.0
    %1130 = vmatpush.msra.mxu0 0.0
    %1131 = vmatpush.msra.mxu0 0.0
    %1132 = vmatpush.msra.mxu0 0.0
    %1133 = vmatpush.msra.mxu0 0.0
    %1134 = vmatpush.msra.mxu0 0.0
    %1135 = vmatpush.msra.mxu0 0.0
    %1136 = vmatpush.msra.mxu0 %v1119
    %1137 = vmatpush.msra.mxu0 %v1118
    %1138 = vmatpush.msra.mxu0 %v1117
    %1139 = vmatpush.msra.mxu0 %v1116
    %1140 = vmatmul.f32.gmra.mxu0 %v921
    %v1141 = vpop.f32.mrf.mxu0
    %v1142 = vadd.f32 %v1122, %v1141
    %1143 = vdwg.mxu0
    %v1145 = vsel %vm298, %v1086, 0
    %v1148 = vsel %vm298, %v1114, 0
    %1150 = vmatpush.xpose.msra.mxu0 0.0
    %1151 = vmatpush.xpose.msra.mxu0 0.0
    %1152 = vmatpush.xpose.msra.mxu0 0.0
    %1153 = vmatpush.xpose.msra.mxu0 0.0
    %1154 = vmatpush.xpose.msra.mxu0 0.0
    %1155 = vmatpush.xpose.msra.mxu0 0.0
    %1156 = vmatpush.xpose.msra.mxu0 0.0
    %1157 = vmatpush.xpose.msra.mxu0 0.0
    %1158 = vmatpush.xpose.msra.mxu0 0.0
    %1159 = vmatpush.xpose.msra.mxu0 0.0
    %1160 = vmatpush.xpose.msra.mxu0 0.0
    %1161 = vmatpush.xpose.msra.mxu0 0.0
    %1162 = vmatpush.xpose.msra.mxu0 0.0
    %1163 = vmatpush.xpose.msra.mxu0 0.0
    %1164 = vmatpush.xpose.msra.mxu0 0.0
    %1165 = vmatpush.xpose.msra.mxu0 %v1148
    %1166 = vmatmul.f32.gmra.mxu0 %v1145
    %v1167 = vpop.f32.mrf.mxu0
    %v1168 = vadd.f32 %v911, %v1167
    %1169 = vdwg.mxu0
    %v1170 = vsel %vm298, %v1168, -inf
    %1171 = vmax.xlane.f32.xlu0 %v1170
    %v1172 = vpop.xlane.xlu0 %1171
    %v1173 = vsub.f32 %v1168, %v1172
    %v1174 = vmul.f32 %v1173, 1.442695
    %v1175 = vpow.pop %v1174
    %v1176 = vsel %vm298, %v1175, 0.0
    %1177 = vadd.xlane.f32.xlu0 %v1176
    %v1178 = vpop.xlane.xlu0 %1177
    %v1179 = vrcp.pop %v1178
    %v1180 = vmul.f32 %v1175, %v1179
    %v1182 = vsel %vm298, %v1180, 0
    %1184 = vmatpush.msra.mxu0 0.0
    %1185 = vmatpush.msra.mxu0 0.0
    %1186 = vmatpush.msra.mxu0 0.0
    %1187 = vmatpush.msra.mxu0 0.0
    %1188 = vmatpush.msra.mxu0 0.0
    %1189 = vmatpush.msra.mxu0 0.0
    %1190 = vmatpush.msra.mxu0 0.0
    %1191 = vmatpush.msra.mxu0 0.0
    %1192 = vmatpush.msra.mxu0 0.0
    %1193 = vmatpush.msra.mxu0 0.0
    %1194 = vmatpush.msra.mxu0 0.0
    %1195 = vmatpush.msra.mxu0 0.0
    %1196 = vmatpush.msra.mxu0 0.0
    %1197 = vmatpush.msra.mxu0 0.0
    %1198 = vmatpush.msra.mxu0 0.0
    %1199 = vmatpush.msra.mxu0 %v1142
    %1200 = vmatmul.f32.gmra.mxu0 %v1182
    %v1201 = vpop.f32.mrf.mxu0
    %v1202 = vadd.f32 0.0, %v1201
    %1203 = vdwg.mxu0
    %v1204 = vld [vmem:[%s510] sm:$0xff]
    %v1206 = vsel %vm298, %v1202, 0
    %1208 = vmatpush.msra.mxu0 0.0
    %1209 = vmatpush.msra.mxu0 0.0
    %1210 = vmatpush.msra.mxu0 0.0
    %1211 = vmatpush.msra.mxu0 0.0
    %1212 = vmatpush.msra.mxu0 0.0
    %1213 = vmatpush.msra.mxu0 0.0
    %1214 = vmatpush.msra.mxu0 0.0
    %1215 = vmatpush.msra.mxu0 0.0
    %1216 = vmatpush.msra.mxu0 0.0
    %1217 = vmatpush.msra.mxu0 0.0
    %1218 = vmatpush.msra.mxu0 0.0
    %1219 = vmatpush.msra.mxu0 0.0
    %1220 = vmatpush.msra.mxu0 0.0
    %1221 = vmatpush.msra.mxu0 0.0
    %1222 = vmatpush.msra.mxu0 0.0
    %1223 = vmatpush.msra.mxu0 %v1204
    %1224 = vmatmul.f32.gmra.mxu0 %v1206
    %v1225 = vpop.f32.mrf.mxu0
    %v1226 = vadd.f32 0.0, %v1225
    %1227 = vdwg.mxu0
    %v1229 = vsel %vm298, %v1057, 0
    %1231 = vmatpush.msra.mxu0 0.0
    %1232 = vmatpush.msra.mxu0 0.0
    %1233 = vmatpush.msra.mxu0 0.0
    %1234 = vmatpush.msra.mxu0 0.0
    %1235 = vmatpush.msra.mxu0 0.0
    %1236 = vmatpush.msra.mxu0 0.0
    %1237 = vmatpush.msra.mxu0 0.0
    %1238 = vmatpush.msra.mxu0 0.0
    %1239 = vmatpush.msra.mxu0 0.0
    %1240 = vmatpush.msra.mxu0 0.0
    %1241 = vmatpush.msra.mxu0 0.0
    %1242 = vmatpush.msra.mxu0 0.0
    %1243 = vmatpush.msra.mxu0 0.0
    %1244 = vmatpush.msra.mxu0 0.0
    %1245 = vmatpush.msra.mxu0 0.0
    %1246 = vmatpush.msra.mxu0 %v1059
    %1247 = vmatmul.f32.gmra.mxu0 %v1229
    %v1248 = vpop.f32.mrf.mxu0
    %v1249 = vadd.f32 %v1226, %v1248
    %1250 = vdwg.mxu0
    %v1251 = vld [vmem:[%s558] sm:$0xff]
    %v1252 = vld [vmem:[%s558 + $0x8] sm:$0xff]
    %v1253 = vld [vmem:[%s558 + $0x10] sm:$0xff]
    %v1254 = vld [vmem:[%s558 + $0x18] sm:$0xff]
    %v1255 = vld [vmem:[%s563] sm:$0x1]
    %v1257 = vperm.slane %v1255, 0
    %1259 = vmatpush.msra.mxu0 0.0
    %1260 = vmatpush.msra.mxu0 0.0
    %1261 = vmatpush.msra.mxu0 0.0
    %1262 = vmatpush.msra.mxu0 0.0
    %1263 = vmatpush.msra.mxu0 0.0
    %1264 = vmatpush.msra.mxu0 0.0
    %1265 = vmatpush.msra.mxu0 0.0
    %1266 = vmatpush.msra.mxu0 0.0
    %1267 = vmatpush.msra.mxu0 0.0
    %1268 = vmatpush.msra.mxu0 0.0
    %1269 = vmatpush.msra.mxu0 0.0
    %1270 = vmatpush.msra.mxu0 0.0
    %1271 = vmatpush.msra.mxu0 %v1254
    %1272 = vmatpush.msra.mxu0 %v1253
    %1273 = vmatpush.msra.mxu0 %v1252
    %1274 = vmatpush.msra.mxu0 %v1251
    %1275 = vmatmul.f32.gmra.mxu0 %v921
    %v1276 = vpop.f32.mrf.mxu0
    %v1277 = vadd.f32 %v1257, %v1276
    %1278 = vdwg.mxu0
    %v1279 = vld [vmem:[%s588] sm:$0xff]
    %v1280 = vld [vmem:[%s588 + $0x8] sm:$0xff]
    %v1281 = vld [vmem:[%s588 + $0x10] sm:$0xff]
    %v1282 = vld [vmem:[%s588 + $0x18] sm:$0xff]
    %v1283 = vld [vmem:[%s593] sm:$0x1]
    %v1285 = vperm.slane %v1283, 0
    %1287 = vmatpush.msra.mxu0 0.0
    %1288 = vmatpush.msra.mxu0 0.0
    %1289 = vmatpush.msra.mxu0 0.0
    %1290 = vmatpush.msra.mxu0 0.0
    %1291 = vmatpush.msra.mxu0 0.0
    %1292 = vmatpush.msra.mxu0 0.0
    %1293 = vmatpush.msra.mxu0 0.0
    %1294 = vmatpush.msra.mxu0 0.0
    %1295 = vmatpush.msra.mxu0 0.0
    %1296 = vmatpush.msra.mxu0 0.0
    %1297 = vmatpush.msra.mxu0 0.0
    %1298 = vmatpush.msra.mxu0 0.0
    %1299 = vmatpush.msra.mxu0 %v1282
    %1300 = vmatpush.msra.mxu0 %v1281
    %1301 = vmatpush.msra.mxu0 %v1280
    %1302 = vmatpush.msra.mxu0 %v1279
    %1303 = vmatmul.f32.gmra.mxu0 %v921
    %v1304 = vpop.f32.mrf.mxu0
    %v1305 = vadd.f32 %v1285, %v1304
    %1306 = vdwg.mxu0
    %v1307 = vld [vmem:[%s618] sm:$0xff]
    %v1308 = vld [vmem:[%s618 + $0x8] sm:$0xff]
    %v1309 = vld [vmem:[%s618 + $0x10] sm:$0xff]
    %v1310 = vld [vmem:[%s618 + $0x18] sm:$0xff]
    %v1311 = vld [vmem:[%s623] sm:$0x1]
    %v1313 = vperm.slane %v1311, 0
    %1315 = vmatpush.msra.mxu0 0.0
    %1316 = vmatpush.msra.mxu0 0.0
    %1317 = vmatpush.msra.mxu0 0.0
    %1318 = vmatpush.msra.mxu0 0.0
    %1319 = vmatpush.msra.mxu0 0.0
    %1320 = vmatpush.msra.mxu0 0.0
    %1321 = vmatpush.msra.mxu0 0.0
    %1322 = vmatpush.msra.mxu0 0.0
    %1323 = vmatpush.msra.mxu0 0.0
    %1324 = vmatpush.msra.mxu0 0.0
    %1325 = vmatpush.msra.mxu0 0.0
    %1326 = vmatpush.msra.mxu0 0.0
    %1327 = vmatpush.msra.mxu0 %v1310
    %1328 = vmatpush.msra.mxu0 %v1309
    %1329 = vmatpush.msra.mxu0 %v1308
    %1330 = vmatpush.msra.mxu0 %v1307
    %1331 = vmatmul.f32.gmra.mxu0 %v921
    %v1332 = vpop.f32.mrf.mxu0
    %v1333 = vadd.f32 %v1313, %v1332
    %1334 = vdwg.mxu0
    %v1336 = vsel %vm298, %v1277, 0
    %v1339 = vsel %vm298, %v1305, 0
    %1341 = vmatpush.xpose.msra.mxu0 0.0
    %1342 = vmatpush.xpose.msra.mxu0 0.0
    %1343 = vmatpush.xpose.msra.mxu0 0.0
    %1344 = vmatpush.xpose.msra.mxu0 0.0
    %1345 = vmatpush.xpose.msra.mxu0 0.0
    %1346 = vmatpush.xpose.msra.mxu0 0.0
    %1347 = vmatpush.xpose.msra.mxu0 0.0
    %1348 = vmatpush.xpose.msra.mxu0 0.0
    %1349 = vmatpush.xpose.msra.mxu0 0.0
    %1350 = vmatpush.xpose.msra.mxu0 0.0
    %1351 = vmatpush.xpose.msra.mxu0 0.0
    %1352 = vmatpush.xpose.msra.mxu0 0.0
    %1353 = vmatpush.xpose.msra.mxu0 0.0
    %1354 = vmatpush.xpose.msra.mxu0 0.0
    %1355 = vmatpush.xpose.msra.mxu0 0.0
    %1356 = vmatpush.xpose.msra.mxu0 %v1339
    %1357 = vmatmul.f32.gmra.mxu0 %v1336
    %v1358 = vpop.f32.mrf.mxu0
    %v1359 = vadd.f32 %v911, %v1358
    %1360 = vdwg.mxu0
    %v1361 = vsel %vm298, %v1359, -inf
    %1362 = vmax.xlane.f32.xlu0 %v1361
    %v1363 = vpop.xlane.xlu0 %1362
    %v1364 = vsub.f32 %v1359, %v1363
    %v1365 = vmul.f32 %v1364, 1.442695
    %v1366 = vpow.pop %v1365
    %v1367 = vsel %vm298, %v1366, 0.0
    %1368 = vadd.xlane.f32.xlu0 %v1367
    %v1369 = vpop.xlane.xlu0 %1368
    %v1370 = vrcp.pop %v1369
    %v1371 = vmul.f32 %v1366, %v1370
    %v1373 = vsel %vm298, %v1371, 0
    %1375 = vmatpush.msra.mxu0 0.0
    %1376 = vmatpush.msra.mxu0 0.0
    %1377 = vmatpush.msra.mxu0 0.0
    %1378 = vmatpush.msra.mxu0 0.0
    %1379 = vmatpush.msra.mxu0 0.0
    %1380 = vmatpush.msra.mxu0 0.0
    %1381 = vmatpush.msra.mxu0 0.0
    %1382 = vmatpush.msra.mxu0 0.0
    %1383 = vmatpush.msra.mxu0 0.0
    %1384 = vmatpush.msra.mxu0 0.0
    %1385 = vmatpush.msra.mxu0 0.0
    %1386 = vmatpush.msra.mxu0 0.0
    %1387 = vmatpush.msra.mxu0 0.0
    %1388 = vmatpush.msra.mxu0 0.0
    %1389 = vmatpush.msra.mxu0 0.0
    %1390 = vmatpush.msra.mxu0 %v1333
    %1391 = vmatmul.f32.gmra.mxu0 %v1373
    %v1392 = vpop.f32.mrf.mxu0
    %v1393 = vadd.f32 0.0, %v1392
    %1394 = vdwg.mxu0
    %v1395 = vld [vmem:[%s708] sm:$0xff]
    %v1397 = vsel %vm298, %v1393, 0
    %1399 = vmatpush.msra.mxu0 0.0
    %1400 = vmatpush.msra.mxu0 0.0
    %1401 = vmatpush.msra.mxu0 0.0
    %1402 = vmatpush.msra.mxu0 0.0
    %1403 = vmatpush.msra.mxu0 0.0
    %1404 = vmatpush.msra.mxu0 0.0
    %1405 = vmatpush.msra.mxu0 0.0
    %1406 = vmatpush.msra.mxu0 0.0
    %1407 = vmatpush.msra.mxu0 0.0
    %1408 = vmatpush.msra.mxu0 0.0
    %1409 = vmatpush.msra.mxu0 0.0
    %1410 = vmatpush.msra.mxu0 0.0
    %1411 = vmatpush.msra.mxu0 0.0
    %1412 = vmatpush.msra.mxu0 0.0
    %1413 = vmatpush.msra.mxu0 0.0
    %1414 = vmatpush.msra.mxu0 %v1395
    %1415 = vmatmul.f32.gmra.mxu0 %v1397
    %v1416 = vpop.f32.mrf.mxu0
    %v1417 = vadd.f32 0.0, %v1416
    %1418 = vdwg.mxu0
    %v1419 = vadd.f32 %v1249, %v1417
    %v1420 = vld [vmem:[%s734] sm:$0xff]
    %v1421 = vld [vmem:[%s734 + $0x8] sm:$0xff]
    %v1422 = vld [vmem:[%s734 + $0x10] sm:$0xff]
    %v1423 = vld [vmem:[%s734 + $0x18] sm:$0xff]
    %v1424 = vld [vmem:[%s739] sm:$0x1]
    %v1426 = vperm.slane %v1424, 0
    %1428 = vmatpush.msra.mxu0 0.0
    %1429 = vmatpush.msra.mxu0 0.0
    %1430 = vmatpush.msra.mxu0 0.0
    %1431 = vmatpush.msra.mxu0 0.0
    %1432 = vmatpush.msra.mxu0 0.0
    %1433 = vmatpush.msra.mxu0 0.0
    %1434 = vmatpush.msra.mxu0 0.0
    %1435 = vmatpush.msra.mxu0 0.0
    %1436 = vmatpush.msra.mxu0 0.0
    %1437 = vmatpush.msra.mxu0 0.0
    %1438 = vmatpush.msra.mxu0 0.0
    %1439 = vmatpush.msra.mxu0 0.0
    %1440 = vmatpush.msra.mxu0 %v1423
    %1441 = vmatpush.msra.mxu0 %v1422
    %1442 = vmatpush.msra.mxu0 %v1421
    %1443 = vmatpush.msra.mxu0 %v1420
    %1444 = vmatmul.f32.gmra.mxu0 %v921
    %v1445 = vpop.f32.mrf.mxu0
    %v1446 = vadd.f32 %v1426, %v1445
    %1447 = vdwg.mxu0
    %v1448 = vld [vmem:[%s764] sm:$0xff]
    %v1449 = vld [vmem:[%s764 + $0x8] sm:$0xff]
    %v1450 = vld [vmem:[%s764 + $0x10] sm:$0xff]
    %v1451 = vld [vmem:[%s764 + $0x18] sm:$0xff]
    %v1452 = vld [vmem:[%s769] sm:$0x1]
    %v1454 = vperm.slane %v1452, 0
    %1456 = vmatpush.msra.mxu0 0.0
    %1457 = vmatpush.msra.mxu0 0.0
    %1458 = vmatpush.msra.mxu0 0.0
    %1459 = vmatpush.msra.mxu0 0.0
    %1460 = vmatpush.msra.mxu0 0.0
    %1461 = vmatpush.msra.mxu0 0.0
    %1462 = vmatpush.msra.mxu0 0.0
    %1463 = vmatpush.msra.mxu0 0.0
    %1464 = vmatpush.msra.mxu0 0.0
    %1465 = vmatpush.msra.mxu0 0.0
    %1466 = vmatpush.msra.mxu0 0.0
    %1467 = vmatpush.msra.mxu0 0.0
    %1468 = vmatpush.msra.mxu0 %v1451
    %1469 = vmatpush.msra.mxu0 %v1450
    %1470 = vmatpush.msra.mxu0 %v1449
    %1471 = vmatpush.msra.mxu0 %v1448
    %1472 = vmatmul.f32.gmra.mxu0 %v921
    %v1473 = vpop.f32.mrf.mxu0
    %v1474 = vadd.f32 %v1454, %v1473
    %1475 = vdwg.mxu0
    %v1476 = vld [vmem:[%s794] sm:$0xff]
    %v1477 = vld [vmem:[%s794 + $0x8] sm:$0xff]
    %v1478 = vld [vmem:[%s794 + $0x10] sm:$0xff]
    %v1479 = vld [vmem:[%s794 + $0x18] sm:$0xff]
    %v1480 = vld [vmem:[%s799] sm:$0x1]
    %v1482 = vperm.slane %v1480, 0
    %1484 = vmatpush.msra.mxu0 0.0
    %1485 = vmatpush.msra.mxu0 0.0
    %1486 = vmatpush.msra.mxu0 0.0
    %1487 = vmatpush.msra.mxu0 0.0
    %1488 = vmatpush.msra.mxu0 0.0
    %1489 = vmatpush.msra.mxu0 0.0
    %1490 = vmatpush.msra.mxu0 0.0
    %1491 = vmatpush.msra.mxu0 0.0
    %1492 = vmatpush.msra.mxu0 0.0
    %1493 = vmatpush.msra.mxu0 0.0
    %1494 = vmatpush.msra.mxu0 0.0
    %1495 = vmatpush.msra.mxu0 0.0
    %1496 = vmatpush.msra.mxu0 %v1479
    %1497 = vmatpush.msra.mxu0 %v1478
    %1498 = vmatpush.msra.mxu0 %v1477
    %1499 = vmatpush.msra.mxu0 %v1476
    %1500 = vmatmul.f32.gmra.mxu0 %v921
    %v1501 = vpop.f32.mrf.mxu0
    %v1502 = vadd.f32 %v1482, %v1501
    %1503 = vdwg.mxu0
    %v1505 = vsel %vm298, %v1446, 0
    %v1508 = vsel %vm298, %v1474, 0
    %1510 = vmatpush.xpose.msra.mxu0 0.0
    %1511 = vmatpush.xpose.msra.mxu0 0.0
    %1512 = vmatpush.xpose.msra.mxu0 0.0
    %1513 = vmatpush.xpose.msra.mxu0 0.0
    %1514 = vmatpush.xpose.msra.mxu0 0.0
    %1515 = vmatpush.xpose.msra.mxu0 0.0
    %1516 = vmatpush.xpose.msra.mxu0 0.0
    %1517 = vmatpush.xpose.msra.mxu0 0.0
    %1518 = vmatpush.xpose.msra.mxu0 0.0
    %1519 = vmatpush.xpose.msra.mxu0 0.0
    %1520 = vmatpush.xpose.msra.mxu0 0.0
    %1521 = vmatpush.xpose.msra.mxu0 0.0
    %1522 = vmatpush.xpose.msra.mxu0 0.0
    %1523 = vmatpush.xpose.msra.mxu0 0.0
    %1524 = vmatpush.xpose.msra.mxu0 0.0
    %1525 = vmatpush.xpose.msra.mxu0 %v1508
    %1526 = vmatmul.f32.gmra.mxu0 %v1505
    %v1527 = vpop.f32.mrf.mxu0
    %v1528 = vadd.f32 %v911, %v1527
    %1529 = vdwg.mxu0
    %v1530 = vsel %vm298, %v1528, -inf
    %1531 = vmax.xlane.f32.xlu0 %v1530
    %v1532 = vpop.xlane.xlu0 %1531
    %v1533 = vsub.f32 %v1528, %v1532
    %v1534 = vmul.f32 %v1533, 1.442695
    %v1535 = vpow.pop %v1534
    %v1536 = vsel %vm298, %v1535, 0.0
    %1537 = vadd.xlane.f32.xlu0 %v1536
    %v1538 = vpop.xlane.xlu0 %1537
    %v1539 = vrcp.pop %v1538
    %v1540 = vmul.f32 %v1535, %v1539
    %v1542 = vsel %vm298, %v1540, 0
    %1544 = vmatpush.msra.mxu0 0.0
    %1545 = vmatpush.msra.mxu0 0.0
    %1546 = vmatpush.msra.mxu0 0.0
    %1547 = vmatpush.msra.mxu0 0.0
    %1548 = vmatpush.msra.mxu0 0.0
    %1549 = vmatpush.msra.mxu0 0.0
    %1550 = vmatpush.msra.mxu0 0.0
    %1551 = vmatpush.msra.mxu0 0.0
    %1552 = vmatpush.msra.mxu0 0.0
    %1553 = vmatpush.msra.mxu0 0.0
    %1554 = vmatpush.msra.mxu0 0.0
    %1555 = vmatpush.msra.mxu0 0.0
    %1556 = vmatpush.msra.mxu0 0.0
    %1557 = vmatpush.msra.mxu0 0.0
    %1558 = vmatpush.msra.mxu0 0.0
    %1559 = vmatpush.msra.mxu0 %v1502
    %1560 = vmatmul.f32.gmra.mxu0 %v1542
    %v1561 = vpop.f32.mrf.mxu0
    %v1562 = vadd.f32 0.0, %v1561
    %1563 = vdwg.mxu0
    %v1564 = vld [vmem:[%s884] sm:$0xff]
    %v1566 = vsel %vm298, %v1562, 0
    %1568 = vmatpush.msra.mxu0 0.0
    %1569 = vmatpush.msra.mxu0 0.0
    %1570 = vmatpush.msra.mxu0 0.0
    %1571 = vmatpush.msra.mxu0 0.0
    %1572 = vmatpush.msra.mxu0 0.0
    %1573 = vmatpush.msra.mxu0 0.0
    %1574 = vmatpush.msra.mxu0 0.0
    %1575 = vmatpush.msra.mxu0 0.0
    %1576 = vmatpush.msra.mxu0 0.0
    %1577 = vmatpush.msra.mxu0 0.0
    %1578 = vmatpush.msra.mxu0 0.0
    %1579 = vmatpush.msra.mxu0 0.0
    %1580 = vmatpush.msra.mxu0 0.0
    %1581 = vmatpush.msra.mxu0 0.0
    %1582 = vmatpush.msra.mxu0 0.0
    %1583 = vmatpush.msra.mxu0 %v1564
    %1584 = vmatmul.f32.gmra.mxu0 %v1566
    %v1585 = vpop.f32.mrf.mxu0
    %v1586 = vadd.f32 0.0, %v1585
    %1587 = vdwg.mxu0
    %v1588 = vadd.f32 %v1419, %v1586
    %1589 = vst.msk [vmem:[#allocation2 + $0x8] sm:$0xff] %vm135, %v1588
    %v1590 = vld [vmem:[#allocation2] sm:$0xff]
    %v1591 = vld [vmem:[#allocation2 + $0x8] sm:$0xff]
    %v1592 = vadd.f32 %v202, %v1590
    %v1593 = vadd.f32 %v203, %v1591
    %v1594 = vld [vmem:[%s13] sm:$0x1]
    %v1596 = vperm.slane %v1594, 0
    %v1598 = vadd.f32 %v1592, %v1596
    %v1599 = vadd.f32 %v1593, %v1596
    %v1600 = vld [vmem:[%s14] sm:$0x1]
    %v1601 = vld [vmem:[%s15] sm:$0x1]
    %v1602 = vsel %vm135, %v1598, 0.0
    %1603 = vadd.xlane.f32.xlu0 %v1602
    %v1604 = vpop.xlane.xlu0 %1603
    %v1605 = vsel %vm135, %v1599, 0.0
    %1606 = vadd.xlane.f32.xlu0 %v1605
    %v1607 = vpop.xlane.xlu0 %1606
    %v1608 = vmul.f32 %v1604, %v155
    %v1609 = vmul.f32 %v1607, %v155
    %v1610 = vsub.f32 %v1598, %v1608
    %v1611 = vsub.f32 %v1599, %v1609
    %v1612 = vmul.f32 %v1610, %v1610
    %v1613 = vmul.f32 %v1611, %v1611
    %v1614 = vsel %vm135, %v1612, 0.0
    %1615 = vadd.xlane.f32.xlu0 %v1614
    %v1616 = vpop.xlane.xlu0 %1615
    %v1617 = vsel %vm135, %v1613, 0.0
    %1618 = vadd.xlane.f32.xlu0 %v1617
    %v1619 = vpop.xlane.xlu0 %1618
    %v1620 = vmul.f32 %v1616, %v155
    %v1621 = vmul.f32 %v1619, %v155
    %v1622 = vadd.f32 %v1620, 1e-12
    %v1623 = vadd.f32 %v1621, 1e-12
    %v1624 = vrsqrt.pop %v1622
    %v1625 = vmul.f32 %v1624, %v1622
    %v1626 = vmul.f32 %v1625, %v1624
    %v1627 = vmul.f32 0.5, %v1626
    %v1628 = vsub.f32 1.5, %v1627
    %v1629 = vmul.f32 %v1624, %v1628
    %vm1630 = vweird.f32 %v1622
    %vm1631 = vweird.f32 %v1624
    %vm1632 = vmor %vm1630, %vm1631
    %v1633 = vsel %vm1632, %v1624, %v1629
    %v1634 = vrsqrt.pop %v1623
    %v1635 = vmul.f32 %v1634, %v1623
    %v1636 = vmul.f32 %v1635, %v1634
    %v1637 = vmul.f32 0.5, %v1636
    %v1638 = vsub.f32 1.5, %v1637
    %v1639 = vmul.f32 %v1634, %v1638
    %vm1640 = vweird.f32 %v1623
    %vm1641 = vweird.f32 %v1634
    %vm1642 = vmor %vm1640, %vm1641
    %v1643 = vsel %vm1642, %v1634, %v1639
    %v1644 = vmul.f32 %v1610, %v1633
    %v1645 = vmul.f32 %v1611, %v1643
    %v1647 = vperm.slane %v1600, 0
    %v1649 = vmul.f32 %v1644, %v1647
    %v1650 = vmul.f32 %v1645, %v1647
    %v1652 = vperm.slane %v1601, 0
    %v1654 = vadd.f32 %v1649, %v1652
    %v1655 = vadd.f32 %v1650, %v1652
    %v1656 = vld [vmem:[%s16] sm:$0xff]
    %v1657 = vld [vmem:[%s16 + $0x8] sm:$0xff]
    %v1658 = vld [vmem:[%s16 + $0x10] sm:$0xff]
    %v1659 = vld [vmem:[%s16 + $0x18] sm:$0xff]
    %v1660 = vld [vmem:[%s17] sm:$0x1]
    %v1662 = vperm.slane %v1660, 0
    %v1665 = vsel %vm135, %v1654, 0
    %v1668 = vsel %vm135, %v1655, 0
    %1670 = vmatpush.msra.mxu0 0.0
    %1671 = vmatpush.msra.mxu0 0.0
    %1672 = vmatpush.msra.mxu0 0.0
    %1673 = vmatpush.msra.mxu0 0.0
    %1674 = vmatpush.msra.mxu0 0.0
    %1675 = vmatpush.msra.mxu0 0.0
    %1676 = vmatpush.msra.mxu0 0.0
    %1677 = vmatpush.msra.mxu0 0.0
    %1678 = vmatpush.msra.mxu0 0.0
    %1679 = vmatpush.msra.mxu0 0.0
    %1680 = vmatpush.msra.mxu0 0.0
    %1681 = vmatpush.msra.mxu0 0.0
    %1682 = vmatpush.msra.mxu0 %v1659
    %1683 = vmatpush.msra.mxu0 %v1658
    %1684 = vmatpush.msra.mxu0 %v1657
    %1685 = vmatpush.msra.mxu0 %v1656
    %1686 = vmatmul.f32.gmra.mxu0 %v1665
    %v1687 = vpop.f32.mrf.mxu0
    %v1688 = vadd.f32 %v1662, %v1687
    %1689 = vmatmul.f32.gmra.mxu0 %v1668
    %v1690 = vpop.f32.mrf.mxu0
    %v1691 = vadd.f32 %v1662, %v1690
    %1692 = vdwg.mxu0
    %v1693 = vmul.f32 %v1688, 0.5
    %v1694 = vmul.f32 %v1691, 0.5
    %v1695 = vmul.f32 %v1688, 0.044715
    %v1696 = vmul.f32 %v1691, 0.044715
    %v1697 = vmul.f32 %v1695, %v1688
    %v1698 = vmul.f32 %v1696, %v1691
    %v1699 = vmul.f32 %v1697, %v1688
    %v1700 = vmul.f32 %v1698, %v1691
    %v1701 = vadd.f32 %v1688, %v1699
    %v1702 = vadd.f32 %v1691, %v1700
    %v1703 = vmul.f32 %v1701, 0.7978846
    %v1704 = vmul.f32 %v1702, 0.7978846
    %v1705 = vtanh.pop %v1703
    %v1706 = vtanh.pop %v1704
    %v1707 = vadd.f32 %v1705, 1.0
    %v1708 = vadd.f32 %v1706, 1.0
    %v1709 = vmul.f32 %v1693, %v1707
    %v1710 = vmul.f32 %v1694, %v1708
    %v1711 = vld [vmem:[%s18] sm:$0xff]
    %v1712 = vld [vmem:[%s18 + $0x8] sm:$0xff]
    %v1713 = vld [vmem:[%s18 + $0x10] sm:$0xff]
    %v1714 = vld [vmem:[%s18 + $0x18] sm:$0xff]
    %v1715 = vld [vmem:[%s18 + $0x20] sm:$0xff]
    %v1716 = vld [vmem:[%s18 + $0x28] sm:$0xff]
    %v1717 = vld [vmem:[%s18 + $0x30] sm:$0xff]
    %v1718 = vld [vmem:[%s18 + $0x38] sm:$0xff]
    %v1719 = vld [vmem:[%s19] sm:$0x1]
    %v1721 = vperm.slane %v1719, 0
    %vm1723 = vcmask 523264
    %v1725 = vsel %vm1723, %v1709, 0
    %v1728 = vsel %vm1723, %v1710, 0
    %1730 = vmatpush.msra.mxu0 0.0
    %1731 = vmatpush.msra.mxu0 0.0
    %1732 = vmatpush.msra.mxu0 0.0
    %1733 = vmatpush.msra.mxu0 0.0
    %1734 = vmatpush.msra.mxu0 0.0
    %1735 = vmatpush.msra.mxu0 0.0
    %1736 = vmatpush.msra.mxu0 0.0
    %1737 = vmatpush.msra.mxu0 0.0
    %1738 = vmatpush.msra.mxu0 %v1718
    %1739 = vmatpush.msra.mxu0 %v1717
    %1740 = vmatpush.msra.mxu0 %v1716
    %1741 = vmatpush.msra.mxu0 %v1715
    %1742 = vmatpush.msra.mxu0 %v1714
    %1743 = vmatpush.msra.mxu0 %v1713
    %1744 = vmatpush.msra.mxu0 %v1712
    %1745 = vmatpush.msra.mxu0 %v1711
    %1746 = vmatmul.f32.gmra.mxu0 %v1725
    %v1747 = vpop.f32.mrf.mxu0
    %v1748 = vadd.f32 %v1721, %v1747
    %1749 = vmatmul.f32.gmra.mxu0 %v1728
    %v1750 = vpop.f32.mrf.mxu0
    %v1751 = vadd.f32 %v1721, %v1750
    %1752 = vdwg.mxu0
    %v1753 = vadd.f32 %v1654, %v1748
    %v1754 = vadd.f32 %v1655, %v1751
    %v1755 = vld [vmem:[%s20] sm:$0x1]
    %v1756 = vld [vmem:[%s21] sm:$0x1]
    %v1757 = vsel %vm135, %v1753, 0.0
    %1758 = vadd.xlane.f32.xlu0 %v1757
    %v1759 = vpop.xlane.xlu0 %1758
    %v1760 = vsel %vm135, %v1754, 0.0
    %1761 = vadd.xlane.f32.xlu0 %v1760
    %v1762 = vpop.xlane.xlu0 %1761
    %v1763 = vmul.f32 %v1759, %v155
    %v1764 = vmul.f32 %v1762, %v155
    %v1765 = vsub.f32 %v1753, %v1763
    %v1766 = vsub.f32 %v1754, %v1764
    %v1767 = vmul.f32 %v1765, %v1765
    %v1768 = vmul.f32 %v1766, %v1766
    %v1769 = vsel %vm135, %v1767, 0.0
    %1770 = vadd.xlane.f32.xlu0 %v1769
    %v1771 = vpop.xlane.xlu0 %1770
    %v1772 = vsel %vm135, %v1768, 0.0
    %1773 = vadd.xlane.f32.xlu0 %v1772
    %v1774 = vpop.xlane.xlu0 %1773
    %v1775 = vmul.f32 %v1771, %v155
    %v1776 = vmul.f32 %v1774, %v155
    %v1777 = vadd.f32 %v1775, 1e-12
    %v1778 = vadd.f32 %v1776, 1e-12
    %v1779 = vrsqrt.pop %v1777
    %v1780 = vmul.f32 %v1779, %v1777
    %v1781 = vmul.f32 %v1780, %v1779
    %v1782 = vmul.f32 0.5, %v1781
    %v1783 = vsub.f32 1.5, %v1782
    %v1784 = vmul.f32 %v1779, %v1783
    %vm1785 = vweird.f32 %v1777
    %vm1786 = vweird.f32 %v1779
    %vm1787 = vmor %vm1785, %vm1786
    %v1788 = vsel %vm1787, %v1779, %v1784
    %v1789 = vrsqrt.pop %v1778
    %v1790 = vmul.f32 %v1789, %v1778
    %v1791 = vmul.f32 %v1790, %v1789
    %v1792 = vmul.f32 0.5, %v1791
    %v1793 = vsub.f32 1.5, %v1792
    %v1794 = vmul.f32 %v1789, %v1793
    %vm1795 = vweird.f32 %v1778
    %vm1796 = vweird.f32 %v1789
    %vm1797 = vmor %vm1795, %vm1796
    %v1798 = vsel %vm1797, %v1789, %v1794
    %v1799 = vmul.f32 %v1765, %v1788
    %v1800 = vmul.f32 %v1766, %v1798
    %v1802 = vperm.slane %v1755, 0
    %v1804 = vmul.f32 %v1799, %v1802
    %v1805 = vmul.f32 %v1800, %v1802
    %v1807 = vperm.slane %v1756, 0
    %v1809 = vadd.f32 %v1804, %v1807
    %v1810 = vadd.f32 %v1805, %v1807
    %s1811 = scalar_lea.vmem %s6, 128
    %v1812 = vld [vmem:[%s1811] sm:$0xff]
    %v1813 = vld [vmem:[%s1811 + $0x8] sm:$0xff]
    %v1814 = vld [vmem:[%s1811 + $0x10] sm:$0xff]
    %v1815 = vld [vmem:[%s1811 + $0x18] sm:$0xff]
    %s1816 = scalar_lea.vmem %s9, 4
    %v1817 = vld [vmem:[%s1816] sm:$0x1]
    %v1819 = vperm.slane %v1817, 0
    %v1822 = vsel %vm135, %v1809, 0
    %1824 = vmatpush.msra.mxu0 0.0
    %1825 = vmatpush.msra.mxu0 0.0
    %1826 = vmatpush.msra.mxu0 0.0
    %1827 = vmatpush.msra.mxu0 0.0
    %1828 = vmatpush.msra.mxu0 0.0
    %1829 = vmatpush.msra.mxu0 0.0
    %1830 = vmatpush.msra.mxu0 0.0
    %1831 = vmatpush.msra.mxu0 0.0
    %1832 = vmatpush.msra.mxu0 0.0
    %1833 = vmatpush.msra.mxu0 0.0
    %1834 = vmatpush.msra.mxu0 0.0
    %1835 = vmatpush.msra.mxu0 0.0
    %1836 = vmatpush.msra.mxu0 %v1815
    %1837 = vmatpush.msra.mxu0 %v1814
    %1838 = vmatpush.msra.mxu0 %v1813
    %1839 = vmatpush.msra.mxu0 %v1812
    %1840 = vmatmul.f32.gmra.mxu0 %v1822
    %v1841 = vpop.f32.mrf.mxu0
    %v1842 = vadd.f32 %v1819, %v1841
    %1843 = vdwg.mxu0
    %s1844 = scalar_lea.vmem %s7, 128
    %v1845 = vld [vmem:[%s1844] sm:$0xff]
    %v1846 = vld [vmem:[%s1844 + $0x8] sm:$0xff]
    %v1847 = vld [vmem:[%s1844 + $0x10] sm:$0xff]
    %v1848 = vld [vmem:[%s1844 + $0x18] sm:$0xff]
    %s1849 = scalar_lea.vmem %s10, 4
    %v1850 = vld [vmem:[%s1849] sm:$0x1]
    %v1852 = vperm.slane %v1850, 0
    %1854 = vmatpush.msra.mxu0 0.0
    %1855 = vmatpush.msra.mxu0 0.0
    %1856 = vmatpush.msra.mxu0 0.0
    %1857 = vmatpush.msra.mxu0 0.0
    %1858 = vmatpush.msra.mxu0 0.0
    %1859 = vmatpush.msra.mxu0 0.0
    %1860 = vmatpush.msra.mxu0 0.0
    %1861 = vmatpush.msra.mxu0 0.0
    %1862 = vmatpush.msra.mxu0 0.0
    %1863 = vmatpush.msra.mxu0 0.0
    %1864 = vmatpush.msra.mxu0 0.0
    %1865 = vmatpush.msra.mxu0 0.0
    %1866 = vmatpush.msra.mxu0 %v1848
    %1867 = vmatpush.msra.mxu0 %v1847
    %1868 = vmatpush.msra.mxu0 %v1846
    %1869 = vmatpush.msra.mxu0 %v1845
    %1870 = vmatmul.f32.gmra.mxu0 %v1822
    %v1871 = vpop.f32.mrf.mxu0
    %v1872 = vadd.f32 %v1852, %v1871
    %1873 = vdwg.mxu0
    %s1874 = scalar_lea.vmem %s8, 128
    %v1875 = vld [vmem:[%s1874] sm:$0xff]
    %v1876 = vld [vmem:[%s1874 + $0x8] sm:$0xff]
    %v1877 = vld [vmem:[%s1874 + $0x10] sm:$0xff]
    %v1878 = vld [vmem:[%s1874 + $0x18] sm:$0xff]
    %s1879 = scalar_lea.vmem %s11, 4
    %v1880 = vld [vmem:[%s1879] sm:$0x1]
    %v1882 = vperm.slane %v1880, 0
    %1884 = vmatpush.msra.mxu0 0.0
    %1885 = vmatpush.msra.mxu0 0.0
    %1886 = vmatpush.msra.mxu0 0.0
    %1887 = vmatpush.msra.mxu0 0.0
    %1888 = vmatpush.msra.mxu0 0.0
    %1889 = vmatpush.msra.mxu0 0.0
    %1890 = vmatpush.msra.mxu0 0.0
    %1891 = vmatpush.msra.mxu0 0.0
    %1892 = vmatpush.msra.mxu0 0.0
    %1893 = vmatpush.msra.mxu0 0.0
    %1894 = vmatpush.msra.mxu0 0.0
    %1895 = vmatpush.msra.mxu0 0.0
    %1896 = vmatpush.msra.mxu0 %v1878
    %1897 = vmatpush.msra.mxu0 %v1877
    %1898 = vmatpush.msra.mxu0 %v1876
    %1899 = vmatpush.msra.mxu0 %v1875
    %1900 = vmatmul.f32.gmra.mxu0 %v1822
    %v1901 = vpop.f32.mrf.mxu0
    %v1902 = vadd.f32 %v1882, %v1901
    %1903 = vdwg.mxu0
    %v1905 = vsel %vm298, %v1842, 0
    %v1908 = vsel %vm298, %v1872, 0
    %1910 = vmatpush.xpose.msra.mxu0 0.0
    %1911 = vmatpush.xpose.msra.mxu0 0.0
    %1912 = vmatpush.xpose.msra.mxu0 0.0
    %1913 = vmatpush.xpose.msra.mxu0 0.0
    %1914 = vmatpush.xpose.msra.mxu0 0.0
    %1915 = vmatpush.xpose.msra.mxu0 0.0
    %1916 = vmatpush.xpose.msra.mxu0 0.0
    %1917 = vmatpush.xpose.msra.mxu0 0.0
    %1918 = vmatpush.xpose.msra.mxu0 0.0
    %1919 = vmatpush.xpose.msra.mxu0 0.0
    %1920 = vmatpush.xpose.msra.mxu0 0.0
    %1921 = vmatpush.xpose.msra.mxu0 0.0
    %1922 = vmatpush.xpose.msra.mxu0 0.0
    %1923 = vmatpush.xpose.msra.mxu0 0.0
    %1924 = vmatpush.xpose.msra.mxu0 0.0
    %1925 = vmatpush.xpose.msra.mxu0 %v1908
    %1926 = vmatmul.f32.gmra.mxu0 %v1905
    %v1927 = vpop.f32.mrf.mxu0
    %v1928 = vadd.f32 %v210, %v1927
    %1929 = vdwg.mxu0
    %v1930 = vsel %vm298, %v1928, -inf
    %1931 = vmax.xlane.f32.xlu0 %v1930
    %v1932 = vpop.xlane.xlu0 %1931
    %v1933 = vsub.f32 %v1928, %v1932
    %v1934 = vmul.f32 %v1933, 1.442695
    %v1935 = vpow.pop %v1934
    %v1936 = vsel %vm298, %v1935, 0.0
    %1937 = vadd.xlane.f32.xlu0 %v1936
    %v1938 = vpop.xlane.xlu0 %1937
    %v1939 = vrcp.pop %v1938
    %v1940 = vmul.f32 %v1935, %v1939
    %v1942 = vsel %vm298, %v1940, 0
    %1944 = vmatpush.msra.mxu0 0.0
    %1945 = vmatpush.msra.mxu0 0.0
    %1946 = vmatpush.msra.mxu0 0.0
    %1947 = vmatpush.msra.mxu0 0.0
    %1948 = vmatpush.msra.mxu0 0.0
    %1949 = vmatpush.msra.mxu0 0.0
    %1950 = vmatpush.msra.mxu0 0.0
    %1951 = vmatpush.msra.mxu0 0.0
    %1952 = vmatpush.msra.mxu0 0.0
    %1953 = vmatpush.msra.mxu0 0.0
    %1954 = vmatpush.msra.mxu0 0.0
    %1955 = vmatpush.msra.mxu0 0.0
    %1956 = vmatpush.msra.mxu0 0.0
    %1957 = vmatpush.msra.mxu0 0.0
    %1958 = vmatpush.msra.mxu0 0.0
    %1959 = vmatpush.msra.mxu0 %v1902
    %1960 = vmatmul.f32.gmra.mxu0 %v1942
    %v1961 = vpop.f32.mrf.mxu0
    %v1962 = vadd.f32 0.0, %v1961
    %1963 = vdwg.mxu0
    %s1964 = scalar_lea.vmem %s12, 32
    %v1965 = vld [vmem:[%s1964] sm:$0xff]
    %s1966 = scalar_lea.vmem %s6, 160
    %v1967 = vld [vmem:[%s1966] sm:$0xff]
    %v1968 = vld [vmem:[%s1966 + $0x8] sm:$0xff]
    %v1969 = vld [vmem:[%s1966 + $0x10] sm:$0xff]
    %v1970 = vld [vmem:[%s1966 + $0x18] sm:$0xff]
    %s1971 = scalar_lea.vmem %s9, 5
    %v1972 = vld [vmem:[%s1971] sm:$0x1]
    %v1974 = vperm.slane %v1972, 0
    %1976 = vmatpush.msra.mxu0 0.0
    %1977 = vmatpush.msra.mxu0 0.0
    %1978 = vmatpush.msra.mxu0 0.0
    %1979 = vmatpush.msra.mxu0 0.0
    %1980 = vmatpush.msra.mxu0 0.0
    %1981 = vmatpush.msra.mxu0 0.0
    %1982 = vmatpush.msra.mxu0 0.0
    %1983 = vmatpush.msra.mxu0 0.0
    %1984 = vmatpush.msra.mxu0 0.0
    %1985 = vmatpush.msra.mxu0 0.0
    %1986 = vmatpush.msra.mxu0 0.0
    %1987 = vmatpush.msra.mxu0 0.0
    %1988 = vmatpush.msra.mxu0 %v1970
    %1989 = vmatpush.msra.mxu0 %v1969
    %1990 = vmatpush.msra.mxu0 %v1968
    %1991 = vmatpush.msra.mxu0 %v1967
    %1992 = vmatmul.f32.gmra.mxu0 %v1822
    %v1993 = vpop.f32.mrf.mxu0
    %v1994 = vadd.f32 %v1974, %v1993
    %1995 = vdwg.mxu0
    %s1996 = scalar_lea.vmem %s7, 160
    %v1997 = vld [vmem:[%s1996] sm:$0xff]
    %v1998 = vld [vmem:[%s1996 + $0x8] sm:$0xff]
    %v1999 = vld [vmem:[%s1996 + $0x10] sm:$0xff]
    %v2000 = vld [vmem:[%s1996 + $0x18] sm:$0xff]
    %s2001 = scalar_lea.vmem %s10, 5
    %v2002 = vld [vmem:[%s2001] sm:$0x1]
    %v2004 = vperm.slane %v2002, 0
    %2006 = vmatpush.msra.mxu0 0.0
    %2007 = vmatpush.msra.mxu0 0.0
    %2008 = vmatpush.msra.mxu0 0.0
    %2009 = vmatpush.msra.mxu0 0.0
    %2010 = vmatpush.msra.mxu0 0.0
    %2011 = vmatpush.msra.mxu0 0.0
    %2012 = vmatpush.msra.mxu0 0.0
    %2013 = vmatpush.msra.mxu0 0.0
    %2014 = vmatpush.msra.mxu0 0.0
    %2015 = vmatpush.msra.mxu0 0.0
    %2016 = vmatpush.msra.mxu0 0.0
    %2017 = vmatpush.msra.mxu0 0.0
    %2018 = vmatpush.msra.mxu0 %v2000
    %2019 = vmatpush.msra.mxu0 %v1999
    %2020 = vmatpush.msra.mxu0 %v1998
    %2021 = vmatpush.msra.mxu0 %v1997
    %2022 = vmatmul.f32.gmra.mxu0 %v1822
    %v2023 = vpop.f32.mrf.mxu0
    %v2024 = vadd.f32 %v2004, %v2023
    %2025 = vdwg.mxu0
    %s2026 = scalar_lea.vmem %s8, 160
    %v2027 = vld [vmem:[%s2026] sm:$0xff]
    %v2028 = vld [vmem:[%s2026 + $0x8] sm:$0xff]
    %v2029 = vld [vmem:[%s2026 + $0x10] sm:$0xff]
    %v2030 = vld [vmem:[%s2026 + $0x18] sm:$0xff]
    %s2031 = scalar_lea.vmem %s11, 5
    %v2032 = vld [vmem:[%s2031] sm:$0x1]
    %v2034 = vperm.slane %v2032, 0
    %2036 = vmatpush.msra.mxu0 0.0
    %2037 = vmatpush.msra.mxu0 0.0
    %2038 = vmatpush.msra.mxu0 0.0
    %2039 = vmatpush.msra.mxu0 0.0
    %2040 = vmatpush.msra.mxu0 0.0
    %2041 = vmatpush.msra.mxu0 0.0
    %2042 = vmatpush.msra.mxu0 0.0
    %2043 = vmatpush.msra.mxu0 0.0
    %2044 = vmatpush.msra.mxu0 0.0
    %2045 = vmatpush.msra.mxu0 0.0
    %2046 = vmatpush.msra.mxu0 0.0
    %2047 = vmatpush.msra.mxu0 0.0
    %2048 = vmatpush.msra.mxu0 %v2030
    %2049 = vmatpush.msra.mxu0 %v2029
    %2050 = vmatpush.msra.mxu0 %v2028
    %2051 = vmatpush.msra.mxu0 %v2027
    %2052 = vmatmul.f32.gmra.mxu0 %v1822
    %v2053 = vpop.f32.mrf.mxu0
    %v2054 = vadd.f32 %v2034, %v2053
    %2055 = vdwg.mxu0
    %v2057 = vsel %vm298, %v1994, 0
    %v2060 = vsel %vm298, %v2024, 0
    %2062 = vmatpush.xpose.msra.mxu0 0.0
    %2063 = vmatpush.xpose.msra.mxu0 0.0
    %2064 = vmatpush.xpose.msra.mxu0 0.0
    %2065 = vmatpush.xpose.msra.mxu0 0.0
    %2066 = vmatpush.xpose.msra.mxu0 0.0
    %2067 = vmatpush.xpose.msra.mxu0 0.0
    %2068 = vmatpush.xpose.msra.mxu0 0.0
    %2069 = vmatpush.xpose.msra.mxu0 0.0
    %2070 = vmatpush.xpose.msra.mxu0 0.0
    %2071 = vmatpush.xpose.msra.mxu0 0.0
    %2072 = vmatpush.xpose.msra.mxu0 0.0
    %2073 = vmatpush.xpose.msra.mxu0 0.0
    %2074 = vmatpush.xpose.msra.mxu0 0.0
    %2075 = vmatpush.xpose.msra.mxu0 0.0
    %2076 = vmatpush.xpose.msra.mxu0 0.0
    %2077 = vmatpush.xpose.msra.mxu0 %v2060
    %2078 = vmatmul.f32.gmra.mxu0 %v2057
    %v2079 = vpop.f32.mrf.mxu0
    %v2080 = vadd.f32 %v210, %v2079
    %2081 = vdwg.mxu0
    %v2082 = vsel %vm298, %v2080, -inf
    %2083 = vmax.xlane.f32.xlu0 %v2082
    %v2084 = vpop.xlane.xlu0 %2083
    %v2085 = vsub.f32 %v2080, %v2084
    %v2086 = vmul.f32 %v2085, 1.442695
    %v2087 = vpow.pop %v2086
    %v2088 = vsel %vm298, %v2087, 0.0
    %2089 = vadd.xlane.f32.xlu0 %v2088
    %v2090 = vpop.xlane.xlu0 %2089
    %v2091 = vrcp.pop %v2090
    %v2092 = vmul.f32 %v2087, %v2091
    %v2094 = vsel %vm298, %v2092, 0
    %2096 = vmatpush.msra.mxu0 0.0
    %2097 = vmatpush.msra.mxu0 0.0
    %2098 = vmatpush.msra.mxu0 0.0
    %2099 = vmatpush.msra.mxu0 0.0
    %2100 = vmatpush.msra.mxu0 0.0
    %2101 = vmatpush.msra.mxu0 0.0
    %2102 = vmatpush.msra.mxu0 0.0
    %2103 = vmatpush.msra.mxu0 0.0
    %2104 = vmatpush.msra.mxu0 0.0
    %2105 = vmatpush.msra.mxu0 0.0
    %2106 = vmatpush.msra.mxu0 0.0
    %2107 = vmatpush.msra.mxu0 0.0
    %2108 = vmatpush.msra.mxu0 0.0
    %2109 = vmatpush.msra.mxu0 0.0
    %2110 = vmatpush.msra.mxu0 0.0
    %2111 = vmatpush.msra.mxu0 %v2054
    %2112 = vmatmul.f32.gmra.mxu0 %v2094
    %v2113 = vpop.f32.mrf.mxu0
    %v2114 = vadd.f32 0.0, %v2113
    %2115 = vdwg.mxu0
    %s2116 = scalar_lea.vmem %s12, 40
    %v2117 = vld [vmem:[%s2116] sm:$0xff]
    %v2119 = vsel %vm298, %v2114, 0
    %2121 = vmatpush.msra.mxu0 0.0
    %2122 = vmatpush.msra.mxu0 0.0
    %2123 = vmatpush.msra.mxu0 0.0
    %2124 = vmatpush.msra.mxu0 0.0
    %2125 = vmatpush.msra.mxu0 0.0
    %2126 = vmatpush.msra.mxu0 0.0
    %2127 = vmatpush.msra.mxu0 0.0
    %2128 = vmatpush.msra.mxu0 0.0
    %2129 = vmatpush.msra.mxu0 0.0
    %2130 = vmatpush.msra.mxu0 0.0
    %2131 = vmatpush.msra.mxu0 0.0
    %2132 = vmatpush.msra.mxu0 0.0
    %2133 = vmatpush.msra.mxu0 0.0
    %2134 = vmatpush.msra.mxu0 0.0
    %2135 = vmatpush.msra.mxu0 0.0
    %2136 = vmatpush.msra.mxu0 %v2117
    %2137 = vmatmul.f32.gmra.mxu0 %v2119
    %v2138 = vpop.f32.mrf.mxu0
    %v2139 = vadd.f32 0.0, %v2138
    %2140 = vdwg.mxu0
    %v2142 = vsel %vm298, %v1962, 0
    %2144 = vmatpush.msra.mxu0 0.0
    %2145 = vmatpush.msra.mxu0 0.0
    %2146 = vmatpush.msra.mxu0 0.0
    %2147 = vmatpush.msra.mxu0 0.0
    %2148 = vmatpush.msra.mxu0 0.0
    %2149 = vmatpush.msra.mxu0 0.0
    %2150 = vmatpush.msra.mxu0 0.0
    %2151 = vmatpush.msra.mxu0 0.0
    %2152 = vmatpush.msra.mxu0 0.0
    %2153 = vmatpush.msra.mxu0 0.0
    %2154 = vmatpush.msra.mxu0 0.0
    %2155 = vmatpush.msra.mxu0 0.0
    %2156 = vmatpush.msra.mxu0 0.0
    %2157 = vmatpush.msra.mxu0 0.0
    %2158 = vmatpush.msra.mxu0 0.0
    %2159 = vmatpush.msra.mxu0 %v1965
    %2160 = vmatmul.f32.gmra.mxu0 %v2142
    %v2161 = vpop.f32.mrf.mxu0
    %v2162 = vadd.f32 %v2139, %v2161
    %2163 = vdwg.mxu0
    %s2164 = scalar_lea.vmem %s6, 192
    %v2165 = vld [vmem:[%s2164] sm:$0xff]
    %v2166 = vld [vmem:[%s2164 + $0x8] sm:$0xff]
    %v2167 = vld [vmem:[%s2164 + $0x10] sm:$0xff]
    %v2168 = vld [vmem:[%s2164 + $0x18] sm:$0xff]
    %s2169 = scalar_lea.vmem %s9, 6
    %v2170 = vld [vmem:[%s2169] sm:$0x1]
    %v2172 = vperm.slane %v2170, 0
    %2174 = vmatpush.msra.mxu0 0.0
    %2175 = vmatpush.msra.mxu0 0.0
    %2176 = vmatpush.msra.mxu0 0.0
    %2177 = vmatpush.msra.mxu0 0.0
    %2178 = vmatpush.msra.mxu0 0.0
    %2179 = vmatpush.msra.mxu0 0.0
    %2180 = vmatpush.msra.mxu0 0.0
    %2181 = vmatpush.msra.mxu0 0.0
    %2182 = vmatpush.msra.mxu0 0.0
    %2183 = vmatpush.msra.mxu0 0.0
    %2184 = vmatpush.msra.mxu0 0.0
    %2185 = vmatpush.msra.mxu0 0.0
    %2186 = vmatpush.msra.mxu0 %v2168
    %2187 = vmatpush.msra.mxu0 %v2167
    %2188 = vmatpush.msra.mxu0 %v2166
    %2189 = vmatpush.msra.mxu0 %v2165
    %2190 = vmatmul.f32.gmra.mxu0 %v1822
    %v2191 = vpop.f32.mrf.mxu0
    %v2192 = vadd.f32 %v2172, %v2191
    %2193 = vdwg.mxu0
    %s2194 = scalar_lea.vmem %s7, 192
    %v2195 = vld [vmem:[%s2194] sm:$0xff]
    %v2196 = vld [vmem:[%s2194 + $0x8] sm:$0xff]
    %v2197 = vld [vmem:[%s2194 + $0x10] sm:$0xff]
    %v2198 = vld [vmem:[%s2194 + $0x18] sm:$0xff]
    %s2199 = scalar_lea.vmem %s10, 6
    %v2200 = vld [vmem:[%s2199] sm:$0x1]
    %v2202 = vperm.slane %v2200, 0
    %2204 = vmatpush.msra.mxu0 0.0
    %2205 = vmatpush.msra.mxu0 0.0
    %2206 = vmatpush.msra.mxu0 0.0
    %2207 = vmatpush.msra.mxu0 0.0
    %2208 = vmatpush.msra.mxu0 0.0
    %2209 = vmatpush.msra.mxu0 0.0
    %2210 = vmatpush.msra.mxu0 0.0
    %2211 = vmatpush.msra.mxu0 0.0
    %2212 = vmatpush.msra.mxu0 0.0
    %2213 = vmatpush.msra.mxu0 0.0
    %2214 = vmatpush.msra.mxu0 0.0
    %2215 = vmatpush.msra.mxu0 0.0
    %2216 = vmatpush.msra.mxu0 %v2198
    %2217 = vmatpush.msra.mxu0 %v2197
    %2218 = vmatpush.msra.mxu0 %v2196
    %2219 = vmatpush.msra.mxu0 %v2195
    %2220 = vmatmul.f32.gmra.mxu0 %v1822
    %v2221 = vpop.f32.mrf.mxu0
    %v2222 = vadd.f32 %v2202, %v2221
    %2223 = vdwg.mxu0
    %s2224 = scalar_lea.vmem %s8, 192
    %v2225 = vld [vmem:[%s2224] sm:$0xff]
    %v2226 = vld [vmem:[%s2224 + $0x8] sm:$0xff]
    %v2227 = vld [vmem:[%s2224 + $0x10] sm:$0xff]
    %v2228 = vld [vmem:[%s2224 + $0x18] sm:$0xff]
    %s2229 = scalar_lea.vmem %s11, 6
    %v2230 = vld [vmem:[%s2229] sm:$0x1]
    %v2232 = vperm.slane %v2230, 0
    %2234 = vmatpush.msra.mxu0 0.0
    %2235 = vmatpush.msra.mxu0 0.0
    %2236 = vmatpush.msra.mxu0 0.0
    %2237 = vmatpush.msra.mxu0 0.0
    %2238 = vmatpush.msra.mxu0 0.0
    %2239 = vmatpush.msra.mxu0 0.0
    %2240 = vmatpush.msra.mxu0 0.0
    %2241 = vmatpush.msra.mxu0 0.0
    %2242 = vmatpush.msra.mxu0 0.0
    %2243 = vmatpush.msra.mxu0 0.0
    %2244 = vmatpush.msra.mxu0 0.0
    %2245 = vmatpush.msra.mxu0 0.0
    %2246 = vmatpush.msra.mxu0 %v2228
    %2247 = vmatpush.msra.mxu0 %v2227
    %2248 = vmatpush.msra.mxu0 %v2226
    %2249 = vmatpush.msra.mxu0 %v2225
    %2250 = vmatmul.f32.gmra.mxu0 %v1822
    %v2251 = vpop.f32.mrf.mxu0
    %v2252 = vadd.f32 %v2232, %v2251
    %2253 = vdwg.mxu0
    %v2255 = vsel %vm298, %v2192, 0
    %v2258 = vsel %vm298, %v2222, 0
    %2260 = vmatpush.xpose.msra.mxu0 0.0
    %2261 = vmatpush.xpose.msra.mxu0 0.0
    %2262 = vmatpush.xpose.msra.mxu0 0.0
    %2263 = vmatpush.xpose.msra.mxu0 0.0
    %2264 = vmatpush.xpose.msra.mxu0 0.0
    %2265 = vmatpush.xpose.msra.mxu0 0.0
    %2266 = vmatpush.xpose.msra.mxu0 0.0
    %2267 = vmatpush.xpose.msra.mxu0 0.0
    %2268 = vmatpush.xpose.msra.mxu0 0.0
    %2269 = vmatpush.xpose.msra.mxu0 0.0
    %2270 = vmatpush.xpose.msra.mxu0 0.0
    %2271 = vmatpush.xpose.msra.mxu0 0.0
    %2272 = vmatpush.xpose.msra.mxu0 0.0
    %2273 = vmatpush.xpose.msra.mxu0 0.0
    %2274 = vmatpush.xpose.msra.mxu0 0.0
    %2275 = vmatpush.xpose.msra.mxu0 %v2258
    %2276 = vmatmul.f32.gmra.mxu0 %v2255
    %v2277 = vpop.f32.mrf.mxu0
    %v2278 = vadd.f32 %v210, %v2277
    %2279 = vdwg.mxu0
    %v2280 = vsel %vm298, %v2278, -inf
    %2281 = vmax.xlane.f32.xlu0 %v2280
    %v2282 = vpop.xlane.xlu0 %2281
    %v2283 = vsub.f32 %v2278, %v2282
    %v2284 = vmul.f32 %v2283, 1.442695
    %v2285 = vpow.pop %v2284
    %v2286 = vsel %vm298, %v2285, 0.0
    %2287 = vadd.xlane.f32.xlu0 %v2286
    %v2288 = vpop.xlane.xlu0 %2287
    %v2289 = vrcp.pop %v2288
    %v2290 = vmul.f32 %v2285, %v2289
    %v2292 = vsel %vm298, %v2290, 0
    %2294 = vmatpush.msra.mxu0 0.0
    %2295 = vmatpush.msra.mxu0 0.0
    %2296 = vmatpush.msra.mxu0 0.0
    %2297 = vmatpush.msra.mxu0 0.0
    %2298 = vmatpush.msra.mxu0 0.0
    %2299 = vmatpush.msra.mxu0 0.0
    %2300 = vmatpush.msra.mxu0 0.0
    %2301 = vmatpush.msra.mxu0 0.0
    %2302 = vmatpush.msra.mxu0 0.0
    %2303 = vmatpush.msra.mxu0 0.0
    %2304 = vmatpush.msra.mxu0 0.0
    %2305 = vmatpush.msra.mxu0 0.0
    %2306 = vmatpush.msra.mxu0 0.0
    %2307 = vmatpush.msra.mxu0 0.0
    %2308 = vmatpush.msra.mxu0 0.0
    %2309 = vmatpush.msra.mxu0 %v2252
    %2310 = vmatmul.f32.gmra.mxu0 %v2292
    %v2311 = vpop.f32.mrf.mxu0
    %v2312 = vadd.f32 0.0, %v2311
    %2313 = vdwg.mxu0
    %s2314 = scalar_lea.vmem %s12, 48
    %v2315 = vld [vmem:[%s2314] sm:$0xff]
    %v2317 = vsel %vm298, %v2312, 0
    %2319 = vmatpush.msra.mxu0 0.0
    %2320 = vmatpush.msra.mxu0 0.0
    %2321 = vmatpush.msra.mxu0 0.0
    %2322 = vmatpush.msra.mxu0 0.0
    %2323 = vmatpush.msra.mxu0 0.0
    %2324 = vmatpush.msra.mxu0 0.0
    %2325 = vmatpush.msra.mxu0 0.0
    %2326 = vmatpush.msra.mxu0 0.0
    %2327 = vmatpush.msra.mxu0 0.0
    %2328 = vmatpush.msra.mxu0 0.0
    %2329 = vmatpush.msra.mxu0 0.0
    %2330 = vmatpush.msra.mxu0 0.0
    %2331 = vmatpush.msra.mxu0 0.0
    %2332 = vmatpush.msra.mxu0 0.0
    %2333 = vmatpush.msra.mxu0 0.0
    %2334 = vmatpush.msra.mxu0 %v2315
    %2335 = vmatmul.f32.gmra.mxu0 %v2317
    %v2336 = vpop.f32.mrf.mxu0
    %v2337 = vadd.f32 0.0, %v2336
    %2338 = vdwg.mxu0
    %v2339 = vadd.f32 %v2162, %v2337
    %s2340 = scalar_lea.vmem %s6, 224
    %v2341 = vld [vmem:[%s2340] sm:$0xff]
    %v2342 = vld [vmem:[%s2340 + $0x8] sm:$0xff]
    %v2343 = vld [vmem:[%s2340 + $0x10] sm:$0xff]
    %v2344 = vld [vmem:[%s2340 + $0x18] sm:$0xff]
    %s2345 = scalar_lea.vmem %s9, 7
    %v2346 = vld [vmem:[%s2345] sm:$0x1]
    %v2348 = vperm.slane %v2346, 0
    %2350 = vmatpush.msra.mxu0 0.0
    %2351 = vmatpush.msra.mxu0 0.0
    %2352 = vmatpush.msra.mxu0 0.0
    %2353 = vmatpush.msra.mxu0 0.0
    %2354 = vmatpush.msra.mxu0 0.0
    %2355 = vmatpush.msra.mxu0 0.0
    %2356 = vmatpush.msra.mxu0 0.0
    %2357 = vmatpush.msra.mxu0 0.0
    %2358 = vmatpush.msra.mxu0 0.0
    %2359 = vmatpush.msra.mxu0 0.0
    %2360 = vmatpush.msra.mxu0 0.0
    %2361 = vmatpush.msra.mxu0 0.0
    %2362 = vmatpush.msra.mxu0 %v2344
    %2363 = vmatpush.msra.mxu0 %v2343
    %2364 = vmatpush.msra.mxu0 %v2342
    %2365 = vmatpush.msra.mxu0 %v2341
    %2366 = vmatmul.f32.gmra.mxu0 %v1822
    %v2367 = vpop.f32.mrf.mxu0
    %v2368 = vadd.f32 %v2348, %v2367
    %2369 = vdwg.mxu0
    %s2370 = scalar_lea.vmem %s7, 224
    %v2371 = vld [vmem:[%s2370] sm:$0xff]
    %v2372 = vld [vmem:[%s2370 + $0x8] sm:$0xff]
    %v2373 = vld [vmem:[%s2370 + $0x10] sm:$0xff]
    %v2374 = vld [vmem:[%s2370 + $0x18] sm:$0xff]
    %s2375 = scalar_lea.vmem %s10, 7
    %v2376 = vld [vmem:[%s2375] sm:$0x1]
    %v2378 = vperm.slane %v2376, 0
    %2380 = vmatpush.msra.mxu0 0.0
    %2381 = vmatpush.msra.mxu0 0.0
    %2382 = vmatpush.msra.mxu0 0.0
    %2383 = vmatpush.msra.mxu0 0.0
    %2384 = vmatpush.msra.mxu0 0.0
    %2385 = vmatpush.msra.mxu0 0.0
    %2386 = vmatpush.msra.mxu0 0.0
    %2387 = vmatpush.msra.mxu0 0.0
    %2388 = vmatpush.msra.mxu0 0.0
    %2389 = vmatpush.msra.mxu0 0.0
    %2390 = vmatpush.msra.mxu0 0.0
    %2391 = vmatpush.msra.mxu0 0.0
    %2392 = vmatpush.msra.mxu0 %v2374
    %2393 = vmatpush.msra.mxu0 %v2373
    %2394 = vmatpush.msra.mxu0 %v2372
    %2395 = vmatpush.msra.mxu0 %v2371
    %2396 = vmatmul.f32.gmra.mxu0 %v1822
    %v2397 = vpop.f32.mrf.mxu0
    %v2398 = vadd.f32 %v2378, %v2397
    %2399 = vdwg.mxu0
    %s2400 = scalar_lea.vmem %s8, 224
    %v2401 = vld [vmem:[%s2400] sm:$0xff]
    %v2402 = vld [vmem:[%s2400 + $0x8] sm:$0xff]
    %v2403 = vld [vmem:[%s2400 + $0x10] sm:$0xff]
    %v2404 = vld [vmem:[%s2400 + $0x18] sm:$0xff]
    %s2405 = scalar_lea.vmem %s11, 7
    %v2406 = vld [vmem:[%s2405] sm:$0x1]
    %v2408 = vperm.slane %v2406, 0
    %2410 = vmatpush.msra.mxu0 0.0
    %2411 = vmatpush.msra.mxu0 0.0
    %2412 = vmatpush.msra.mxu0 0.0
    %2413 = vmatpush.msra.mxu0 0.0
    %2414 = vmatpush.msra.mxu0 0.0
    %2415 = vmatpush.msra.mxu0 0.0
    %2416 = vmatpush.msra.mxu0 0.0
    %2417 = vmatpush.msra.mxu0 0.0
    %2418 = vmatpush.msra.mxu0 0.0
    %2419 = vmatpush.msra.mxu0 0.0
    %2420 = vmatpush.msra.mxu0 0.0
    %2421 = vmatpush.msra.mxu0 0.0
    %2422 = vmatpush.msra.mxu0 %v2404
    %2423 = vmatpush.msra.mxu0 %v2403
    %2424 = vmatpush.msra.mxu0 %v2402
    %2425 = vmatpush.msra.mxu0 %v2401
    %2426 = vmatmul.f32.gmra.mxu0 %v1822
    %v2427 = vpop.f32.mrf.mxu0
    %v2428 = vadd.f32 %v2408, %v2427
    %2429 = vdwg.mxu0
    %v2431 = vsel %vm298, %v2368, 0
    %v2434 = vsel %vm298, %v2398, 0
    %2436 = vmatpush.xpose.msra.mxu0 0.0
    %2437 = vmatpush.xpose.msra.mxu0 0.0
    %2438 = vmatpush.xpose.msra.mxu0 0.0
    %2439 = vmatpush.xpose.msra.mxu0 0.0
    %2440 = vmatpush.xpose.msra.mxu0 0.0
    %2441 = vmatpush.xpose.msra.mxu0 0.0
    %2442 = vmatpush.xpose.msra.mxu0 0.0
    %2443 = vmatpush.xpose.msra.mxu0 0.0
    %2444 = vmatpush.xpose.msra.mxu0 0.0
    %2445 = vmatpush.xpose.msra.mxu0 0.0
    %2446 = vmatpush.xpose.msra.mxu0 0.0
    %2447 = vmatpush.xpose.msra.mxu0 0.0
    %2448 = vmatpush.xpose.msra.mxu0 0.0
    %2449 = vmatpush.xpose.msra.mxu0 0.0
    %2450 = vmatpush.xpose.msra.mxu0 0.0
    %2451 = vmatpush.xpose.msra.mxu0 %v2434
    %2452 = vmatmul.f32.gmra.mxu0 %v2431
    %v2453 = vpop.f32.mrf.mxu0
    %v2454 = vadd.f32 %v210, %v2453
    %2455 = vdwg.mxu0
    %v2456 = vsel %vm298, %v2454, -inf
    %2457 = vmax.xlane.f32.xlu0 %v2456
    %v2458 = vpop.xlane.xlu0 %2457
    %v2459 = vsub.f32 %v2454, %v2458
    %v2460 = vmul.f32 %v2459, 1.442695
    %v2461 = vpow.pop %v2460
    %v2462 = vsel %vm298, %v2461, 0.0
    %2463 = vadd.xlane.f32.xlu0 %v2462
    %v2464 = vpop.xlane.xlu0 %2463
    %v2465 = vrcp.pop %v2464
    %v2466 = vmul.f32 %v2461, %v2465
    %v2468 = vsel %vm298, %v2466, 0
    %2470 = vmatpush.msra.mxu0 0.0
    %2471 = vmatpush.msra.mxu0 0.0
    %2472 = vmatpush.msra.mxu0 0.0
    %2473 = vmatpush.msra.mxu0 0.0
    %2474 = vmatpush.msra.mxu0 0.0
    %2475 = vmatpush.msra.mxu0 0.0
    %2476 = vmatpush.msra.mxu0 0.0
    %2477 = vmatpush.msra.mxu0 0.0
    %2478 = vmatpush.msra.mxu0 0.0
    %2479 = vmatpush.msra.mxu0 0.0
    %2480 = vmatpush.msra.mxu0 0.0
    %2481 = vmatpush.msra.mxu0 0.0
    %2482 = vmatpush.msra.mxu0 0.0
    %2483 = vmatpush.msra.mxu0 0.0
    %2484 = vmatpush.msra.mxu0 0.0
    %2485 = vmatpush.msra.mxu0 %v2428
    %2486 = vmatmul.f32.gmra.mxu0 %v2468
    %v2487 = vpop.f32.mrf.mxu0
    %v2488 = vadd.f32 0.0, %v2487
    %2489 = vdwg.mxu0
    %s2490 = scalar_lea.vmem %s12, 56
    %v2491 = vld [vmem:[%s2490] sm:$0xff]
    %v2493 = vsel %vm298, %v2488, 0
    %2495 = vmatpush.msra.mxu0 0.0
    %2496 = vmatpush.msra.mxu0 0.0
    %2497 = vmatpush.msra.mxu0 0.0
    %2498 = vmatpush.msra.mxu0 0.0
    %2499 = vmatpush.msra.mxu0 0.0
    %2500 = vmatpush.msra.mxu0 0.0
    %2501 = vmatpush.msra.mxu0 0.0
    %2502 = vmatpush.msra.mxu0 0.0
    %2503 = vmatpush.msra.mxu0 0.0
    %2504 = vmatpush.msra.mxu0 0.0
    %2505 = vmatpush.msra.mxu0 0.0
    %2506 = vmatpush.msra.mxu0 0.0
    %2507 = vmatpush.msra.mxu0 0.0
    %2508 = vmatpush.msra.mxu0 0.0
    %2509 = vmatpush.msra.mxu0 0.0
    %2510 = vmatpush.msra.mxu0 %v2491
    %2511 = vmatmul.f32.gmra.mxu0 %v2493
    %v2512 = vpop.f32.mrf.mxu0
    %v2513 = vadd.f32 0.0, %v2512
    %2514 = vdwg.mxu0
    %v2515 = vadd.f32 %v2339, %v2513
    %2516 = vst.msk [vmem:[#allocation2] sm:$0xff] %vm135, %v2515
    %v2517 = vld [vmem:[%s1811] sm:$0xff]
    %v2518 = vld [vmem:[%s1811 + $0x8] sm:$0xff]
    %v2519 = vld [vmem:[%s1811 + $0x10] sm:$0xff]
    %v2520 = vld [vmem:[%s1811 + $0x18] sm:$0xff]
    %v2521 = vld [vmem:[%s1816] sm:$0x1]
    %v2523 = vperm.slane %v2521, 0
    %v2526 = vsel %vm135, %v1810, 0
    %2528 = vmatpush.msra.mxu0 0.0
    %2529 = vmatpush.msra.mxu0 0.0
    %2530 = vmatpush.msra.mxu0 0.0
    %2531 = vmatpush.msra.mxu0 0.0
    %2532 = vmatpush.msra.mxu0 0.0
    %2533 = vmatpush.msra.mxu0 0.0
    %2534 = vmatpush.msra.mxu0 0.0
    %2535 = vmatpush.msra.mxu0 0.0
    %2536 = vmatpush.msra.mxu0 0.0
    %2537 = vmatpush.msra.mxu0 0.0
    %2538 = vmatpush.msra.mxu0 0.0
    %2539 = vmatpush.msra.mxu0 0.0
    %2540 = vmatpush.msra.mxu0 %v2520
    %2541 = vmatpush.msra.mxu0 %v2519
    %2542 = vmatpush.msra.mxu0 %v2518
    %2543 = vmatpush.msra.mxu0 %v2517
    %2544 = vmatmul.f32.gmra.mxu0 %v2526
    %v2545 = vpop.f32.mrf.mxu0
    %v2546 = vadd.f32 %v2523, %v2545
    %2547 = vdwg.mxu0
    %v2548 = vld [vmem:[%s1844] sm:$0xff]
    %v2549 = vld [vmem:[%s1844 + $0x8] sm:$0xff]
    %v2550 = vld [vmem:[%s1844 + $0x10] sm:$0xff]
    %v2551 = vld [vmem:[%s1844 + $0x18] sm:$0xff]
    %v2552 = vld [vmem:[%s1849] sm:$0x1]
    %v2554 = vperm.slane %v2552, 0
    %2556 = vmatpush.msra.mxu0 0.0
    %2557 = vmatpush.msra.mxu0 0.0
    %2558 = vmatpush.msra.mxu0 0.0
    %2559 = vmatpush.msra.mxu0 0.0
    %2560 = vmatpush.msra.mxu0 0.0
    %2561 = vmatpush.msra.mxu0 0.0
    %2562 = vmatpush.msra.mxu0 0.0
    %2563 = vmatpush.msra.mxu0 0.0
    %2564 = vmatpush.msra.mxu0 0.0
    %2565 = vmatpush.msra.mxu0 0.0
    %2566 = vmatpush.msra.mxu0 0.0
    %2567 = vmatpush.msra.mxu0 0.0
    %2568 = vmatpush.msra.mxu0 %v2551
    %2569 = vmatpush.msra.mxu0 %v2550
    %2570 = vmatpush.msra.mxu0 %v2549
    %2571 = vmatpush.msra.mxu0 %v2548
    %2572 = vmatmul.f32.gmra.mxu0 %v2526
    %v2573 = vpop.f32.mrf.mxu0
    %v2574 = vadd.f32 %v2554, %v2573
    %2575 = vdwg.mxu0
    %v2576 = vld [vmem:[%s1874] sm:$0xff]
    %v2577 = vld [vmem:[%s1874 + $0x8] sm:$0xff]
    %v2578 = vld [vmem:[%s1874 + $0x10] sm:$0xff]
    %v2579 = vld [vmem:[%s1874 + $0x18] sm:$0xff]
    %v2580 = vld [vmem:[%s1879] sm:$0x1]
    %v2582 = vperm.slane %v2580, 0
    %2584 = vmatpush.msra.mxu0 0.0
    %2585 = vmatpush.msra.mxu0 0.0
    %2586 = vmatpush.msra.mxu0 0.0
    %2587 = vmatpush.msra.mxu0 0.0
    %2588 = vmatpush.msra.mxu0 0.0
    %2589 = vmatpush.msra.mxu0 0.0
    %2590 = vmatpush.msra.mxu0 0.0
    %2591 = vmatpush.msra.mxu0 0.0
    %2592 = vmatpush.msra.mxu0 0.0
    %2593 = vmatpush.msra.mxu0 0.0
    %2594 = vmatpush.msra.mxu0 0.0
    %2595 = vmatpush.msra.mxu0 0.0
    %2596 = vmatpush.msra.mxu0 %v2579
    %2597 = vmatpush.msra.mxu0 %v2578
    %2598 = vmatpush.msra.mxu0 %v2577
    %2599 = vmatpush.msra.mxu0 %v2576
    %2600 = vmatmul.f32.gmra.mxu0 %v2526
    %v2601 = vpop.f32.mrf.mxu0
    %v2602 = vadd.f32 %v2582, %v2601
    %2603 = vdwg.mxu0
    %v2605 = vsel %vm298, %v2546, 0
    %v2608 = vsel %vm298, %v2574, 0
    %2610 = vmatpush.xpose.msra.mxu0 0.0
    %2611 = vmatpush.xpose.msra.mxu0 0.0
    %2612 = vmatpush.xpose.msra.mxu0 0.0
    %2613 = vmatpush.xpose.msra.mxu0 0.0
    %2614 = vmatpush.xpose.msra.mxu0 0.0
    %2615 = vmatpush.xpose.msra.mxu0 0.0
    %2616 = vmatpush.xpose.msra.mxu0 0.0
    %2617 = vmatpush.xpose.msra.mxu0 0.0
    %2618 = vmatpush.xpose.msra.mxu0 0.0
    %2619 = vmatpush.xpose.msra.mxu0 0.0
    %2620 = vmatpush.xpose.msra.mxu0 0.0
    %2621 = vmatpush.xpose.msra.mxu0 0.0
    %2622 = vmatpush.xpose.msra.mxu0 0.0
    %2623 = vmatpush.xpose.msra.mxu0 0.0
    %2624 = vmatpush.xpose.msra.mxu0 0.0
    %2625 = vmatpush.xpose.msra.mxu0 %v2608
    %2626 = vmatmul.f32.gmra.mxu0 %v2605
    %v2627 = vpop.f32.mrf.mxu0
    %v2628 = vadd.f32 %v911, %v2627
    %2629 = vdwg.mxu0
    %v2630 = vsel %vm298, %v2628, -inf
    %2631 = vmax.xlane.f32.xlu0 %v2630
    %v2632 = vpop.xlane.xlu0 %2631
    %v2633 = vsub.f32 %v2628, %v2632
    %v2634 = vmul.f32 %v2633, 1.442695
    %v2635 = vpow.pop %v2634
    %v2636 = vsel %vm298, %v2635, 0.0
    %2637 = vadd.xlane.f32.xlu0 %v2636
    %v2638 = vpop.xlane.xlu0 %2637
    %v2639 = vrcp.pop %v2638
    %v2640 = vmul.f32 %v2635, %v2639
    %v2642 = vsel %vm298, %v2640, 0
    %2644 = vmatpush.msra.mxu0 0.0
    %2645 = vmatpush.msra.mxu0 0.0
    %2646 = vmatpush.msra.mxu0 0.0
    %2647 = vmatpush.msra.mxu0 0.0
    %2648 = vmatpush.msra.mxu0 0.0
    %2649 = vmatpush.msra.mxu0 0.0
    %2650 = vmatpush.msra.mxu0 0.0
    %2651 = vmatpush.msra.mxu0 0.0
    %2652 = vmatpush.msra.mxu0 0.0
    %2653 = vmatpush.msra.mxu0 0.0
    %2654 = vmatpush.msra.mxu0 0.0
    %2655 = vmatpush.msra.mxu0 0.0
    %2656 = vmatpush.msra.mxu0 0.0
    %2657 = vmatpush.msra.mxu0 0.0
    %2658 = vmatpush.msra.mxu0 0.0
    %2659 = vmatpush.msra.mxu0 %v2602
    %2660 = vmatmul.f32.gmra.mxu0 %v2642
    %v2661 = vpop.f32.mrf.mxu0
    %v2662 = vadd.f32 0.0, %v2661
    %2663 = vdwg.mxu0
    %v2664 = vld [vmem:[%s1964] sm:$0xff]
    %v2665 = vld [vmem:[%s1966] sm:$0xff]
    %v2666 = vld [vmem:[%s1966 + $0x8] sm:$0xff]
    %v2667 = vld [vmem:[%s1966 + $0x10] sm:$0xff]
    %v2668 = vld [vmem:[%s1966 + $0x18] sm:$0xff]
    %v2669 = vld [vmem:[%s1971] sm:$0x1]
    %v2671 = vperm.slane %v2669, 0
    %2673 = vmatpush.msra.mxu0 0.0
    %2674 = vmatpush.msra.mxu0 0.0
    %2675 = vmatpush.msra.mxu0 0.0
    %2676 = vmatpush.msra.mxu0 0.0
    %2677 = vmatpush.msra.mxu0 0.0
    %2678 = vmatpush.msra.mxu0 0.0
    %2679 = vmatpush.msra.mxu0 0.0
    %2680 = vmatpush.msra.mxu0 0.0
    %2681 = vmatpush.msra.mxu0 0.0
    %2682 = vmatpush.msra.mxu0 0.0
    %2683 = vmatpush.msra.mxu0 0.0
    %2684 = vmatpush.msra.mxu0 0.0
    %2685 = vmatpush.msra.mxu0 %v2668
    %2686 = vmatpush.msra.mxu0 %v2667
    %2687 = vmatpush.msra.mxu0 %v2666
    %2688 = vmatpush.msra.mxu0 %v2665
    %2689 = vmatmul.f32.gmra.mxu0 %v2526
    %v2690 = vpop.f32.mrf.mxu0
    %v2691 = vadd.f32 %v2671, %v2690
    %2692 = vdwg.mxu0
    %v2693 = vld [vmem:[%s1996] sm:$0xff]
    %v2694 = vld [vmem:[%s1996 + $0x8] sm:$0xff]
    %v2695 = vld [vmem:[%s1996 + $0x10] sm:$0xff]
    %v2696 = vld [vmem:[%s1996 + $0x18] sm:$0xff]
    %v2697 = vld [vmem:[%s2001] sm:$0x1]
    %v2699 = vperm.slane %v2697, 0
    %2701 = vmatpush.msra.mxu0 0.0
    %2702 = vmatpush.msra.mxu0 0.0
    %2703 = vmatpush.msra.mxu0 0.0
    %2704 = vmatpush.msra.mxu0 0.0
    %2705 = vmatpush.msra.mxu0 0.0
    %2706 = vmatpush.msra.mxu0 0.0
    %2707 = vmatpush.msra.mxu0 0.0
    %2708 = vmatpush.msra.mxu0 0.0
    %2709 = vmatpush.msra.mxu0 0.0
    %2710 = vmatpush.msra.mxu0 0.0
    %2711 = vmatpush.msra.mxu0 0.0
    %2712 = vmatpush.msra.mxu0 0.0
    %2713 = vmatpush.msra.mxu0 %v2696
    %2714 = vmatpush.msra.mxu0 %v2695
    %2715 = vmatpush.msra.mxu0 %v2694
    %2716 = vmatpush.msra.mxu0 %v2693
    %2717 = vmatmul.f32.gmra.mxu0 %v2526
    %v2718 = vpop.f32.mrf.mxu0
    %v2719 = vadd.f32 %v2699, %v2718
    %2720 = vdwg.mxu0
    %v2721 = vld [vmem:[%s2026] sm:$0xff]
    %v2722 = vld [vmem:[%s2026 + $0x8] sm:$0xff]
    %v2723 = vld [vmem:[%s2026 + $0x10] sm:$0xff]
    %v2724 = vld [vmem:[%s2026 + $0x18] sm:$0xff]
    %v2725 = vld [vmem:[%s2031] sm:$0x1]
    %v2727 = vperm.slane %v2725, 0
    %2729 = vmatpush.msra.mxu0 0.0
    %2730 = vmatpush.msra.mxu0 0.0
    %2731 = vmatpush.msra.mxu0 0.0
    %2732 = vmatpush.msra.mxu0 0.0
    %2733 = vmatpush.msra.mxu0 0.0
    %2734 = vmatpush.msra.mxu0 0.0
    %2735 = vmatpush.msra.mxu0 0.0
    %2736 = vmatpush.msra.mxu0 0.0
    %2737 = vmatpush.msra.mxu0 0.0
    %2738 = vmatpush.msra.mxu0 0.0
    %2739 = vmatpush.msra.mxu0 0.0
    %2740 = vmatpush.msra.mxu0 0.0
    %2741 = vmatpush.msra.mxu0 %v2724
    %2742 = vmatpush.msra.mxu0 %v2723
    %2743 = vmatpush.msra.mxu0 %v2722
    %2744 = vmatpush.msra.mxu0 %v2721
    %2745 = vmatmul.f32.gmra.mxu0 %v2526
    %v2746 = vpop.f32.mrf.mxu0
    %v2747 = vadd.f32 %v2727, %v2746
    %2748 = vdwg.mxu0
    %v2750 = vsel %vm298, %v2691, 0
    %v2753 = vsel %vm298, %v2719, 0
    %2755 = vmatpush.xpose.msra.mxu0 0.0
    %2756 = vmatpush.xpose.msra.mxu0 0.0
    %2757 = vmatpush.xpose.msra.mxu0 0.0
    %2758 = vmatpush.xpose.msra.mxu0 0.0
    %2759 = vmatpush.xpose.msra.mxu0 0.0
    %2760 = vmatpush.xpose.msra.mxu0 0.0
    %2761 = vmatpush.xpose.msra.mxu0 0.0
    %2762 = vmatpush.xpose.msra.mxu0 0.0
    %2763 = vmatpush.xpose.msra.mxu0 0.0
    %2764 = vmatpush.xpose.msra.mxu0 0.0
    %2765 = vmatpush.xpose.msra.mxu0 0.0
    %2766 = vmatpush.xpose.msra.mxu0 0.0
    %2767 = vmatpush.xpose.msra.mxu0 0.0
    %2768 = vmatpush.xpose.msra.mxu0 0.0
    %2769 = vmatpush.xpose.msra.mxu0 0.0
    %2770 = vmatpush.xpose.msra.mxu0 %v2753
    %2771 = vmatmul.f32.gmra.mxu0 %v2750
    %v2772 = vpop.f32.mrf.mxu0
    %v2773 = vadd.f32 %v911, %v2772
    %2774 = vdwg.mxu0
    %v2775 = vsel %vm298, %v2773, -inf
    %2776 = vmax.xlane.f32.xlu0 %v2775
    %v2777 = vpop.xlane.xlu0 %2776
    %v2778 = vsub.f32 %v2773, %v2777
    %v2779 = vmul.f32 %v2778, 1.442695
    %v2780 = vpow.pop %v2779
    %v2781 = vsel %vm298, %v2780, 0.0
    %2782 = vadd.xlane.f32.xlu0 %v2781
    %v2783 = vpop.xlane.xlu0 %2782
    %v2784 = vrcp.pop %v2783
    %v2785 = vmul.f32 %v2780, %v2784
    %v2787 = vsel %vm298, %v2785, 0
    %2789 = vmatpush.msra.mxu0 0.0
    %2790 = vmatpush.msra.mxu0 0.0
    %2791 = vmatpush.msra.mxu0 0.0
    %2792 = vmatpush.msra.mxu0 0.0
    %2793 = vmatpush.msra.mxu0 0.0
    %2794 = vmatpush.msra.mxu0 0.0
    %2795 = vmatpush.msra.mxu0 0.0
    %2796 = vmatpush.msra.mxu0 0.0
    %2797 = vmatpush.msra.mxu0 0.0
    %2798 = vmatpush.msra.mxu0 0.0
    %2799 = vmatpush.msra.mxu0 0.0
    %2800 = vmatpush.msra.mxu0 0.0
    %2801 = vmatpush.msra.mxu0 0.0
    %2802 = vmatpush.msra.mxu0 0.0
    %2803 = vmatpush.msra.mxu0 0.0
    %2804 = vmatpush.msra.mxu0 %v2747
    %2805 = vmatmul.f32.gmra.mxu0 %v2787
    %v2806 = vpop.f32.mrf.mxu0
    %v2807 = vadd.f32 0.0, %v2806
    %2808 = vdwg.mxu0
    %v2809 = vld [vmem:[%s2116] sm:$0xff]
    %v2811 = vsel %vm298, %v2807, 0
    %2813 = vmatpush.msra.mxu0 0.0
    %2814 = vmatpush.msra.mxu0 0.0
    %2815 = vmatpush.msra.mxu0 0.0
    %2816 = vmatpush.msra.mxu0 0.0
    %2817 = vmatpush.msra.mxu0 0.0
    %2818 = vmatpush.msra.mxu0 0.0
    %2819 = vmatpush.msra.mxu0 0.0
    %2820 = vmatpush.msra.mxu0 0.0
    %2821 = vmatpush.msra.mxu0 0.0
    %2822 = vmatpush.msra.mxu0 0.0
    %2823 = vmatpush.msra.mxu0 0.0
    %2824 = vmatpush.msra.mxu0 0.0
    %2825 = vmatpush.msra.mxu0 0.0
    %2826 = vmatpush.msra.mxu0 0.0
    %2827 = vmatpush.msra.mxu0 0.0
    %2828 = vmatpush.msra.mxu0 %v2809
    %2829 = vmatmul.f32.gmra.mxu0 %v2811
    %v2830 = vpop.f32.mrf.mxu0
    %v2831 = vadd.f32 0.0, %v2830
    %2832 = vdwg.mxu0
    %v2834 = vsel %vm298, %v2662, 0
    %2836 = vmatpush.msra.mxu0 0.0
    %2837 = vmatpush.msra.mxu0 0.0
    %2838 = vmatpush.msra.mxu0 0.0
    %2839 = vmatpush.msra.mxu0 0.0
    %2840 = vmatpush.msra.mxu0 0.0
    %2841 = vmatpush.msra.mxu0 0.0
    %2842 = vmatpush.msra.mxu0 0.0
    %2843 = vmatpush.msra.mxu0 0.0
    %2844 = vmatpush.msra.mxu0 0.0
    %2845 = vmatpush.msra.mxu0 0.0
    %2846 = vmatpush.msra.mxu0 0.0
    %2847 = vmatpush.msra.mxu0 0.0
    %2848 = vmatpush.msra.mxu0 0.0
    %2849 = vmatpush.msra.mxu0 0.0
    %2850 = vmatpush.msra.mxu0 0.0
    %2851 = vmatpush.msra.mxu0 %v2664
    %2852 = vmatmul.f32.gmra.mxu0 %v2834
    %v2853 = vpop.f32.mrf.mxu0
    %v2854 = vadd.f32 %v2831, %v2853
    %2855 = vdwg.mxu0
    %v2856 = vld [vmem:[%s2164] sm:$0xff]
    %v2857 = vld [vmem:[%s2164 + $0x8] sm:$0xff]
    %v2858 = vld [vmem:[%s2164 + $0x10] sm:$0xff]
    %v2859 = vld [vmem:[%s2164 + $0x18] sm:$0xff]
    %v2860 = vld [vmem:[%s2169] sm:$0x1]
    %v2862 = vperm.slane %v2860, 0
    %2864 = vmatpush.msra.mxu0 0.0
    %2865 = vmatpush.msra.mxu0 0.0
    %2866 = vmatpush.msra.mxu0 0.0
    %2867 = vmatpush.msra.mxu0 0.0
    %2868 = vmatpush.msra.mxu0 0.0
    %2869 = vmatpush.msra.mxu0 0.0
    %2870 = vmatpush.msra.mxu0 0.0
    %2871 = vmatpush.msra.mxu0 0.0
    %2872 = vmatpush.msra.mxu0 0.0
    %2873 = vmatpush.msra.mxu0 0.0
    %2874 = vmatpush.msra.mxu0 0.0
    %2875 = vmatpush.msra.mxu0 0.0
    %2876 = vmatpush.msra.mxu0 %v2859
    %2877 = vmatpush.msra.mxu0 %v2858
    %2878 = vmatpush.msra.mxu0 %v2857
    %2879 = vmatpush.msra.mxu0 %v2856
    %2880 = vmatmul.f32.gmra.mxu0 %v2526
    %v2881 = vpop.f32.mrf.mxu0
    %v2882 = vadd.f32 %v2862, %v2881
    %2883 = vdwg.mxu0
    %v2884 = vld [vmem:[%s2194] sm:$0xff]
    %v2885 = vld [vmem:[%s2194 + $0x8] sm:$0xff]
    %v2886 = vld [vmem:[%s2194 + $0x10] sm:$0xff]
    %v2887 = vld [vmem:[%s2194 + $0x18] sm:$0xff]
    %v2888 = vld [vmem:[%s2199] sm:$0x1]
    %v2890 = vperm.slane %v2888, 0
    %2892 = vmatpush.msra.mxu0 0.0
    %2893 = vmatpush.msra.mxu0 0.0
    %2894 = vmatpush.msra.mxu0 0.0
    %2895 = vmatpush.msra.mxu0 0.0
    %2896 = vmatpush.msra.mxu0 0.0
    %2897 = vmatpush.msra.mxu0 0.0
    %2898 = vmatpush.msra.mxu0 0.0
    %2899 = vmatpush.msra.mxu0 0.0
    %2900 = vmatpush.msra.mxu0 0.0
    %2901 = vmatpush.msra.mxu0 0.0
    %2902 = vmatpush.msra.mxu0 0.0
    %2903 = vmatpush.msra.mxu0 0.0
    %2904 = vmatpush.msra.mxu0 %v2887
    %2905 = vmatpush.msra.mxu0 %v2886
    %2906 = vmatpush.msra.mxu0 %v2885
    %2907 = vmatpush.msra.mxu0 %v2884
    %2908 = vmatmul.f32.gmra.mxu0 %v2526
    %v2909 = vpop.f32.mrf.mxu0
    %v2910 = vadd.f32 %v2890, %v2909
    %2911 = vdwg.mxu0
    %v2912 = vld [vmem:[%s2224] sm:$0xff]
    %v2913 = vld [vmem:[%s2224 + $0x8] sm:$0xff]
    %v2914 = vld [vmem:[%s2224 + $0x10] sm:$0xff]
    %v2915 = vld [vmem:[%s2224 + $0x18] sm:$0xff]
    %v2916 = vld [vmem:[%s2229] sm:$0x1]
    %v2918 = vperm.slane %v2916, 0
    %2920 = vmatpush.msra.mxu0 0.0
    %2921 = vmatpush.msra.mxu0 0.0
    %2922 = vmatpush.msra.mxu0 0.0
    %2923 = vmatpush.msra.mxu0 0.0
    %2924 = vmatpush.msra.mxu0 0.0
    %2925 = vmatpush.msra.mxu0 0.0
    %2926 = vmatpush.msra.mxu0 0.0
    %2927 = vmatpush.msra.mxu0 0.0
    %2928 = vmatpush.msra.mxu0 0.0
    %2929 = vmatpush.msra.mxu0 0.0
    %2930 = vmatpush.msra.mxu0 0.0
    %2931 = vmatpush.msra.mxu0 0.0
    %2932 = vmatpush.msra.mxu0 %v2915
    %2933 = vmatpush.msra.mxu0 %v2914
    %2934 = vmatpush.msra.mxu0 %v2913
    %2935 = vmatpush.msra.mxu0 %v2912
    %2936 = vmatmul.f32.gmra.mxu0 %v2526
    %v2937 = vpop.f32.mrf.mxu0
    %v2938 = vadd.f32 %v2918, %v2937
    %2939 = vdwg.mxu0
    %v2941 = vsel %vm298, %v2882, 0
    %v2944 = vsel %vm298, %v2910, 0
    %2946 = vmatpush.xpose.msra.mxu0 0.0
    %2947 = vmatpush.xpose.msra.mxu0 0.0
    %2948 = vmatpush.xpose.msra.mxu0 0.0
    %2949 = vmatpush.xpose.msra.mxu0 0.0
    %2950 = vmatpush.xpose.msra.mxu0 0.0
    %2951 = vmatpush.xpose.msra.mxu0 0.0
    %2952 = vmatpush.xpose.msra.mxu0 0.0
    %2953 = vmatpush.xpose.msra.mxu0 0.0
    %2954 = vmatpush.xpose.msra.mxu0 0.0
    %2955 = vmatpush.xpose.msra.mxu0 0.0
    %2956 = vmatpush.xpose.msra.mxu0 0.0
    %2957 = vmatpush.xpose.msra.mxu0 0.0
    %2958 = vmatpush.xpose.msra.mxu0 0.0
    %2959 = vmatpush.xpose.msra.mxu0 0.0
    %2960 = vmatpush.xpose.msra.mxu0 0.0
    %2961 = vmatpush.xpose.msra.mxu0 %v2944
    %2962 = vmatmul.f32.gmra.mxu0 %v2941
    %v2963 = vpop.f32.mrf.mxu0
    %v2964 = vadd.f32 %v911, %v2963
    %2965 = vdwg.mxu0
    %v2966 = vsel %vm298, %v2964, -inf
    %2967 = vmax.xlane.f32.xlu0 %v2966
    %v2968 = vpop.xlane.xlu0 %2967
    %v2969 = vsub.f32 %v2964, %v2968
    %v2970 = vmul.f32 %v2969, 1.442695
    %v2971 = vpow.pop %v2970
    %v2972 = vsel %vm298, %v2971, 0.0
    %2973 = vadd.xlane.f32.xlu0 %v2972
    %v2974 = vpop.xlane.xlu0 %2973
    %v2975 = vrcp.pop %v2974
    %v2976 = vmul.f32 %v2971, %v2975
    %v2978 = vsel %vm298, %v2976, 0
    %2980 = vmatpush.msra.mxu0 0.0
    %2981 = vmatpush.msra.mxu0 0.0
    %2982 = vmatpush.msra.mxu0 0.0
    %2983 = vmatpush.msra.mxu0 0.0
    %2984 = vmatpush.msra.mxu0 0.0
    %2985 = vmatpush.msra.mxu0 0.0
    %2986 = vmatpush.msra.mxu0 0.0
    %2987 = vmatpush.msra.mxu0 0.0
    %2988 = vmatpush.msra.mxu0 0.0
    %2989 = vmatpush.msra.mxu0 0.0
    %2990 = vmatpush.msra.mxu0 0.0
    %2991 = vmatpush.msra.mxu0 0.0
    %2992 = vmatpush.msra.mxu0 0.0
    %2993 = vmatpush.msra.mxu0 0.0
    %2994 = vmatpush.msra.mxu0 0.0
    %2995 = vmatpush.msra.mxu0 %v2938
    %2996 = vmatmul.f32.gmra.mxu0 %v2978
    %v2997 = vpop.f32.mrf.mxu0
    %v2998 = vadd.f32 0.0, %v2997
    %2999 = vdwg.mxu0
    %v3000 = vld [vmem:[%s2314] sm:$0xff]
    %v3002 = vsel %vm298, %v2998, 0
    %3004 = vmatpush.msra.mxu0 0.0
    %3005 = vmatpush.msra.mxu0 0.0
    %3006 = vmatpush.msra.mxu0 0.0
    %3007 = vmatpush.msra.mxu0 0.0
    %3008 = vmatpush.msra.mxu0 0.0
    %3009 = vmatpush.msra.mxu0 0.0
    %3010 = vmatpush.msra.mxu0 0.0
    %3011 = vmatpush.msra.mxu0 0.0
    %3012 = vmatpush.msra.mxu0 0.0
    %3013 = vmatpush.msra.mxu0 0.0
    %3014 = vmatpush.msra.mxu0 0.0
    %3015 = vmatpush.msra.mxu0 0.0
    %3016 = vmatpush.msra.mxu0 0.0
    %3017 = vmatpush.msra.mxu0 0.0
    %3018 = vmatpush.msra.mxu0 0.0
    %3019 = vmatpush.msra.mxu0 %v3000
    %3020 = vmatmul.f32.gmra.mxu0 %v3002
    %v3021 = vpop.f32.mrf.mxu0
    %v3022 = vadd.f32 0.0, %v3021
    %3023 = vdwg.mxu0
    %v3024 = vadd.f32 %v2854, %v3022
    %v3025 = vld [vmem:[%s2340] sm:$0xff]
    %v3026 = vld [vmem:[%s2340 + $0x8] sm:$0xff]
    %v3027 = vld [vmem:[%s2340 + $0x10] sm:$0xff]
    %v3028 = vld [vmem:[%s2340 + $0x18] sm:$0xff]
    %v3029 = vld [vmem:[%s2345] sm:$0x1]
    %v3031 = vperm.slane %v3029, 0
    %3033 = vmatpush.msra.mxu0 0.0
    %3034 = vmatpush.msra.mxu0 0.0
    %3035 = vmatpush.msra.mxu0 0.0
    %3036 = vmatpush.msra.mxu0 0.0
    %3037 = vmatpush.msra.mxu0 0.0
    %3038 = vmatpush.msra.mxu0 0.0
    %3039 = vmatpush.msra.mxu0 0.0
    %3040 = vmatpush.msra.mxu0 0.0
    %3041 = vmatpush.msra.mxu0 0.0
    %3042 = vmatpush.msra.mxu0 0.0
    %3043 = vmatpush.msra.mxu0 0.0
    %3044 = vmatpush.msra.mxu0 0.0
    %3045 = vmatpush.msra.mxu0 %v3028
    %3046 = vmatpush.msra.mxu0 %v3027
    %3047 = vmatpush.msra.mxu0 %v3026
    %3048 = vmatpush.msra.mxu0 %v3025
    %3049 = vmatmul.f32.gmra.mxu0 %v2526
    %v3050 = vpop.f32.mrf.mxu0
    %v3051 = vadd.f32 %v3031, %v3050
    %3052 = vdwg.mxu0
    %v3053 = vld [vmem:[%s2370] sm:$0xff]
    %v3054 = vld [vmem:[%s2370 + $0x8] sm:$0xff]
    %v3055 = vld [vmem:[%s2370 + $0x10] sm:$0xff]
    %v3056 = vld [vmem:[%s2370 + $0x18] sm:$0xff]
    %v3057 = vld [vmem:[%s2375] sm:$0x1]
    %v3059 = vperm.slane %v3057, 0
    %3061 = vmatpush.msra.mxu0 0.0
    %3062 = vmatpush.msra.mxu0 0.0
    %3063 = vmatpush.msra.mxu0 0.0
    %3064 = vmatpush.msra.mxu0 0.0
    %3065 = vmatpush.msra.mxu0 0.0
    %3066 = vmatpush.msra.mxu0 0.0
    %3067 = vmatpush.msra.mxu0 0.0
    %3068 = vmatpush.msra.mxu0 0.0
    %3069 = vmatpush.msra.mxu0 0.0
    %3070 = vmatpush.msra.mxu0 0.0
    %3071 = vmatpush.msra.mxu0 0.0
    %3072 = vmatpush.msra.mxu0 0.0
    %3073 = vmatpush.msra.mxu0 %v3056
    %3074 = vmatpush.msra.mxu0 %v3055
    %3075 = vmatpush.msra.mxu0 %v3054
    %3076 = vmatpush.msra.mxu0 %v3053
    %3077 = vmatmul.f32.gmra.mxu0 %v2526
    %v3078 = vpop.f32.mrf.mxu0
    %v3079 = vadd.f32 %v3059, %v3078
    %3080 = vdwg.mxu0
    %v3081 = vld [vmem:[%s2400] sm:$0xff]
    %v3082 = vld [vmem:[%s2400 + $0x8] sm:$0xff]
    %v3083 = vld [vmem:[%s2400 + $0x10] sm:$0xff]
    %v3084 = vld [vmem:[%s2400 + $0x18] sm:$0xff]
    %v3085 = vld [vmem:[%s2405] sm:$0x1]
    %v3087 = vperm.slane %v3085, 0
    %3089 = vmatpush.msra.mxu0 0.0
    %3090 = vmatpush.msra.mxu0 0.0
    %3091 = vmatpush.msra.mxu0 0.0
    %3092 = vmatpush.msra.mxu0 0.0
    %3093 = vmatpush.msra.mxu0 0.0
    %3094 = vmatpush.msra.mxu0 0.0
    %3095 = vmatpush.msra.mxu0 0.0
    %3096 = vmatpush.msra.mxu0 0.0
    %3097 = vmatpush.msra.mxu0 0.0
    %3098 = vmatpush.msra.mxu0 0.0
    %3099 = vmatpush.msra.mxu0 0.0
    %3100 = vmatpush.msra.mxu0 0.0
    %3101 = vmatpush.msra.mxu0 %v3084
    %3102 = vmatpush.msra.mxu0 %v3083
    %3103 = vmatpush.msra.mxu0 %v3082
    %3104 = vmatpush.msra.mxu0 %v3081
    %3105 = vmatmul.f32.gmra.mxu0 %v2526
    %v3106 = vpop.f32.mrf.mxu0
    %v3107 = vadd.f32 %v3087, %v3106
    %3108 = vdwg.mxu0
    %v3110 = vsel %vm298, %v3051, 0
    %v3113 = vsel %vm298, %v3079, 0
    %3115 = vmatpush.xpose.msra.mxu0 0.0
    %3116 = vmatpush.xpose.msra.mxu0 0.0
    %3117 = vmatpush.xpose.msra.mxu0 0.0
    %3118 = vmatpush.xpose.msra.mxu0 0.0
    %3119 = vmatpush.xpose.msra.mxu0 0.0
    %3120 = vmatpush.xpose.msra.mxu0 0.0
    %3121 = vmatpush.xpose.msra.mxu0 0.0
    %3122 = vmatpush.xpose.msra.mxu0 0.0
    %3123 = vmatpush.xpose.msra.mxu0 0.0
    %3124 = vmatpush.xpose.msra.mxu0 0.0
    %3125 = vmatpush.xpose.msra.mxu0 0.0
    %3126 = vmatpush.xpose.msra.mxu0 0.0
    %3127 = vmatpush.xpose.msra.mxu0 0.0
    %3128 = vmatpush.xpose.msra.mxu0 0.0
    %3129 = vmatpush.xpose.msra.mxu0 0.0
    %3130 = vmatpush.xpose.msra.mxu0 %v3113
    %3131 = vmatmul.f32.gmra.mxu0 %v3110
    %v3132 = vpop.f32.mrf.mxu0
    %v3133 = vadd.f32 %v911, %v3132
    %3134 = vdwg.mxu0
    %v3135 = vsel %vm298, %v3133, -inf
    %3136 = vmax.xlane.f32.xlu0 %v3135
    %v3137 = vpop.xlane.xlu0 %3136
    %v3138 = vsub.f32 %v3133, %v3137
    %v3139 = vmul.f32 %v3138, 1.442695
    %v3140 = vpow.pop %v3139
    %v3141 = vsel %vm298, %v3140, 0.0
    %3142 = vadd.xlane.f32.xlu0 %v3141
    %v3143 = vpop.xlane.xlu0 %3142
    %v3144 = vrcp.pop %v3143
    %v3145 = vmul.f32 %v3140, %v3144
    %v3147 = vsel %vm298, %v3145, 0
    %3149 = vmatpush.msra.mxu0 0.0
    %3150 = vmatpush.msra.mxu0 0.0
    %3151 = vmatpush.msra.mxu0 0.0
    %3152 = vmatpush.msra.mxu0 0.0
    %3153 = vmatpush.msra.mxu0 0.0
    %3154 = vmatpush.msra.mxu0 0.0
    %3155 = vmatpush.msra.mxu0 0.0
    %3156 = vmatpush.msra.mxu0 0.0
    %3157 = vmatpush.msra.mxu0 0.0
    %3158 = vmatpush.msra.mxu0 0.0
    %3159 = vmatpush.msra.mxu0 0.0
    %3160 = vmatpush.msra.mxu0 0.0
    %3161 = vmatpush.msra.mxu0 0.0
    %3162 = vmatpush.msra.mxu0 0.0
    %3163 = vmatpush.msra.mxu0 0.0
    %3164 = vmatpush.msra.mxu0 %v3107
    %3165 = vmatmul.f32.gmra.mxu0 %v3147
    %v3166 = vpop.f32.mrf.mxu0
    %v3167 = vadd.f32 0.0, %v3166
    %3168 = vdwg.mxu0
    %v3169 = vld [vmem:[%s2490] sm:$0xff]
    %v3171 = vsel %vm298, %v3167, 0
    %3173 = vmatpush.msra.mxu0 0.0
    %3174 = vmatpush.msra.mxu0 0.0
    %3175 = vmatpush.msra.mxu0 0.0
    %3176 = vmatpush.msra.mxu0 0.0
    %3177 = vmatpush.msra.mxu0 0.0
    %3178 = vmatpush.msra.mxu0 0.0
    %3179 = vmatpush.msra.mxu0 0.0
    %3180 = vmatpush.msra.mxu0 0.0
    %3181 = vmatpush.msra.mxu0 0.0
    %3182 = vmatpush.msra.mxu0 0.0
    %3183 = vmatpush.msra.mxu0 0.0
    %3184 = vmatpush.msra.mxu0 0.0
    %3185 = vmatpush.msra.mxu0 0.0
    %3186 = vmatpush.msra.mxu0 0.0
    %3187 = vmatpush.msra.mxu0 0.0
    %3188 = vmatpush.msra.mxu0 %v3169
    %3189 = vmatmul.f32.gmra.mxu0 %v3171
    %v3190 = vpop.f32.mrf.mxu0
    %v3191 = vadd.f32 0.0, %v3190
    %3192 = vdwg.mxu0
    %v3193 = vadd.f32 %v3024, %v3191
    %3194 = vst.msk [vmem:[#allocation2 + $0x8] sm:$0xff] %vm135, %v3193
    %v3195 = vld [vmem:[#allocation2] sm:$0xff]
    %v3196 = vld [vmem:[#allocation2 + $0x8] sm:$0xff]
    %v3197 = vadd.f32 %v1809, %v3195
    %v3198 = vadd.f32 %v1810, %v3196
    %s3199 = scalar_lea.vmem %s13, 1
    %v3200 = vld [vmem:[%s3199] sm:$0x1]
    %v3202 = vperm.slane %v3200, 0
    %v3204 = vadd.f32 %v3197, %v3202
    %v3205 = vadd.f32 %v3198, %v3202
    %s3206 = scalar_lea.vmem %s14, 1
    %v3207 = vld [vmem:[%s3206] sm:$0x1]
    %s3208 = scalar_lea.vmem %s15, 1
    %v3209 = vld [vmem:[%s3208] sm:$0x1]
    %v3210 = vsel %vm135, %v3204, 0.0
    %3211 = vadd.xlane.f32.xlu0 %v3210
    %v3212 = vpop.xlane.xlu0 %3211
    %v3213 = vsel %vm135, %v3205, 0.0
    %3214 = vadd.xlane.f32.xlu0 %v3213
    %v3215 = vpop.xlane.xlu0 %3214
    %v3216 = vmul.f32 %v3212, %v155
    %v3217 = vmul.f32 %v3215, %v155
    %v3218 = vsub.f32 %v3204, %v3216
    %v3219 = vsub.f32 %v3205, %v3217
    %v3220 = vmul.f32 %v3218, %v3218
    %v3221 = vmul.f32 %v3219, %v3219
    %v3222 = vsel %vm135, %v3220, 0.0
    %3223 = vadd.xlane.f32.xlu0 %v3222
    %v3224 = vpop.xlane.xlu0 %3223
    %v3225 = vsel %vm135, %v3221, 0.0
    %3226 = vadd.xlane.f32.xlu0 %v3225
    %v3227 = vpop.xlane.xlu0 %3226
    %v3228 = vmul.f32 %v3224, %v155
    %v3229 = vmul.f32 %v3227, %v155
    %v3230 = vadd.f32 %v3228, 1e-12
    %v3231 = vadd.f32 %v3229, 1e-12
    %v3232 = vrsqrt.pop %v3230
    %v3233 = vmul.f32 %v3232, %v3230
    %v3234 = vmul.f32 %v3233, %v3232
    %v3235 = vmul.f32 0.5, %v3234
    %v3236 = vsub.f32 1.5, %v3235
    %v3237 = vmul.f32 %v3232, %v3236
    %vm3238 = vweird.f32 %v3230
    %vm3239 = vweird.f32 %v3232
    %vm3240 = vmor %vm3238, %vm3239
    %v3241 = vsel %vm3240, %v3232, %v3237
    %v3242 = vrsqrt.pop %v3231
    %v3243 = vmul.f32 %v3242, %v3231
    %v3244 = vmul.f32 %v3243, %v3242
    %v3245 = vmul.f32 0.5, %v3244
    %v3246 = vsub.f32 1.5, %v3245
    %v3247 = vmul.f32 %v3242, %v3246
    %vm3248 = vweird.f32 %v3231
    %vm3249 = vweird.f32 %v3242
    %vm3250 = vmor %vm3248, %vm3249
    %v3251 = vsel %vm3250, %v3242, %v3247
    %v3252 = vmul.f32 %v3218, %v3241
    %v3253 = vmul.f32 %v3219, %v3251
    %v3255 = vperm.slane %v3207, 0
    %v3257 = vmul.f32 %v3252, %v3255
    %v3258 = vmul.f32 %v3253, %v3255
    %v3260 = vperm.slane %v3209, 0
    %v3262 = vadd.f32 %v3257, %v3260
    %v3263 = vadd.f32 %v3258, %v3260
    %s3264 = scalar_lea.vmem %s16, 32
    %v3265 = vld [vmem:[%s3264] sm:$0xff]
    %v3266 = vld [vmem:[%s3264 + $0x8] sm:$0xff]
    %v3267 = vld [vmem:[%s3264 + $0x10] sm:$0xff]
    %v3268 = vld [vmem:[%s3264 + $0x18] sm:$0xff]
    %s3269 = scalar_lea.vmem %s17, 1
    %v3270 = vld [vmem:[%s3269] sm:$0x1]
    %v3272 = vperm.slane %v3270, 0
    %v3275 = vsel %vm135, %v3262, 0
    %v3278 = vsel %vm135, %v3263, 0
    %3280 = vmatpush.msra.mxu0 0.0
    %3281 = vmatpush.msra.mxu0 0.0
    %3282 = vmatpush.msra.mxu0 0.0
    %3283 = vmatpush.msra.mxu0 0.0
    %3284 = vmatpush.msra.mxu0 0.0
    %3285 = vmatpush.msra.mxu0 0.0
    %3286 = vmatpush.msra.mxu0 0.0
    %3287 = vmatpush.msra.mxu0 0.0
    %3288 = vmatpush.msra.mxu0 0.0
    %3289 = vmatpush.msra.mxu0 0.0
    %3290 = vmatpush.msra.mxu0 0.0
    %3291 = vmatpush.msra.mxu0 0.0
    %3292 = vmatpush.msra.mxu0 %v3268
    %3293 = vmatpush.msra.mxu0 %v3267
    %3294 = vmatpush.msra.mxu0 %v3266
    %3295 = vmatpush.msra.mxu0 %v3265
    %3296 = vmatmul.f32.gmra.mxu0 %v3275
    %v3297 = vpop.f32.mrf.mxu0
    %v3298 = vadd.f32 %v3272, %v3297
    %3299 = vmatmul.f32.gmra.mxu0 %v3278
    %v3300 = vpop.f32.mrf.mxu0
    %v3301 = vadd.f32 %v3272, %v3300
    %3302 = vdwg.mxu0
    %v3303 = vmul.f32 %v3298, 0.5
    %v3304 = vmul.f32 %v3301, 0.5
    %v3305 = vmul.f32 %v3298, 0.044715
    %v3306 = vmul.f32 %v3301, 0.044715
    %v3307 = vmul.f32 %v3305, %v3298
    %v3308 = vmul.f32 %v3306, %v3301
    %v3309 = vmul.f32 %v3307, %v3298
    %v3310 = vmul.f32 %v3308, %v3301
    %v3311 = vadd.f32 %v3298, %v3309
    %v3312 = vadd.f32 %v3301, %v3310
    %v3313 = vmul.f32 %v3311, 0.7978846
    %v3314 = vmul.f32 %v3312, 0.7978846
    %v3315 = vtanh.pop %v3313
    %v3316 = vtanh.pop %v3314
    %v3317 = vadd.f32 %v3315, 1.0
    %v3318 = vadd.f32 %v3316, 1.0
    %v3319 = vmul.f32 %v3303, %v3317
    %v3320 = vmul.f32 %v3304, %v3318
    %s3321 = scalar_lea.vmem %s18, 64
    %v3322 = vld [vmem:[%s3321] sm:$0xff]
    %v3323 = vld [vmem:[%s3321 + $0x8] sm:$0xff]
    %v3324 = vld [vmem:[%s3321 + $0x10] sm:$0xff]
    %v3325 = vld [vmem:[%s3321 + $0x18] sm:$0xff]
    %v3326 = vld [vmem:[%s3321 + $0x20] sm:$0xff]
    %v3327 = vld [vmem:[%s3321 + $0x28] sm:$0xff]
    %v3328 = vld [vmem:[%s3321 + $0x30] sm:$0xff]
    %v3329 = vld [vmem:[%s3321 + $0x38] sm:$0xff]
    %s3330 = scalar_lea.vmem %s19, 1
    %v3331 = vld [vmem:[%s3330] sm:$0x1]
    %v3333 = vperm.slane %v3331, 0
    %v3336 = vsel %vm1723, %v3319, 0
    %v3339 = vsel %vm1723, %v3320, 0
    %3341 = vmatpush.msra.mxu0 0.0
    %3342 = vmatpush.msra.mxu0 0.0
    %3343 = vmatpush.msra.mxu0 0.0
    %3344 = vmatpush.msra.mxu0 0.0
    %3345 = vmatpush.msra.mxu0 0.0
    %3346 = vmatpush.msra.mxu0 0.0
    %3347 = vmatpush.msra.mxu0 0.0
    %3348 = vmatpush.msra.mxu0 0.0
    %3349 = vmatpush.msra.mxu0 %v3329
    %3350 = vmatpush.msra.mxu0 %v3328
    %3351 = vmatpush.msra.mxu0 %v3327
    %3352 = vmatpush.msra.mxu0 %v3326
    %3353 = vmatpush.msra.mxu0 %v3325
    %3354 = vmatpush.msra.mxu0 %v3324
    %3355 = vmatpush.msra.mxu0 %v3323
    %3356 = vmatpush.msra.mxu0 %v3322
    %3357 = vmatmul.f32.gmra.mxu0 %v3336
    %v3358 = vpop.f32.mrf.mxu0
    %v3359 = vadd.f32 %v3333, %v3358
    %3360 = vmatmul.f32.gmra.mxu0 %v3339
    %v3361 = vpop.f32.mrf.mxu0
    %v3362 = vadd.f32 %v3333, %v3361
    %3363 = vdwg.mxu0
    %v3364 = vadd.f32 %v3262, %v3359
    %v3365 = vadd.f32 %v3263, %v3362
    %s3366 = scalar_lea.vmem %s20, 1
    %v3367 = vld [vmem:[%s3366] sm:$0x1]
    %s3368 = scalar_lea.vmem %s21, 1
    %v3369 = vld [vmem:[%s3368] sm:$0x1]
    %v3370 = vsel %vm135, %v3364, 0.0
    %3371 = vadd.xlane.f32.xlu0 %v3370
    %v3372 = vpop.xlane.xlu0 %3371
    %v3373 = vsel %vm135, %v3365, 0.0
    %3374 = vadd.xlane.f32.xlu0 %v3373
    %v3375 = vpop.xlane.xlu0 %3374
    %v3376 = vmul.f32 %v3372, %v155
    %v3377 = vmul.f32 %v3375, %v155
    %v3378 = vsub.f32 %v3364, %v3376
    %v3379 = vsub.f32 %v3365, %v3377
    %v3380 = vmul.f32 %v3378, %v3378
    %v3381 = vmul.f32 %v3379, %v3379
    %v3382 = vsel %vm135, %v3380, 0.0
    %3383 = vadd.xlane.f32.xlu0 %v3382
    %v3384 = vpop.xlane.xlu0 %3383
    %v3385 = vsel %vm135, %v3381, 0.0
    %3386 = vadd.xlane.f32.xlu0 %v3385
    %v3387 = vpop.xlane.xlu0 %3386
    %v3388 = vmul.f32 %v3384, %v155
    %v3389 = vmul.f32 %v3387, %v155
    %v3390 = vadd.f32 %v3388, 1e-12
    %v3391 = vadd.f32 %v3389, 1e-12
    %v3392 = vrsqrt.pop %v3390
    %v3393 = vmul.f32 %v3392, %v3390
    %v3394 = vmul.f32 %v3393, %v3392
    %v3395 = vmul.f32 0.5, %v3394
    %v3396 = vsub.f32 1.5, %v3395
    %v3397 = vmul.f32 %v3392, %v3396
    %vm3398 = vweird.f32 %v3390
    %vm3399 = vweird.f32 %v3392
    %vm3400 = vmor %vm3398, %vm3399
    %v3401 = vsel %vm3400, %v3392, %v3397
    %v3402 = vrsqrt.pop %v3391
    %v3403 = vmul.f32 %v3402, %v3391
    %v3404 = vmul.f32 %v3403, %v3402
    %v3405 = vmul.f32 0.5, %v3404
    %v3406 = vsub.f32 1.5, %v3405
    %v3407 = vmul.f32 %v3402, %v3406
    %vm3408 = vweird.f32 %v3391
    %vm3409 = vweird.f32 %v3402
    %vm3410 = vmor %vm3408, %vm3409
    %v3411 = vsel %vm3410, %v3402, %v3407
    %v3412 = vmul.f32 %v3378, %v3401
    %v3413 = vmul.f32 %v3379, %v3411
    %v3415 = vperm.slane %v3367, 0
    %v3417 = vmul.f32 %v3412, %v3415
    %v3418 = vmul.f32 %v3413, %v3415
    %v3420 = vperm.slane %v3369, 0
    %v3422 = vadd.f32 %v3417, %v3420
    %v3423 = vadd.f32 %v3418, %v3420
    %v3424 = vld [vmem:[%s22] sm:$0xff]
    %v3425 = vld [vmem:[%s22 + $0x8] sm:$0xff]
    %v3426 = vld [vmem:[%s22 + $0x10] sm:$0xff]
    %v3427 = vld [vmem:[%s22 + $0x18] sm:$0xff]
    %v3428 = vld [vmem:[%s23] sm:$0x1]
    %v3430 = vperm.slane %v3428, 0
    %v3433 = vsel %vm135, %v3422, 0
    %v3436 = vsel %vm135, %v3423, 0
    %3438 = vmatpush.msra.mxu0 0.0
    %3439 = vmatpush.msra.mxu0 0.0
    %3440 = vmatpush.msra.mxu0 0.0
    %3441 = vmatpush.msra.mxu0 0.0
    %3442 = vmatpush.msra.mxu0 0.0
    %3443 = vmatpush.msra.mxu0 0.0
    %3444 = vmatpush.msra.mxu0 0.0
    %3445 = vmatpush.msra.mxu0 0.0
    %3446 = vmatpush.msra.mxu0 0.0
    %3447 = vmatpush.msra.mxu0 0.0
    %3448 = vmatpush.msra.mxu0 0.0
    %3449 = vmatpush.msra.mxu0 0.0
    %3450 = vmatpush.msra.mxu0 %v3427
    %3451 = vmatpush.msra.mxu0 %v3426
    %3452 = vmatpush.msra.mxu0 %v3425
    %3453 = vmatpush.msra.mxu0 %v3424
    %3454 = vmatmul.f32.gmra.mxu0 %v3433
    %v3455 = vpop.f32.mrf.mxu0
    %v3456 = vadd.f32 %v3430, %v3455
    %3457 = vmatmul.f32.gmra.mxu0 %v3436
    %v3458 = vpop.f32.mrf.mxu0
    %v3459 = vadd.f32 %v3430, %v3458
    %3460 = vdwg.mxu0
    %3461 = vmax.xlane.f32.xlu0 %v3456
    %v3462 = vpop.xlane.xlu0 %3461
    %3463 = vmax.xlane.f32.xlu0 %v3459
    %v3464 = vpop.xlane.xlu0 %3463
    %v3465 = vsub.f32 %v3456, %v3462
    %v3466 = vsub.f32 %v3459, %v3464
    %v3467 = vmul.f32 %v3465, 1.442695
    %v3468 = vpow.pop %v3467
    %v3469 = vmul.f32 %v3466, 1.442695
    %v3470 = vpow.pop %v3469
    %3471 = vadd.xlane.f32.xlu0 %v3468
    %v3472 = vpop.xlane.xlu0 %3471
    %3473 = vadd.xlane.f32.xlu0 %v3470
    %v3474 = vpop.xlane.xlu0 %3473
    %v3475 = vlog2.pop %v3472
    %v3476 = vmul.f32 %v3475, 0.6931472
    %v3477 = vlog2.pop %v3474
    %v3478 = vmul.f32 %v3477, 0.6931472
    %v3479 = vsub.f32 %v3465, %v3476
    %v3480 = vsub.f32 %v3466, %v3478
    %3481 = vst [vmem:[#allocation3] sm:$0xff] %v3479
    %3482 = vst [vmem:[#allocation3 + $0x8] sm:$0xff] %v3480
    // Predicated region
    $region98: #{bert_ner_forward.1} parent=1 // pred_check
      _
    $region99: #{bert_ner_forward.1} parent=1 // pred_check_branch
      %3484 = sbr.rel (0) target = $region101
    $region100: #{bert_ner_forward.1} parent=1 // pred_region
      %3486 = vsyncadd [#allocation4], 0
      %s3487 = sshll.u32 [#allocation3], 4
      %s3488 = int_to_ptr.vmem [resolvable:$true] %s3487
      %s3489 = sshll.u32 %s24, 4
      %s3490 = int_to_ptr.hbm [resolvable:$true] %s3489
      %3495 = dma.vmem_to_hbm [thread:$0]  %s3488, 256, %s3490, [#allocation4], 128, 128, 8
    $region101: #{bert_ner_forward.1} parent=1 // pred_fallthru
      _
    // Predicated region
    $region102: #{bert_ner_forward.1} parent=1 // pred_check
      _
    $region103: #{bert_ner_forward.1} parent=1 // pred_check_branch
      %3497 = sbr.rel (0) target = $region105
    $region104: #{bert_ner_forward.1} parent=1 // pred_region
      %3499 = dma.done [#allocation4], 256
    $region105: #{bert_ner_forward.1} parent=1 // pred_fallthru
      _
    %3500 = vsyncpa [#allocation4], 1

</llo_original>
